<compile_context>
chip_gen: v7x
topology: tpu7x:2x2x1
jax: 0.10.0
libtpu: 0.0.40
codegen_flags: <defaults>
</compile_context>

<pallas_src>
import numpy as np
import jax
import jax.numpy as jnp
from jax.experimental import pallas as pl
from jax.experimental.pallas import tpu as pltpu

# ----------------------------------------------------------------------------
# Model dimensions.
# ----------------------------------------------------------------------------
CIN, H, W = 4, 16, 16
C1OUT, C2OUT = 8, 16
HIDDEN = 32
NUM_ACTIONS = 7          # SIMPLE_MOVEMENT action set
NOUT_PAD = 128           # lane-dense padded logit width (sliced to 7 outside)

# Flattened padded-spatial coordinate system (width padded to WP so that a
# (dh, dw) conv shift is a single contiguous lane offset dh*WP + dw).
WP, HP = W + 2, H + 2        # 18, 18
TSPAT = H * WP               # 288: conv2-output coordinate length
TSPAT2 = 384                 # conv1-output / conv2-input length (>= TSPAT + 2*WP + 2)
PADLEN_IN = 512              # conv1-input length (>= TSPAT2 + 2*WP + 2)
TAP_OFFS = tuple(kh * WP + kw for kh in range(3) for kw in range(3))


# ----------------------------------------------------------------------------
# Fused kernel: conv1 -> conv2 -> fc1 -> fc2, one batch element per grid step.
# ----------------------------------------------------------------------------
def _fused_net_kernel(x_ref, mask_ref, w1_ref, b1_ref, w2_ref, b2_ref,
                      w3_ref, b3_ref, w4_ref, b4_ref, out_ref):
    # ---- conv1: 9 shifted (C1OUT, CIN) @ (CIN, TSPAT2) MXU accumulations.
    # Output coordinate s is already conv2's padded-image flat coordinate.
    y1 = jnp.zeros((C1OUT, TSPAT2), jnp.float32)
    for k, off in enumerate(TAP_OFFS):
        xs = x_ref[0, :, off:off + TSPAT2]                    # (CIN, 384) bf16
        y1 = y1 + jnp.dot(w1_ref[k], xs, preferred_element_type=jnp.float32)
    # bias + ReLU, then zero everything that is conv2's zero padding.
    y1 = jnp.maximum(y1 + b1_ref[...], 0.0) * mask_ref[...]
    x2 = y1.astype(jnp.bfloat16)                              # (C1OUT, 384)

    # ---- conv2: 9 shifted (C2OUT, C1OUT) @ (C1OUT, TSPAT) accumulations.
    y2 = jnp.zeros((C2OUT, TSPAT), jnp.float32)
    for k, off in enumerate(TAP_OFFS):
        y2 = y2 + jnp.dot(w2_ref[k], x2[:, off:off + TSPAT],
                          preferred_element_type=jnp.float32)
    y2 = jnp.maximum(y2 + b2_ref[...], 0.0).astype(jnp.bfloat16)   # (C2OUT, 288)

    # ---- fc1: contraction over (channel, padded-spatial).  The C-major
    # PyTorch flatten is folded into w3_ref (invalid spatial columns carry
    # zero weights), so we just accumulate one small matmul per channel.
    h = jnp.zeros((1, HIDDEN), jnp.float32)
    for c in range(C2OUT):
        h = h + jnp.dot(y2[c:c + 1, :], w3_ref[c],
                        preferred_element_type=jnp.float32)
    h = jnp.maximum(h + b3_ref[...], 0.0).astype(jnp.bfloat16)     # (1, 32)

    # ---- fc2 (lane-padded to 128 output columns -> dense unmasked store).
    logits = jnp.dot(h, w4_ref[...], preferred_element_type=jnp.float32)
    out_ref[0] = (logits + b4_ref[...]).astype(out_ref.dtype)


# ----------------------------------------------------------------------------
# One-time parameter repacking (trace-time / load-time, plain XLA glue).
# ----------------------------------------------------------------------------
def prepare_params(params):
    # conv weights -> (9, Cout, Cin), tap-major (kh*3 + kw), bf16.
    w1t = jnp.transpose(params["w1"], (2, 3, 0, 1)).reshape(9, C1OUT, CIN)
    w2t = jnp.transpose(params["w2"], (2, 3, 0, 1)).reshape(9, C2OUT, C1OUT)
    w1t = w1t.astype(jnp.bfloat16)
    w2t = w2t.astype(jnp.bfloat16)
    b1c = params["b1"].reshape(C1OUT, 1).astype(jnp.float32)
    b2c = params["b2"].reshape(C2OUT, 1).astype(jnp.float32)

    # fc1 weight: fold the NCHW C-major flatten AND the padded-width spatial
    # layout (t = h*WP + w, zero weight on the phantom w>=W columns).
    w3e = params["w3"].reshape(C2OUT, H, W, HIDDEN)
    w3e = jnp.pad(w3e, ((0, 0), (0, 0), (0, WP - W), (0, 0)))
    w3e = w3e.reshape(C2OUT, TSPAT, HIDDEN).astype(jnp.bfloat16)
    b3c = params["b3"].reshape(1, HIDDEN).astype(jnp.float32)

    # fc2 weight/bias zero-padded to 128 output lanes.
    w4p = jnp.pad(params["w4"], ((0, 0), (0, NOUT_PAD - NUM_ACTIONS)))
    w4p = w4p.astype(jnp.bfloat16)
    b4p = jnp.pad(params["b4"], (0, NOUT_PAD - NUM_ACTIONS))
    b4p = b4p.reshape(1, NOUT_PAD).astype(jnp.float32)

    # Validity mask over the conv1-output coordinate s (s = WP+1 + h*WP + w,
    # h < H, w < W); everything else is conv2's zero padding.
    u = np.arange(TSPAT2)
    t = u - (WP + 1)
    valid = (t >= 0) & (t < H * WP) & ((t % WP) < W)
    mask2 = jnp.asarray(valid.astype(np.float32).reshape(1, TSPAT2))

    return (mask2, w1t, b1c, w2t, b2c, w3e, b3c, w4p, b4p)


def _pack_observation(obs):
    """(B, CIN, H, W) f32 -> (B, CIN, PADLEN_IN) bf16 flat padded image,
    placed at offset WP+1 so conv1 produces conv2-aligned coordinates."""
    B = obs.shape[0]
    xp = jnp.pad(obs, ((0, 0), (0, 0), (1, 1), (1, 1)))       # (B, CIN, 18, 18)
    xf = xp.reshape(B, CIN, HP * WP)                           # (B, CIN, 324)
    xin = jnp.pad(xf, ((0, 0), (0, 0),
                       (WP + 1, PADLEN_IN - HP * WP - (WP + 1))))
    return xin.astype(jnp.bfloat16)


# ----------------------------------------------------------------------------
# Forward pass (single fused pallas_call).
# ----------------------------------------------------------------------------
@jax.jit
def mario_model(packed, obs):
    """obs: (B, 4, 16, 16) NCHW f32 -> action logits (B, NUM_ACTIONS) f32."""
    B = obs.shape[0]
    xin = _pack_observation(obs)
    mask2, w1t, b1c, w2t, b2c, w3e, b3c, w4p, b4p = packed

    out = pl.pallas_call(
        _fused_net_kernel,
        out_shape=jax.ShapeDtypeStruct((B, 1, NOUT_PAD), jnp.float32),
        grid=(B,),
        in_specs=[
            pl.BlockSpec((1, CIN, PADLEN_IN), lambda b: (b, 0, 0)),   # obs
            pl.BlockSpec((1, TSPAT2), lambda b: (0, 0)),              # mask
            pl.BlockSpec((9, C1OUT, CIN), lambda b: (0, 0, 0)),       # w1
            pl.BlockSpec((C1OUT, 1), lambda b: (0, 0)),               # b1
            pl.BlockSpec((9, C2OUT, C1OUT), lambda b: (0, 0, 0)),     # w2
            pl.BlockSpec((C2OUT, 1), lambda b: (0, 0)),               # b2
            pl.BlockSpec((C2OUT, TSPAT, HIDDEN), lambda b: (0, 0, 0)),# w3e
            pl.BlockSpec((1, HIDDEN), lambda b: (0, 0)),              # b3
            pl.BlockSpec((HIDDEN, NOUT_PAD), lambda b: (0, 0)),       # w4
            pl.BlockSpec((1, NOUT_PAD), lambda b: (0, 0)),            # b4
        ],
        out_specs=pl.BlockSpec((1, 1, NOUT_PAD), lambda b: (b, 0, 0)),
        compiler_params=pltpu.CompilerParams(
            dimension_semantics=("parallel",)),   # v7x: one batch elem per TC
    )(xin, mask2, w1t, b1c, w2t, b2c, w3e, b3c, w4p, b4p)

    return out[:, 0, :NUM_ACTIONS]


def rl_network_forward(packed, state):
    """RLNetwork.forward: state.apply(model, 'observation', 'pilot_action')."""
    out = dict(state)
    out["pilot_action"] = mario_model(packed, state["observation"])
    return out


# ----------------------------------------------------------------------------
# Deterministic parameters for the wrapped Mario model (PyTorch conventions:
# conv weight (Cout, Cin, 3, 3); fc used as x @ w + b).
# ----------------------------------------------------------------------------
def init_params(key):
    ks = jax.random.split(key, 8)
    scale = 0.05
    return {
        "w1": scale * jax.random.normal(ks[0], (C1OUT, CIN, 3, 3), jnp.float32),
        "b1": scale * jax.random.normal(ks[1], (C1OUT,), jnp.float32),
        "w2": scale * jax.random.normal(ks[2], (C2OUT, C1OUT, 3, 3), jnp.float32),
        "b2": scale * jax.random.normal(ks[3], (C2OUT,), jnp.float32),
        "w3": scale * jax.random.normal(ks[4], (C2OUT * H * W, HIDDEN), jnp.float32),
        "b3": scale * jax.random.normal(ks[5], (HIDDEN,), jnp.float32),
        "w4": scale * jax.random.normal(ks[6], (HIDDEN, NUM_ACTIONS), jnp.float32),
        "b4": scale * jax.random.normal(ks[7], (NUM_ACTIONS,), jnp.float32),
    }


# ----------------------------------------------------------------------------
# Independent pure-JAX reference (lax.conv, f32) — verifies tap ordering,
# padding and the C-major flatten independently of the kernel's layout tricks.
# ----------------------------------------------------------------------------
def _ref_model(params, obs):
    dn = ("NCHW", "OIHW", "NCHW")
    x = jax.lax.conv_general_dilated(obs, params["w1"], (1, 1), "SAME",
                                     dimension_numbers=dn)
    x = jnp.maximum(x + params["b1"][None, :, None, None], 0.0)
    x = jax.lax.conv_general_dilated(x, params["w2"], (1, 1), "SAME",
                                     dimension_numbers=dn)
    x = jnp.maximum(x + params["b2"][None, :, None, None], 0.0)
    x = x.reshape(x.shape[0], -1)                    # NCHW flatten (C-major)
    x = jnp.maximum(x @ params["w3"] + params["b3"], 0.0)
    return x @ params["w4"] + params["b4"]


if __name__ == "__main__":
    key = jax.random.PRNGKey(0)
    pkey, okey = jax.random.split(key)
    params = init_params(pkey)
    packed = prepare_params(params)

    obs = jax.random.normal(okey, (2, CIN, H, W), jnp.float32)
    state = {"observation": obs}

    out_state = rl_network_forward(packed, state)
    logits = jax.block_until_ready(out_state["pilot_action"])

    ref = jax.block_until_ready(_ref_model(params, obs))
    assert logits.shape == (2, NUM_ACTIONS)
    assert jnp.allclose(logits, ref, rtol=2e-2, atol=1e-2), (
        f"max abs err {jnp.max(jnp.abs(logits - ref))}")

    print("KERNEL_OK")
</pallas_src>

<mosaic_0001>
module attributes {stable_mosaic.version = 11 : i64} {
  func.func @_fused_net_kernel(%arg0: i32, %arg1: memref<1x4x512xbf16, #tpu.memory_space<vmem>>, %arg2: memref<1x384xf32, #tpu.memory_space<vmem>>, %arg3: memref<9x8x4xbf16, #tpu.memory_space<vmem>>, %arg4: memref<8x1xf32, #tpu.memory_space<vmem>>, %arg5: memref<9x16x8xbf16, #tpu.memory_space<vmem>>, %arg6: memref<16x1xf32, #tpu.memory_space<vmem>>, %arg7: memref<16x288x32xbf16, #tpu.memory_space<vmem>>, %arg8: memref<1x32xf32, #tpu.memory_space<vmem>>, %arg9: memref<32x128xbf16, #tpu.memory_space<vmem>>, %arg10: memref<1x128xf32, #tpu.memory_space<vmem>>, %arg11: memref<1x1x128xf32, #tpu.memory_space<vmem>>) attributes {dimension_semantics = [#tpu.dimension_semantics<parallel>], iteration_bounds = array<i64: 2>, scalar_prefetch = 0 : i64, scratch_operands = 0 : i64, tpu.core_type = #tpu.core_type<tc>, window_params = [{transform_indices = @transform_0, window_bounds = array<i64: 1, 4, 512>}, {pipeline_mode = #tpu.pipeline_mode<synchronous>, transform_indices = @transform_1, window_bounds = array<i64: 1, 384>}, {pipeline_mode = #tpu.pipeline_mode<synchronous>, transform_indices = @transform_2, window_bounds = array<i64: 9, 8, 4>}, {pipeline_mode = #tpu.pipeline_mode<synchronous>, transform_indices = @transform_3, window_bounds = array<i64: 8, 1>}, {pipeline_mode = #tpu.pipeline_mode<synchronous>, transform_indices = @transform_4, window_bounds = array<i64: 9, 16, 8>}, {pipeline_mode = #tpu.pipeline_mode<synchronous>, transform_indices = @transform_5, window_bounds = array<i64: 16, 1>}, {pipeline_mode = #tpu.pipeline_mode<synchronous>, transform_indices = @transform_6, window_bounds = array<i64: 16, 288, 32>}, {pipeline_mode = #tpu.pipeline_mode<synchronous>, transform_indices = @transform_7, window_bounds = array<i64: 1, 32>}, {pipeline_mode = #tpu.pipeline_mode<synchronous>, transform_indices = @transform_8, window_bounds = array<i64: 32, 128>}, {pipeline_mode = #tpu.pipeline_mode<synchronous>, transform_indices = @transform_9, window_bounds = array<i64: 1, 128>}, {transform_indices = @transform_10, window_bounds = array<i64: 1, 1, 128>}]} {
    %cst = arith.constant 0.000000e+00 : f32
    %0 = vector.broadcast %cst : f32 to vector<8x384xf32>
    %c0 = arith.constant 0 : index
    %c0_0 = arith.constant 0 : index
    %c0_1 = arith.constant 0 : index
    %1 = vector.load %arg1[%c0, %c0_0, %c0_1] : memref<1x4x512xbf16, #tpu.memory_space<vmem>>, vector<1x4x384xbf16>
    %2 = vector.shape_cast %1 : vector<1x4x384xbf16> to vector<4x384xbf16>
    %c0_2 = arith.constant 0 : index
    %c0_3 = arith.constant 0 : index
    %c0_4 = arith.constant 0 : index
    %3 = vector.load %arg3[%c0_2, %c0_3, %c0_4] : memref<9x8x4xbf16, #tpu.memory_space<vmem>>, vector<1x8x4xbf16>
    %4 = vector.shape_cast %3 : vector<1x8x4xbf16> to vector<8x4xbf16>
    %cst_5 = arith.constant dense<0.000000e+00> : vector<8x384xf32>
    %5 = tpu.matmul %4, %2, %cst_5 {dimension_numbers = #tpu.dot_dimension_numbers<[1], [0], [0], [1], [0, 0, 1, 1], [], []>} : vector<8x4xbf16>, vector<4x384xbf16>, vector<8x384xf32> -> vector<8x384xf32>
    %6 = arith.addf %0, %5 : vector<8x384xf32>
    %c0_6 = arith.constant 0 : index
    %c0_7 = arith.constant 0 : index
    %c1 = arith.constant 1 : index
    %7 = vector.load %arg1[%c0_6, %c0_7, %c1] : memref<1x4x512xbf16, #tpu.memory_space<vmem>>, vector<1x4x384xbf16>
    %8 = vector.shape_cast %7 : vector<1x4x384xbf16> to vector<4x384xbf16>
    %c1_8 = arith.constant 1 : index
    %c0_9 = arith.constant 0 : index
    %c0_10 = arith.constant 0 : index
    %9 = vector.load %arg3[%c1_8, %c0_9, %c0_10] : memref<9x8x4xbf16, #tpu.memory_space<vmem>>, vector<1x8x4xbf16>
    %10 = vector.shape_cast %9 : vector<1x8x4xbf16> to vector<8x4xbf16>
    %cst_11 = arith.constant dense<0.000000e+00> : vector<8x384xf32>
    %11 = tpu.matmul %10, %8, %cst_11 {dimension_numbers = #tpu.dot_dimension_numbers<[1], [0], [0], [1], [0, 0, 1, 1], [], []>} : vector<8x4xbf16>, vector<4x384xbf16>, vector<8x384xf32> -> vector<8x384xf32>
    %12 = arith.addf %6, %11 : vector<8x384xf32>
    %c0_12 = arith.constant 0 : index
    %c0_13 = arith.constant 0 : index
    %c2 = arith.constant 2 : index
    %13 = vector.load %arg1[%c0_12, %c0_13, %c2] : memref<1x4x512xbf16, #tpu.memory_space<vmem>>, vector<1x4x384xbf16>
    %14 = vector.shape_cast %13 : vector<1x4x384xbf16> to vector<4x384xbf16>
    %c2_14 = arith.constant 2 : index
    %c0_15 = arith.constant 0 : index
    %c0_16 = arith.constant 0 : index
    %15 = vector.load %arg3[%c2_14, %c0_15, %c0_16] : memref<9x8x4xbf16, #tpu.memory_space<vmem>>, vector<1x8x4xbf16>
    %16 = vector.shape_cast %15 : vector<1x8x4xbf16> to vector<8x4xbf16>
    %cst_17 = arith.constant dense<0.000000e+00> : vector<8x384xf32>
    %17 = tpu.matmul %16, %14, %cst_17 {dimension_numbers = #tpu.dot_dimension_numbers<[1], [0], [0], [1], [0, 0, 1, 1], [], []>} : vector<8x4xbf16>, vector<4x384xbf16>, vector<8x384xf32> -> vector<8x384xf32>
    %18 = arith.addf %12, %17 : vector<8x384xf32>
    %c0_18 = arith.constant 0 : index
    %c0_19 = arith.constant 0 : index
    %c18 = arith.constant 18 : index
    %19 = vector.load %arg1[%c0_18, %c0_19, %c18] : memref<1x4x512xbf16, #tpu.memory_space<vmem>>, vector<1x4x384xbf16>
    %20 = vector.shape_cast %19 : vector<1x4x384xbf16> to vector<4x384xbf16>
    %c3 = arith.constant 3 : index
    %c0_20 = arith.constant 0 : index
    %c0_21 = arith.constant 0 : index
    %21 = vector.load %arg3[%c3, %c0_20, %c0_21] : memref<9x8x4xbf16, #tpu.memory_space<vmem>>, vector<1x8x4xbf16>
    %22 = vector.shape_cast %21 : vector<1x8x4xbf16> to vector<8x4xbf16>
    %cst_22 = arith.constant dense<0.000000e+00> : vector<8x384xf32>
    %23 = tpu.matmul %22, %20, %cst_22 {dimension_numbers = #tpu.dot_dimension_numbers<[1], [0], [0], [1], [0, 0, 1, 1], [], []>} : vector<8x4xbf16>, vector<4x384xbf16>, vector<8x384xf32> -> vector<8x384xf32>
    %24 = arith.addf %18, %23 : vector<8x384xf32>
    %c0_23 = arith.constant 0 : index
    %c0_24 = arith.constant 0 : index
    %c19 = arith.constant 19 : index
    %25 = vector.load %arg1[%c0_23, %c0_24, %c19] : memref<1x4x512xbf16, #tpu.memory_space<vmem>>, vector<1x4x384xbf16>
    %26 = vector.shape_cast %25 : vector<1x4x384xbf16> to vector<4x384xbf16>
    %c4 = arith.constant 4 : index
    %c0_25 = arith.constant 0 : index
    %c0_26 = arith.constant 0 : index
    %27 = vector.load %arg3[%c4, %c0_25, %c0_26] : memref<9x8x4xbf16, #tpu.memory_space<vmem>>, vector<1x8x4xbf16>
    %28 = vector.shape_cast %27 : vector<1x8x4xbf16> to vector<8x4xbf16>
    %cst_27 = arith.constant dense<0.000000e+00> : vector<8x384xf32>
    %29 = tpu.matmul %28, %26, %cst_27 {dimension_numbers = #tpu.dot_dimension_numbers<[1], [0], [0], [1], [0, 0, 1, 1], [], []>} : vector<8x4xbf16>, vector<4x384xbf16>, vector<8x384xf32> -> vector<8x384xf32>
    %30 = arith.addf %24, %29 : vector<8x384xf32>
    %c0_28 = arith.constant 0 : index
    %c0_29 = arith.constant 0 : index
    %c20 = arith.constant 20 : index
    %31 = vector.load %arg1[%c0_28, %c0_29, %c20] : memref<1x4x512xbf16, #tpu.memory_space<vmem>>, vector<1x4x384xbf16>
    %32 = vector.shape_cast %31 : vector<1x4x384xbf16> to vector<4x384xbf16>
    %c5 = arith.constant 5 : index
    %c0_30 = arith.constant 0 : index
    %c0_31 = arith.constant 0 : index
    %33 = vector.load %arg3[%c5, %c0_30, %c0_31] : memref<9x8x4xbf16, #tpu.memory_space<vmem>>, vector<1x8x4xbf16>
    %34 = vector.shape_cast %33 : vector<1x8x4xbf16> to vector<8x4xbf16>
    %cst_32 = arith.constant dense<0.000000e+00> : vector<8x384xf32>
    %35 = tpu.matmul %34, %32, %cst_32 {dimension_numbers = #tpu.dot_dimension_numbers<[1], [0], [0], [1], [0, 0, 1, 1], [], []>} : vector<8x4xbf16>, vector<4x384xbf16>, vector<8x384xf32> -> vector<8x384xf32>
    %36 = arith.addf %30, %35 : vector<8x384xf32>
    %c0_33 = arith.constant 0 : index
    %c0_34 = arith.constant 0 : index
    %c36 = arith.constant 36 : index
    %37 = vector.load %arg1[%c0_33, %c0_34, %c36] : memref<1x4x512xbf16, #tpu.memory_space<vmem>>, vector<1x4x384xbf16>
    %38 = vector.shape_cast %37 : vector<1x4x384xbf16> to vector<4x384xbf16>
    %c6 = arith.constant 6 : index
    %c0_35 = arith.constant 0 : index
    %c0_36 = arith.constant 0 : index
    %39 = vector.load %arg3[%c6, %c0_35, %c0_36] : memref<9x8x4xbf16, #tpu.memory_space<vmem>>, vector<1x8x4xbf16>
    %40 = vector.shape_cast %39 : vector<1x8x4xbf16> to vector<8x4xbf16>
    %cst_37 = arith.constant dense<0.000000e+00> : vector<8x384xf32>
    %41 = tpu.matmul %40, %38, %cst_37 {dimension_numbers = #tpu.dot_dimension_numbers<[1], [0], [0], [1], [0, 0, 1, 1], [], []>} : vector<8x4xbf16>, vector<4x384xbf16>, vector<8x384xf32> -> vector<8x384xf32>
    %42 = arith.addf %36, %41 : vector<8x384xf32>
    %c0_38 = arith.constant 0 : index
    %c0_39 = arith.constant 0 : index
    %c37 = arith.constant 37 : index
    %43 = vector.load %arg1[%c0_38, %c0_39, %c37] : memref<1x4x512xbf16, #tpu.memory_space<vmem>>, vector<1x4x384xbf16>
    %44 = vector.shape_cast %43 : vector<1x4x384xbf16> to vector<4x384xbf16>
    %c7 = arith.constant 7 : index
    %c0_40 = arith.constant 0 : index
    %c0_41 = arith.constant 0 : index
    %45 = vector.load %arg3[%c7, %c0_40, %c0_41] : memref<9x8x4xbf16, #tpu.memory_space<vmem>>, vector<1x8x4xbf16>
    %46 = vector.shape_cast %45 : vector<1x8x4xbf16> to vector<8x4xbf16>
    %cst_42 = arith.constant dense<0.000000e+00> : vector<8x384xf32>
    %47 = tpu.matmul %46, %44, %cst_42 {dimension_numbers = #tpu.dot_dimension_numbers<[1], [0], [0], [1], [0, 0, 1, 1], [], []>} : vector<8x4xbf16>, vector<4x384xbf16>, vector<8x384xf32> -> vector<8x384xf32>
    %48 = arith.addf %42, %47 : vector<8x384xf32>
    %c0_43 = arith.constant 0 : index
    %c0_44 = arith.constant 0 : index
    %c38 = arith.constant 38 : index
    %49 = vector.load %arg1[%c0_43, %c0_44, %c38] : memref<1x4x512xbf16, #tpu.memory_space<vmem>>, vector<1x4x384xbf16>
    %50 = vector.shape_cast %49 : vector<1x4x384xbf16> to vector<4x384xbf16>
    %c8 = arith.constant 8 : index
    %c0_45 = arith.constant 0 : index
    %c0_46 = arith.constant 0 : index
    %51 = vector.load %arg3[%c8, %c0_45, %c0_46] : memref<9x8x4xbf16, #tpu.memory_space<vmem>>, vector<1x8x4xbf16>
    %52 = vector.shape_cast %51 : vector<1x8x4xbf16> to vector<8x4xbf16>
    %cst_47 = arith.constant dense<0.000000e+00> : vector<8x384xf32>
    %53 = tpu.matmul %52, %50, %cst_47 {dimension_numbers = #tpu.dot_dimension_numbers<[1], [0], [0], [1], [0, 0, 1, 1], [], []>} : vector<8x4xbf16>, vector<4x384xbf16>, vector<8x384xf32> -> vector<8x384xf32>
    %54 = arith.addf %48, %53 : vector<8x384xf32>
    %c0_48 = arith.constant 0 : index
    %c0_49 = arith.constant 0 : index
    %55 = vector.load %arg4[%c0_48, %c0_49] : memref<8x1xf32, #tpu.memory_space<vmem>>, vector<8x1xf32>
    %56 = vector.broadcast %55 : vector<8x1xf32> to vector<8x384xf32>
    %57 = arith.addf %54, %56 : vector<8x384xf32>
    %cst_50 = arith.constant 0.000000e+00 : f32
    %58 = vector.broadcast %cst_50 : f32 to vector<8x384xf32>
    %59 = arith.maximumf %57, %58 : vector<8x384xf32>
    %c0_51 = arith.constant 0 : index
    %c0_52 = arith.constant 0 : index
    %60 = vector.load %arg2[%c0_51, %c0_52] : memref<1x384xf32, #tpu.memory_space<vmem>>, vector<1x384xf32>
    %61 = vector.broadcast %60 : vector<1x384xf32> to vector<8x384xf32>
    %62 = arith.mulf %59, %61 : vector<8x384xf32>
    %63 = arith.truncf %62 : vector<8x384xf32> to vector<8x384xbf16>
    %cst_53 = arith.constant 0.000000e+00 : f32
    %64 = vector.broadcast %cst_53 : f32 to vector<16x288xf32>
    %c0_54 = arith.constant 0 : index
    %c0_55 = arith.constant 0 : index
    %c0_56 = arith.constant 0 : index
    %65 = vector.load %arg5[%c0_54, %c0_55, %c0_56] : memref<9x16x8xbf16, #tpu.memory_space<vmem>>, vector<1x16x8xbf16>
    %66 = vector.shape_cast %65 : vector<1x16x8xbf16> to vector<16x8xbf16>
    %67 = vector.extract_strided_slice %63 {offsets = [0, 0], sizes = [8, 288], strides = [1, 1]} : vector<8x384xbf16> to vector<8x288xbf16>
    %cst_57 = arith.constant dense<0.000000e+00> : vector<16x288xf32>
    %68 = tpu.matmul %66, %67, %cst_57 {dimension_numbers = #tpu.dot_dimension_numbers<[1], [0], [0], [1], [0, 0, 1, 1], [], []>} : vector<16x8xbf16>, vector<8x288xbf16>, vector<16x288xf32> -> vector<16x288xf32>
    %69 = arith.addf %64, %68 : vector<16x288xf32>
    %c1_58 = arith.constant 1 : index
    %c0_59 = arith.constant 0 : index
    %c0_60 = arith.constant 0 : index
    %70 = vector.load %arg5[%c1_58, %c0_59, %c0_60] : memref<9x16x8xbf16, #tpu.memory_space<vmem>>, vector<1x16x8xbf16>
    %71 = vector.shape_cast %70 : vector<1x16x8xbf16> to vector<16x8xbf16>
    %72 = vector.extract_strided_slice %63 {offsets = [0, 1], sizes = [8, 288], strides = [1, 1]} : vector<8x384xbf16> to vector<8x288xbf16>
    %cst_61 = arith.constant dense<0.000000e+00> : vector<16x288xf32>
    %73 = tpu.matmul %71, %72, %cst_61 {dimension_numbers = #tpu.dot_dimension_numbers<[1], [0], [0], [1], [0, 0, 1, 1], [], []>} : vector<16x8xbf16>, vector<8x288xbf16>, vector<16x288xf32> -> vector<16x288xf32>
    %74 = arith.addf %69, %73 : vector<16x288xf32>
    %c2_62 = arith.constant 2 : index
    %c0_63 = arith.constant 0 : index
    %c0_64 = arith.constant 0 : index
    %75 = vector.load %arg5[%c2_62, %c0_63, %c0_64] : memref<9x16x8xbf16, #tpu.memory_space<vmem>>, vector<1x16x8xbf16>
    %76 = vector.shape_cast %75 : vector<1x16x8xbf16> to vector<16x8xbf16>
    %77 = vector.extract_strided_slice %63 {offsets = [0, 2], sizes = [8, 288], strides = [1, 1]} : vector<8x384xbf16> to vector<8x288xbf16>
    %cst_65 = arith.constant dense<0.000000e+00> : vector<16x288xf32>
    %78 = tpu.matmul %76, %77, %cst_65 {dimension_numbers = #tpu.dot_dimension_numbers<[1], [0], [0], [1], [0, 0, 1, 1], [], []>} : vector<16x8xbf16>, vector<8x288xbf16>, vector<16x288xf32> -> vector<16x288xf32>
    %79 = arith.addf %74, %78 : vector<16x288xf32>
    %c3_66 = arith.constant 3 : index
    %c0_67 = arith.constant 0 : index
    %c0_68 = arith.constant 0 : index
    %80 = vector.load %arg5[%c3_66, %c0_67, %c0_68] : memref<9x16x8xbf16, #tpu.memory_space<vmem>>, vector<1x16x8xbf16>
    %81 = vector.shape_cast %80 : vector<1x16x8xbf16> to vector<16x8xbf16>
    %82 = vector.extract_strided_slice %63 {offsets = [0, 18], sizes = [8, 288], strides = [1, 1]} : vector<8x384xbf16> to vector<8x288xbf16>
    %cst_69 = arith.constant dense<0.000000e+00> : vector<16x288xf32>
    %83 = tpu.matmul %81, %82, %cst_69 {dimension_numbers = #tpu.dot_dimension_numbers<[1], [0], [0], [1], [0, 0, 1, 1], [], []>} : vector<16x8xbf16>, vector<8x288xbf16>, vector<16x288xf32> -> vector<16x288xf32>
    %84 = arith.addf %79, %83 : vector<16x288xf32>
    %c4_70 = arith.constant 4 : index
    %c0_71 = arith.constant 0 : index
    %c0_72 = arith.constant 0 : index
    %85 = vector.load %arg5[%c4_70, %c0_71, %c0_72] : memref<9x16x8xbf16, #tpu.memory_space<vmem>>, vector<1x16x8xbf16>
    %86 = vector.shape_cast %85 : vector<1x16x8xbf16> to vector<16x8xbf16>
    %87 = vector.extract_strided_slice %63 {offsets = [0, 19], sizes = [8, 288], strides = [1, 1]} : vector<8x384xbf16> to vector<8x288xbf16>
    %cst_73 = arith.constant dense<0.000000e+00> : vector<16x288xf32>
    %88 = tpu.matmul %86, %87, %cst_73 {dimension_numbers = #tpu.dot_dimension_numbers<[1], [0], [0], [1], [0, 0, 1, 1], [], []>} : vector<16x8xbf16>, vector<8x288xbf16>, vector<16x288xf32> -> vector<16x288xf32>
    %89 = arith.addf %84, %88 : vector<16x288xf32>
    %c5_74 = arith.constant 5 : index
    %c0_75 = arith.constant 0 : index
    %c0_76 = arith.constant 0 : index
    %90 = vector.load %arg5[%c5_74, %c0_75, %c0_76] : memref<9x16x8xbf16, #tpu.memory_space<vmem>>, vector<1x16x8xbf16>
    %91 = vector.shape_cast %90 : vector<1x16x8xbf16> to vector<16x8xbf16>
    %92 = vector.extract_strided_slice %63 {offsets = [0, 20], sizes = [8, 288], strides = [1, 1]} : vector<8x384xbf16> to vector<8x288xbf16>
    %cst_77 = arith.constant dense<0.000000e+00> : vector<16x288xf32>
    %93 = tpu.matmul %91, %92, %cst_77 {dimension_numbers = #tpu.dot_dimension_numbers<[1], [0], [0], [1], [0, 0, 1, 1], [], []>} : vector<16x8xbf16>, vector<8x288xbf16>, vector<16x288xf32> -> vector<16x288xf32>
    %94 = arith.addf %89, %93 : vector<16x288xf32>
    %c6_78 = arith.constant 6 : index
    %c0_79 = arith.constant 0 : index
    %c0_80 = arith.constant 0 : index
    %95 = vector.load %arg5[%c6_78, %c0_79, %c0_80] : memref<9x16x8xbf16, #tpu.memory_space<vmem>>, vector<1x16x8xbf16>
    %96 = vector.shape_cast %95 : vector<1x16x8xbf16> to vector<16x8xbf16>
    %97 = vector.extract_strided_slice %63 {offsets = [0, 36], sizes = [8, 288], strides = [1, 1]} : vector<8x384xbf16> to vector<8x288xbf16>
    %cst_81 = arith.constant dense<0.000000e+00> : vector<16x288xf32>
    %98 = tpu.matmul %96, %97, %cst_81 {dimension_numbers = #tpu.dot_dimension_numbers<[1], [0], [0], [1], [0, 0, 1, 1], [], []>} : vector<16x8xbf16>, vector<8x288xbf16>, vector<16x288xf32> -> vector<16x288xf32>
    %99 = arith.addf %94, %98 : vector<16x288xf32>
    %c7_82 = arith.constant 7 : index
    %c0_83 = arith.constant 0 : index
    %c0_84 = arith.constant 0 : index
    %100 = vector.load %arg5[%c7_82, %c0_83, %c0_84] : memref<9x16x8xbf16, #tpu.memory_space<vmem>>, vector<1x16x8xbf16>
    %101 = vector.shape_cast %100 : vector<1x16x8xbf16> to vector<16x8xbf16>
    %102 = vector.extract_strided_slice %63 {offsets = [0, 37], sizes = [8, 288], strides = [1, 1]} : vector<8x384xbf16> to vector<8x288xbf16>
    %cst_85 = arith.constant dense<0.000000e+00> : vector<16x288xf32>
    %103 = tpu.matmul %101, %102, %cst_85 {dimension_numbers = #tpu.dot_dimension_numbers<[1], [0], [0], [1], [0, 0, 1, 1], [], []>} : vector<16x8xbf16>, vector<8x288xbf16>, vector<16x288xf32> -> vector<16x288xf32>
    %104 = arith.addf %99, %103 : vector<16x288xf32>
    %c8_86 = arith.constant 8 : index
    %c0_87 = arith.constant 0 : index
    %c0_88 = arith.constant 0 : index
    %105 = vector.load %arg5[%c8_86, %c0_87, %c0_88] : memref<9x16x8xbf16, #tpu.memory_space<vmem>>, vector<1x16x8xbf16>
    %106 = vector.shape_cast %105 : vector<1x16x8xbf16> to vector<16x8xbf16>
    %107 = vector.extract_strided_slice %63 {offsets = [0, 38], sizes = [8, 288], strides = [1, 1]} : vector<8x384xbf16> to vector<8x288xbf16>
    %cst_89 = arith.constant dense<0.000000e+00> : vector<16x288xf32>
    %108 = tpu.matmul %106, %107, %cst_89 {dimension_numbers = #tpu.dot_dimension_numbers<[1], [0], [0], [1], [0, 0, 1, 1], [], []>} : vector<16x8xbf16>, vector<8x288xbf16>, vector<16x288xf32> -> vector<16x288xf32>
    %109 = arith.addf %104, %108 : vector<16x288xf32>
    %c0_90 = arith.constant 0 : index
    %c0_91 = arith.constant 0 : index
    %110 = vector.load %arg6[%c0_90, %c0_91] : memref<16x1xf32, #tpu.memory_space<vmem>>, vector<16x1xf32>
    %111 = vector.broadcast %110 : vector<16x1xf32> to vector<16x288xf32>
    %112 = arith.addf %109, %111 : vector<16x288xf32>
    %cst_92 = arith.constant 0.000000e+00 : f32
    %113 = vector.broadcast %cst_92 : f32 to vector<16x288xf32>
    %114 = arith.maximumf %112, %113 : vector<16x288xf32>
    %115 = arith.truncf %114 : vector<16x288xf32> to vector<16x288xbf16>
    %cst_93 = arith.constant 0.000000e+00 : f32
    %116 = vector.broadcast %cst_93 : f32 to vector<1x32xf32>
    %117 = vector.extract_strided_slice %115 {offsets = [0, 0], sizes = [1, 288], strides = [1, 1]} : vector<16x288xbf16> to vector<1x288xbf16>
    %c0_94 = arith.constant 0 : index
    %c0_95 = arith.constant 0 : index
    %c0_96 = arith.constant 0 : index
    %118 = vector.load %arg7[%c0_94, %c0_95, %c0_96] : memref<16x288x32xbf16, #tpu.memory_space<vmem>>, vector<1x288x32xbf16>
    %119 = vector.shape_cast %118 : vector<1x288x32xbf16> to vector<288x32xbf16>
    %cst_97 = arith.constant dense<0.000000e+00> : vector<1x32xf32>
    %120 = tpu.matmul %117, %119, %cst_97 {dimension_numbers = #tpu.dot_dimension_numbers<[1], [0], [0], [1], [0, 0, 1, 1], [], []>} : vector<1x288xbf16>, vector<288x32xbf16>, vector<1x32xf32> -> vector<1x32xf32>
    %121 = arith.addf %116, %120 : vector<1x32xf32>
    %122 = vector.extract_strided_slice %115 {offsets = [1, 0], sizes = [1, 288], strides = [1, 1]} : vector<16x288xbf16> to vector<1x288xbf16>
    %c1_98 = arith.constant 1 : index
    %c0_99 = arith.constant 0 : index
    %c0_100 = arith.constant 0 : index
    %123 = vector.load %arg7[%c1_98, %c0_99, %c0_100] : memref<16x288x32xbf16, #tpu.memory_space<vmem>>, vector<1x288x32xbf16>
    %124 = vector.shape_cast %123 : vector<1x288x32xbf16> to vector<288x32xbf16>
    %cst_101 = arith.constant dense<0.000000e+00> : vector<1x32xf32>
    %125 = tpu.matmul %122, %124, %cst_101 {dimension_numbers = #tpu.dot_dimension_numbers<[1], [0], [0], [1], [0, 0, 1, 1], [], []>} : vector<1x288xbf16>, vector<288x32xbf16>, vector<1x32xf32> -> vector<1x32xf32>
    %126 = arith.addf %121, %125 : vector<1x32xf32>
    %127 = vector.extract_strided_slice %115 {offsets = [2, 0], sizes = [1, 288], strides = [1, 1]} : vector<16x288xbf16> to vector<1x288xbf16>
    %c2_102 = arith.constant 2 : index
    %c0_103 = arith.constant 0 : index
    %c0_104 = arith.constant 0 : index
    %128 = vector.load %arg7[%c2_102, %c0_103, %c0_104] : memref<16x288x32xbf16, #tpu.memory_space<vmem>>, vector<1x288x32xbf16>
    %129 = vector.shape_cast %128 : vector<1x288x32xbf16> to vector<288x32xbf16>
    %cst_105 = arith.constant dense<0.000000e+00> : vector<1x32xf32>
    %130 = tpu.matmul %127, %129, %cst_105 {dimension_numbers = #tpu.dot_dimension_numbers<[1], [0], [0], [1], [0, 0, 1, 1], [], []>} : vector<1x288xbf16>, vector<288x32xbf16>, vector<1x32xf32> -> vector<1x32xf32>
    %131 = arith.addf %126, %130 : vector<1x32xf32>
    %132 = vector.extract_strided_slice %115 {offsets = [3, 0], sizes = [1, 288], strides = [1, 1]} : vector<16x288xbf16> to vector<1x288xbf16>
    %c3_106 = arith.constant 3 : index
    %c0_107 = arith.constant 0 : index
    %c0_108 = arith.constant 0 : index
    %133 = vector.load %arg7[%c3_106, %c0_107, %c0_108] : memref<16x288x32xbf16, #tpu.memory_space<vmem>>, vector<1x288x32xbf16>
    %134 = vector.shape_cast %133 : vector<1x288x32xbf16> to vector<288x32xbf16>
    %cst_109 = arith.constant dense<0.000000e+00> : vector<1x32xf32>
    %135 = tpu.matmul %132, %134, %cst_109 {dimension_numbers = #tpu.dot_dimension_numbers<[1], [0], [0], [1], [0, 0, 1, 1], [], []>} : vector<1x288xbf16>, vector<288x32xbf16>, vector<1x32xf32> -> vector<1x32xf32>
    %136 = arith.addf %131, %135 : vector<1x32xf32>
    %137 = vector.extract_strided_slice %115 {offsets = [4, 0], sizes = [1, 288], strides = [1, 1]} : vector<16x288xbf16> to vector<1x288xbf16>
    %c4_110 = arith.constant 4 : index
    %c0_111 = arith.constant 0 : index
    %c0_112 = arith.constant 0 : index
    %138 = vector.load %arg7[%c4_110, %c0_111, %c0_112] : memref<16x288x32xbf16, #tpu.memory_space<vmem>>, vector<1x288x32xbf16>
    %139 = vector.shape_cast %138 : vector<1x288x32xbf16> to vector<288x32xbf16>
    %cst_113 = arith.constant dense<0.000000e+00> : vector<1x32xf32>
    %140 = tpu.matmul %137, %139, %cst_113 {dimension_numbers = #tpu.dot_dimension_numbers<[1], [0], [0], [1], [0, 0, 1, 1], [], []>} : vector<1x288xbf16>, vector<288x32xbf16>, vector<1x32xf32> -> vector<1x32xf32>
    %141 = arith.addf %136, %140 : vector<1x32xf32>
    %142 = vector.extract_strided_slice %115 {offsets = [5, 0], sizes = [1, 288], strides = [1, 1]} : vector<16x288xbf16> to vector<1x288xbf16>
    %c5_114 = arith.constant 5 : index
    %c0_115 = arith.constant 0 : index
    %c0_116 = arith.constant 0 : index
    %143 = vector.load %arg7[%c5_114, %c0_115, %c0_116] : memref<16x288x32xbf16, #tpu.memory_space<vmem>>, vector<1x288x32xbf16>
    %144 = vector.shape_cast %143 : vector<1x288x32xbf16> to vector<288x32xbf16>
    %cst_117 = arith.constant dense<0.000000e+00> : vector<1x32xf32>
    %145 = tpu.matmul %142, %144, %cst_117 {dimension_numbers = #tpu.dot_dimension_numbers<[1], [0], [0], [1], [0, 0, 1, 1], [], []>} : vector<1x288xbf16>, vector<288x32xbf16>, vector<1x32xf32> -> vector<1x32xf32>
    %146 = arith.addf %141, %145 : vector<1x32xf32>
    %147 = vector.extract_strided_slice %115 {offsets = [6, 0], sizes = [1, 288], strides = [1, 1]} : vector<16x288xbf16> to vector<1x288xbf16>
    %c6_118 = arith.constant 6 : index
    %c0_119 = arith.constant 0 : index
    %c0_120 = arith.constant 0 : index
    %148 = vector.load %arg7[%c6_118, %c0_119, %c0_120] : memref<16x288x32xbf16, #tpu.memory_space<vmem>>, vector<1x288x32xbf16>
    %149 = vector.shape_cast %148 : vector<1x288x32xbf16> to vector<288x32xbf16>
    %cst_121 = arith.constant dense<0.000000e+00> : vector<1x32xf32>
    %150 = tpu.matmul %147, %149, %cst_121 {dimension_numbers = #tpu.dot_dimension_numbers<[1], [0], [0], [1], [0, 0, 1, 1], [], []>} : vector<1x288xbf16>, vector<288x32xbf16>, vector<1x32xf32> -> vector<1x32xf32>
    %151 = arith.addf %146, %150 : vector<1x32xf32>
    %152 = vector.extract_strided_slice %115 {offsets = [7, 0], sizes = [1, 288], strides = [1, 1]} : vector<16x288xbf16> to vector<1x288xbf16>
    %c7_122 = arith.constant 7 : index
    %c0_123 = arith.constant 0 : index
    %c0_124 = arith.constant 0 : index
    %153 = vector.load %arg7[%c7_122, %c0_123, %c0_124] : memref<16x288x32xbf16, #tpu.memory_space<vmem>>, vector<1x288x32xbf16>
    %154 = vector.shape_cast %153 : vector<1x288x32xbf16> to vector<288x32xbf16>
    %cst_125 = arith.constant dense<0.000000e+00> : vector<1x32xf32>
    %155 = tpu.matmul %152, %154, %cst_125 {dimension_numbers = #tpu.dot_dimension_numbers<[1], [0], [0], [1], [0, 0, 1, 1], [], []>} : vector<1x288xbf16>, vector<288x32xbf16>, vector<1x32xf32> -> vector<1x32xf32>
    %156 = arith.addf %151, %155 : vector<1x32xf32>
    %157 = vector.extract_strided_slice %115 {offsets = [8, 0], sizes = [1, 288], strides = [1, 1]} : vector<16x288xbf16> to vector<1x288xbf16>
    %c8_126 = arith.constant 8 : index
    %c0_127 = arith.constant 0 : index
    %c0_128 = arith.constant 0 : index
    %158 = vector.load %arg7[%c8_126, %c0_127, %c0_128] : memref<16x288x32xbf16, #tpu.memory_space<vmem>>, vector<1x288x32xbf16>
    %159 = vector.shape_cast %158 : vector<1x288x32xbf16> to vector<288x32xbf16>
    %cst_129 = arith.constant dense<0.000000e+00> : vector<1x32xf32>
    %160 = tpu.matmul %157, %159, %cst_129 {dimension_numbers = #tpu.dot_dimension_numbers<[1], [0], [0], [1], [0, 0, 1, 1], [], []>} : vector<1x288xbf16>, vector<288x32xbf16>, vector<1x32xf32> -> vector<1x32xf32>
    %161 = arith.addf %156, %160 : vector<1x32xf32>
    %162 = vector.extract_strided_slice %115 {offsets = [9, 0], sizes = [1, 288], strides = [1, 1]} : vector<16x288xbf16> to vector<1x288xbf16>
    %c9 = arith.constant 9 : index
    %c0_130 = arith.constant 0 : index
    %c0_131 = arith.constant 0 : index
    %163 = vector.load %arg7[%c9, %c0_130, %c0_131] : memref<16x288x32xbf16, #tpu.memory_space<vmem>>, vector<1x288x32xbf16>
    %164 = vector.shape_cast %163 : vector<1x288x32xbf16> to vector<288x32xbf16>
    %cst_132 = arith.constant dense<0.000000e+00> : vector<1x32xf32>
    %165 = tpu.matmul %162, %164, %cst_132 {dimension_numbers = #tpu.dot_dimension_numbers<[1], [0], [0], [1], [0, 0, 1, 1], [], []>} : vector<1x288xbf16>, vector<288x32xbf16>, vector<1x32xf32> -> vector<1x32xf32>
    %166 = arith.addf %161, %165 : vector<1x32xf32>
    %167 = vector.extract_strided_slice %115 {offsets = [10, 0], sizes = [1, 288], strides = [1, 1]} : vector<16x288xbf16> to vector<1x288xbf16>
    %c10 = arith.constant 10 : index
    %c0_133 = arith.constant 0 : index
    %c0_134 = arith.constant 0 : index
    %168 = vector.load %arg7[%c10, %c0_133, %c0_134] : memref<16x288x32xbf16, #tpu.memory_space<vmem>>, vector<1x288x32xbf16>
    %169 = vector.shape_cast %168 : vector<1x288x32xbf16> to vector<288x32xbf16>
    %cst_135 = arith.constant dense<0.000000e+00> : vector<1x32xf32>
    %170 = tpu.matmul %167, %169, %cst_135 {dimension_numbers = #tpu.dot_dimension_numbers<[1], [0], [0], [1], [0, 0, 1, 1], [], []>} : vector<1x288xbf16>, vector<288x32xbf16>, vector<1x32xf32> -> vector<1x32xf32>
    %171 = arith.addf %166, %170 : vector<1x32xf32>
    %172 = vector.extract_strided_slice %115 {offsets = [11, 0], sizes = [1, 288], strides = [1, 1]} : vector<16x288xbf16> to vector<1x288xbf16>
    %c11 = arith.constant 11 : index
    %c0_136 = arith.constant 0 : index
    %c0_137 = arith.constant 0 : index
    %173 = vector.load %arg7[%c11, %c0_136, %c0_137] : memref<16x288x32xbf16, #tpu.memory_space<vmem>>, vector<1x288x32xbf16>
    %174 = vector.shape_cast %173 : vector<1x288x32xbf16> to vector<288x32xbf16>
    %cst_138 = arith.constant dense<0.000000e+00> : vector<1x32xf32>
    %175 = tpu.matmul %172, %174, %cst_138 {dimension_numbers = #tpu.dot_dimension_numbers<[1], [0], [0], [1], [0, 0, 1, 1], [], []>} : vector<1x288xbf16>, vector<288x32xbf16>, vector<1x32xf32> -> vector<1x32xf32>
    %176 = arith.addf %171, %175 : vector<1x32xf32>
    %177 = vector.extract_strided_slice %115 {offsets = [12, 0], sizes = [1, 288], strides = [1, 1]} : vector<16x288xbf16> to vector<1x288xbf16>
    %c12 = arith.constant 12 : index
    %c0_139 = arith.constant 0 : index
    %c0_140 = arith.constant 0 : index
    %178 = vector.load %arg7[%c12, %c0_139, %c0_140] : memref<16x288x32xbf16, #tpu.memory_space<vmem>>, vector<1x288x32xbf16>
    %179 = vector.shape_cast %178 : vector<1x288x32xbf16> to vector<288x32xbf16>
    %cst_141 = arith.constant dense<0.000000e+00> : vector<1x32xf32>
    %180 = tpu.matmul %177, %179, %cst_141 {dimension_numbers = #tpu.dot_dimension_numbers<[1], [0], [0], [1], [0, 0, 1, 1], [], []>} : vector<1x288xbf16>, vector<288x32xbf16>, vector<1x32xf32> -> vector<1x32xf32>
    %181 = arith.addf %176, %180 : vector<1x32xf32>
    %182 = vector.extract_strided_slice %115 {offsets = [13, 0], sizes = [1, 288], strides = [1, 1]} : vector<16x288xbf16> to vector<1x288xbf16>
    %c13 = arith.constant 13 : index
    %c0_142 = arith.constant 0 : index
    %c0_143 = arith.constant 0 : index
    %183 = vector.load %arg7[%c13, %c0_142, %c0_143] : memref<16x288x32xbf16, #tpu.memory_space<vmem>>, vector<1x288x32xbf16>
    %184 = vector.shape_cast %183 : vector<1x288x32xbf16> to vector<288x32xbf16>
    %cst_144 = arith.constant dense<0.000000e+00> : vector<1x32xf32>
    %185 = tpu.matmul %182, %184, %cst_144 {dimension_numbers = #tpu.dot_dimension_numbers<[1], [0], [0], [1], [0, 0, 1, 1], [], []>} : vector<1x288xbf16>, vector<288x32xbf16>, vector<1x32xf32> -> vector<1x32xf32>
    %186 = arith.addf %181, %185 : vector<1x32xf32>
    %187 = vector.extract_strided_slice %115 {offsets = [14, 0], sizes = [1, 288], strides = [1, 1]} : vector<16x288xbf16> to vector<1x288xbf16>
    %c14 = arith.constant 14 : index
    %c0_145 = arith.constant 0 : index
    %c0_146 = arith.constant 0 : index
    %188 = vector.load %arg7[%c14, %c0_145, %c0_146] : memref<16x288x32xbf16, #tpu.memory_space<vmem>>, vector<1x288x32xbf16>
    %189 = vector.shape_cast %188 : vector<1x288x32xbf16> to vector<288x32xbf16>
    %cst_147 = arith.constant dense<0.000000e+00> : vector<1x32xf32>
    %190 = tpu.matmul %187, %189, %cst_147 {dimension_numbers = #tpu.dot_dimension_numbers<[1], [0], [0], [1], [0, 0, 1, 1], [], []>} : vector<1x288xbf16>, vector<288x32xbf16>, vector<1x32xf32> -> vector<1x32xf32>
    %191 = arith.addf %186, %190 : vector<1x32xf32>
    %192 = vector.extract_strided_slice %115 {offsets = [15, 0], sizes = [1, 288], strides = [1, 1]} : vector<16x288xbf16> to vector<1x288xbf16>
    %c15 = arith.constant 15 : index
    %c0_148 = arith.constant 0 : index
    %c0_149 = arith.constant 0 : index
    %193 = vector.load %arg7[%c15, %c0_148, %c0_149] : memref<16x288x32xbf16, #tpu.memory_space<vmem>>, vector<1x288x32xbf16>
    %194 = vector.shape_cast %193 : vector<1x288x32xbf16> to vector<288x32xbf16>
    %cst_150 = arith.constant dense<0.000000e+00> : vector<1x32xf32>
    %195 = tpu.matmul %192, %194, %cst_150 {dimension_numbers = #tpu.dot_dimension_numbers<[1], [0], [0], [1], [0, 0, 1, 1], [], []>} : vector<1x288xbf16>, vector<288x32xbf16>, vector<1x32xf32> -> vector<1x32xf32>
    %196 = arith.addf %191, %195 : vector<1x32xf32>
    %c0_151 = arith.constant 0 : index
    %c0_152 = arith.constant 0 : index
    %197 = vector.load %arg8[%c0_151, %c0_152] : memref<1x32xf32, #tpu.memory_space<vmem>>, vector<1x32xf32>
    %198 = arith.addf %196, %197 : vector<1x32xf32>
    %cst_153 = arith.constant 0.000000e+00 : f32
    %199 = vector.broadcast %cst_153 : f32 to vector<1x32xf32>
    %200 = arith.maximumf %198, %199 : vector<1x32xf32>
    %201 = arith.truncf %200 : vector<1x32xf32> to vector<1x32xbf16>
    %c0_154 = arith.constant 0 : index
    %c0_155 = arith.constant 0 : index
    %202 = vector.load %arg9[%c0_154, %c0_155] : memref<32x128xbf16, #tpu.memory_space<vmem>>, vector<32x128xbf16>
    %cst_156 = arith.constant dense<0.000000e+00> : vector<1x128xf32>
    %203 = tpu.matmul %201, %202, %cst_156 {dimension_numbers = #tpu.dot_dimension_numbers<[1], [0], [0], [1], [0, 0, 1, 1], [], []>} : vector<1x32xbf16>, vector<32x128xbf16>, vector<1x128xf32> -> vector<1x128xf32>
    %c0_157 = arith.constant 0 : index
    %c0_158 = arith.constant 0 : index
    %204 = vector.load %arg10[%c0_157, %c0_158] : memref<1x128xf32, #tpu.memory_space<vmem>>, vector<1x128xf32>
    %205 = arith.addf %203, %204 : vector<1x128xf32>
    %c0_159 = arith.constant 0 : index
    %c0_160 = arith.constant 0 : index
    %c0_161 = arith.constant 0 : index
    %206 = vector.load %arg11[%c0_159, %c0_160, %c0_161] : memref<1x1x128xf32, #tpu.memory_space<vmem>>, vector<1x1x128xf32>
    %207 = vector.shape_cast %206 : vector<1x1x128xf32> to vector<1x128xf32>
    %208 = vector.shape_cast %205 : vector<1x128xf32> to vector<1x1x128xf32>
    tpu.vector_store %arg11[%c0_159, %c0_160, %c0_161], %208 {strides = array<i32>} : memref<1x1x128xf32, #tpu.memory_space<vmem>>, vector<1x1x128xf32>,
    return
  }
  func.func @transform_0(%arg0: i32) -> (i32, i32, i32) {
    %c0_i32 = arith.constant 0 : i32
    %c0_i32_0 = arith.constant 0 : i32
    %c0_i32_1 = arith.constant 0 : i32
    return %arg0, %c0_i32, %c0_i32_0 : i32, i32, i32
  }
  func.func @transform_1(%arg0: i32) -> (i32, i32) {
    %c0_i32 = arith.constant 0 : i32
    %c0_i32_0 = arith.constant 0 : i32
    %c0_i32_1 = arith.constant 0 : i32
    return %c0_i32, %c0_i32_0 : i32, i32
  }
  func.func @transform_2(%arg0: i32) -> (i32, i32, i32) {
    %c0_i32 = arith.constant 0 : i32
    %c0_i32_0 = arith.constant 0 : i32
    %c0_i32_1 = arith.constant 0 : i32
    %c0_i32_2 = arith.constant 0 : i32
    return %c0_i32, %c0_i32_0, %c0_i32_1 : i32, i32, i32
  }
  func.func @transform_3(%arg0: i32) -> (i32, i32) {
    %c0_i32 = arith.constant 0 : i32
    %c0_i32_0 = arith.constant 0 : i32
    %c0_i32_1 = arith.constant 0 : i32
    return %c0_i32, %c0_i32_0 : i32, i32
  }
  func.func @transform_4(%arg0: i32) -> (i32, i32, i32) {
    %c0_i32 = arith.constant 0 : i32
    %c0_i32_0 = arith.constant 0 : i32
    %c0_i32_1 = arith.constant 0 : i32
    %c0_i32_2 = arith.constant 0 : i32
    return %c0_i32, %c0_i32_0, %c0_i32_1 : i32, i32, i32
  }
  func.func @transform_5(%arg0: i32) -> (i32, i32) {
    %c0_i32 = arith.constant 0 : i32
    %c0_i32_0 = arith.constant 0 : i32
    %c0_i32_1 = arith.constant 0 : i32
    return %c0_i32, %c0_i32_0 : i32, i32
  }
  func.func @transform_6(%arg0: i32) -> (i32, i32, i32) {
    %c0_i32 = arith.constant 0 : i32
    %c0_i32_0 = arith.constant 0 : i32
    %c0_i32_1 = arith.constant 0 : i32
    %c0_i32_2 = arith.constant 0 : i32
    return %c0_i32, %c0_i32_0, %c0_i32_1 : i32, i32, i32
  }
  func.func @transform_7(%arg0: i32) -> (i32, i32) {
    %c0_i32 = arith.constant 0 : i32
    %c0_i32_0 = arith.constant 0 : i32
    %c0_i32_1 = arith.constant 0 : i32
    return %c0_i32, %c0_i32_0 : i32, i32
  }
  func.func @transform_8(%arg0: i32) -> (i32, i32) {
    %c0_i32 = arith.constant 0 : i32
    %c0_i32_0 = arith.constant 0 : i32
    %c0_i32_1 = arith.constant 0 : i32
    return %c0_i32, %c0_i32_0 : i32, i32
  }
  func.func @transform_9(%arg0: i32) -> (i32, i32) {
    %c0_i32 = arith.constant 0 : i32
    %c0_i32_0 = arith.constant 0 : i32
    %c0_i32_1 = arith.constant 0 : i32
    return %c0_i32, %c0_i32_0 : i32, i32
  }
  func.func @transform_10(%arg0: i32) -> (i32, i32, i32) {
    %c0_i32 = arith.constant 0 : i32
    %c0_i32_0 = arith.constant 0 : i32
    %c0_i32_1 = arith.constant 0 : i32
    return %arg0, %c0_i32, %c0_i32_0 : i32, i32, i32
  }
}

</mosaic_0001>

<llo_original>
// kernel: mario_model.1
$region0: #{mario_model.1}
  #allocation0 [shape = 'u32[]', space=smem, size = 0x4, offset = 0x4, fixed_abs, tag = 'smem constant byte address 0x4 - core index']
  #allocation1 [shape = 'u32[144,128]{1,0:T(1,128)}', space=vmem, size = 0x12000, scoped, tag = 'internal scratch']
  %s0 = inlined_call_operand.vmem [shape: bf16[2,4,512], index: 0, kind: input, shape index: {}]
  %s1 = inlined_call_operand.vmem [shape: f32[1,384], index: 1, kind: input, shape index: {}]
  %s2 = inlined_call_operand.vmem [shape: bf16[9,8,4], index: 2, kind: input, shape index: {}]
  %s3 = inlined_call_operand.vmem [shape: f32[8,1], index: 3, kind: input, shape index: {}]
  %s4 = inlined_call_operand.vmem [shape: bf16[9,16,8], index: 4, kind: input, shape index: {}]
  %s5 = inlined_call_operand.vmem [shape: f32[16,1], index: 5, kind: input, shape index: {}]
  %s6 = inlined_call_operand.vmem [shape: bf16[16,288,32], index: 6, kind: input, shape index: {}]
  %s7 = inlined_call_operand.vmem [shape: f32[1,32], index: 7, kind: input, shape index: {}]
  %s8 = inlined_call_operand.vmem [shape: bf16[32,128], index: 8, kind: input, shape index: {}]
  %s9 = inlined_call_operand.vmem [shape: f32[1,128], index: 9, kind: input, shape index: {}]
  %s10 = inlined_call_operand.hbm [shape: f32[2,1,128], index: 10, kind: output, shape index: {}]
  %s11 = sld [smem:[#allocation0]]
  $region73: #{mario_model.1} parent=0
    _
  %s13 = ssub.s32 1, %s11
  %s14 = scalar_select 0, %s13, %s11
  $region1: #{mario_model.1} parent=0
    #allocation2 [shape = 'u8[1024]{0}', space=vmem, size = 0x400, scoped, tag = 'output window, operand 0']
    #allocation3 [shape = 's32[2]{0}', space=sflag, size = 0x8, scoped, tag = 'scoped memory for mario_model.1']
    %15 = vsyncpa [#allocation3], 0
    %s16 = scalar_lea.sflag [#allocation3], 1
    %17 = vsyncpa %s16, 0
    loop: start=0, step=1, limit=4
    $region2: #{mario_model.1} parent=1 // loop_pre_header
      _
    $region3: #{mario_model.1} parent=1 // loop_header
      %s19 = sphi 0, %s23
      %p20 = scmp.ge.s32.totalorder %s19, 4
      %s29 = sphi 0, %s31
      %s32 = sphi 0, %s29
      %s33 = sphi 0, %s32
      %s49 = sphi 0, %s33
      %s53 = sphi 0, %s53
      %s55 = sphi 0, %s53
      %s56 = sphi 0, %s55
      %s70 = sphi 0, %s56
      %s74 = sphi 0, %s74
      %s76 = sphi 0, %s74
      %s77 = sphi 0, %s76
      %s91 = sphi 0, %s77
      %s95 = sphi 0, %s95
      %s97 = sphi 0, %s95
      %s98 = sphi 0, %s97
      %s112 = sphi 0, %s98
      %s116 = sphi 0, %s116
      %s118 = sphi 0, %s116
      %s119 = sphi 0, %s118
      %s133 = sphi 0, %s119
      %s137 = sphi 0, %s137
      %s139 = sphi 0, %s137
      %s140 = sphi 0, %s139
      %s154 = sphi 0, %s140
      %s158 = sphi 0, %s158
      %s160 = sphi 0, %s158
      %s161 = sphi 0, %s160
      %s175 = sphi 0, %s161
      %s179 = sphi 0, %s179
      %s181 = sphi 0, %s179
      %s182 = sphi 0, %s181
      %s196 = sphi 0, %s182
      %s200 = sphi 0, %s200
      %s202 = sphi 0, %s200
      %s203 = sphi 0, %s202
      %s217 = sphi 0, %s203
      %s221 = sphi 0, %s221
      %s223 = sphi 0, %s221
      %s224 = sphi 0, %s223
      %s238 = sphi 0, %s224
      %s244 = sphi 0, %s246
      %s247 = sphi 0, %s244
      %s248 = sphi 0, %s247
      %s264 = sphi 0, %s248
    $region4: #{mario_model.1} parent=1 // loop_header_branch
      %22 = sbr.rel (%p20) target = $region8
    $region5: #{mario_model.1} parent=1 // loop_body
      %s24 = ssub.s32 %s19, 1
      %s25 = ssub.s32 %s19, 2
      %s26 = sadd.s32 %s19, 1
      %s27 = ssub.s32 %s19, %s26
      %p28 = scmp.eq.s32.totalorder %s27, 0
      %s30 = sadd.s32 %s29, 1
      %s31 = scalar_select %p28, %s29, %s30
      %p34 = pneg %p28
      %p35 = scmp.eq.s32.totalorder %s19, 1
      %p36 = por %p34, %p35
      %p37 = scmp.ne.s32.totalorder %s29, %s32
      %p38 = scmp.eq.s32.totalorder %s19, 0
      %p39 = por %p37, %p38
      %p40 = scmp.ne.s32.totalorder %s29, %s32
      %p41 = scmp.eq.s32.totalorder %s24, 1
      %p42 = por %p40, %p41
      %p43 = scmp.ne.s32.totalorder %s32, %s33
      %p44 = scmp.eq.s32.totalorder %s24, 0
      %p45 = por %p43, %p44
      %p46 = scmp.ne.s32.totalorder %s32, %s33
      %p47 = scmp.eq.s32.totalorder %s25, 1
      %p48 = por %p46, %p47
      %p50 = scmp.ne.s32.totalorder %s33, %s49
      %p51 = scmp.eq.s32.totalorder %s25, 0
      %p52 = por %p50, %p51
      %s54 = sadd.s32 %s53, 1
      %p57 = scmp.eq.s32.totalorder %s19, 1
      %p58 = scmp.ne.s32.totalorder %s53, %s55
      %p59 = scmp.eq.s32.totalorder %s19, 0
      %p60 = por %p58, %p59
      %p61 = scmp.ne.s32.totalorder %s53, %s55
      %p62 = scmp.eq.s32.totalorder %s24, 1
      %p63 = por %p61, %p62
      %p64 = scmp.ne.s32.totalorder %s55, %s56
      %p65 = scmp.eq.s32.totalorder %s24, 0
      %p66 = por %p64, %p65
      %p67 = scmp.ne.s32.totalorder %s55, %s56
      %p68 = scmp.eq.s32.totalorder %s25, 1
      %p69 = por %p67, %p68
      %p71 = scmp.ne.s32.totalorder %s56, %s70
      %p72 = scmp.eq.s32.totalorder %s25, 0
      %p73 = por %p71, %p72
      %s75 = sadd.s32 %s74, 1
      %p78 = scmp.eq.s32.totalorder %s19, 1
      %p79 = scmp.ne.s32.totalorder %s74, %s76
      %p80 = scmp.eq.s32.totalorder %s19, 0
      %p81 = por %p79, %p80
      %p82 = scmp.ne.s32.totalorder %s74, %s76
      %p83 = scmp.eq.s32.totalorder %s24, 1
      %p84 = por %p82, %p83
      %p85 = scmp.ne.s32.totalorder %s76, %s77
      %p86 = scmp.eq.s32.totalorder %s24, 0
      %p87 = por %p85, %p86
      %p88 = scmp.ne.s32.totalorder %s76, %s77
      %p89 = scmp.eq.s32.totalorder %s25, 1
      %p90 = por %p88, %p89
      %p92 = scmp.ne.s32.totalorder %s77, %s91
      %p93 = scmp.eq.s32.totalorder %s25, 0
      %p94 = por %p92, %p93
      %s96 = sadd.s32 %s95, 1
      %p99 = scmp.eq.s32.totalorder %s19, 1
      %p100 = scmp.ne.s32.totalorder %s95, %s97
      %p101 = scmp.eq.s32.totalorder %s19, 0
      %p102 = por %p100, %p101
      %p103 = scmp.ne.s32.totalorder %s95, %s97
      %p104 = scmp.eq.s32.totalorder %s24, 1
      %p105 = por %p103, %p104
      %p106 = scmp.ne.s32.totalorder %s97, %s98
      %p107 = scmp.eq.s32.totalorder %s24, 0
      %p108 = por %p106, %p107
      %p109 = scmp.ne.s32.totalorder %s97, %s98
      %p110 = scmp.eq.s32.totalorder %s25, 1
      %p111 = por %p109, %p110
      %p113 = scmp.ne.s32.totalorder %s98, %s112
      %p114 = scmp.eq.s32.totalorder %s25, 0
      %p115 = por %p113, %p114
      %s117 = sadd.s32 %s116, 1
      %p120 = scmp.eq.s32.totalorder %s19, 1
      %p121 = scmp.ne.s32.totalorder %s116, %s118
      %p122 = scmp.eq.s32.totalorder %s19, 0
      %p123 = por %p121, %p122
      %p124 = scmp.ne.s32.totalorder %s116, %s118
      %p125 = scmp.eq.s32.totalorder %s24, 1
      %p126 = por %p124, %p125
      %p127 = scmp.ne.s32.totalorder %s118, %s119
      %p128 = scmp.eq.s32.totalorder %s24, 0
      %p129 = por %p127, %p128
      %p130 = scmp.ne.s32.totalorder %s118, %s119
      %p131 = scmp.eq.s32.totalorder %s25, 1
      %p132 = por %p130, %p131
      %p134 = scmp.ne.s32.totalorder %s119, %s133
      %p135 = scmp.eq.s32.totalorder %s25, 0
      %p136 = por %p134, %p135
      %s138 = sadd.s32 %s137, 1
      %p141 = scmp.eq.s32.totalorder %s19, 1
      %p142 = scmp.ne.s32.totalorder %s137, %s139
      %p143 = scmp.eq.s32.totalorder %s19, 0
      %p144 = por %p142, %p143
      %p145 = scmp.ne.s32.totalorder %s137, %s139
      %p146 = scmp.eq.s32.totalorder %s24, 1
      %p147 = por %p145, %p146
      %p148 = scmp.ne.s32.totalorder %s139, %s140
      %p149 = scmp.eq.s32.totalorder %s24, 0
      %p150 = por %p148, %p149
      %p151 = scmp.ne.s32.totalorder %s139, %s140
      %p152 = scmp.eq.s32.totalorder %s25, 1
      %p153 = por %p151, %p152
      %p155 = scmp.ne.s32.totalorder %s140, %s154
      %p156 = scmp.eq.s32.totalorder %s25, 0
      %p157 = por %p155, %p156
      %s159 = sadd.s32 %s158, 1
      %p162 = scmp.eq.s32.totalorder %s19, 1
      %p163 = scmp.ne.s32.totalorder %s158, %s160
      %p164 = scmp.eq.s32.totalorder %s19, 0
      %p165 = por %p163, %p164
      %p166 = scmp.ne.s32.totalorder %s158, %s160
      %p167 = scmp.eq.s32.totalorder %s24, 1
      %p168 = por %p166, %p167
      %p169 = scmp.ne.s32.totalorder %s160, %s161
      %p170 = scmp.eq.s32.totalorder %s24, 0
      %p171 = por %p169, %p170
      %p172 = scmp.ne.s32.totalorder %s160, %s161
      %p173 = scmp.eq.s32.totalorder %s25, 1
      %p174 = por %p172, %p173
      %p176 = scmp.ne.s32.totalorder %s161, %s175
      %p177 = scmp.eq.s32.totalorder %s25, 0
      %p178 = por %p176, %p177
      %s180 = sadd.s32 %s179, 1
      %p183 = scmp.eq.s32.totalorder %s19, 1
      %p184 = scmp.ne.s32.totalorder %s179, %s181
      %p185 = scmp.eq.s32.totalorder %s19, 0
      %p186 = por %p184, %p185
      %p187 = scmp.ne.s32.totalorder %s179, %s181
      %p188 = scmp.eq.s32.totalorder %s24, 1
      %p189 = por %p187, %p188
      %p190 = scmp.ne.s32.totalorder %s181, %s182
      %p191 = scmp.eq.s32.totalorder %s24, 0
      %p192 = por %p190, %p191
      %p193 = scmp.ne.s32.totalorder %s181, %s182
      %p194 = scmp.eq.s32.totalorder %s25, 1
      %p195 = por %p193, %p194
      %p197 = scmp.ne.s32.totalorder %s182, %s196
      %p198 = scmp.eq.s32.totalorder %s25, 0
      %p199 = por %p197, %p198
      %s201 = sadd.s32 %s200, 1
      %p204 = scmp.eq.s32.totalorder %s19, 1
      %p205 = scmp.ne.s32.totalorder %s200, %s202
      %p206 = scmp.eq.s32.totalorder %s19, 0
      %p207 = por %p205, %p206
      %p208 = scmp.ne.s32.totalorder %s200, %s202
      %p209 = scmp.eq.s32.totalorder %s24, 1
      %p210 = por %p208, %p209
      %p211 = scmp.ne.s32.totalorder %s202, %s203
      %p212 = scmp.eq.s32.totalorder %s24, 0
      %p213 = por %p211, %p212
      %p214 = scmp.ne.s32.totalorder %s202, %s203
      %p215 = scmp.eq.s32.totalorder %s25, 1
      %p216 = por %p214, %p215
      %p218 = scmp.ne.s32.totalorder %s203, %s217
      %p219 = scmp.eq.s32.totalorder %s25, 0
      %p220 = por %p218, %p219
      %s222 = sadd.s32 %s221, 1
      %p225 = scmp.eq.s32.totalorder %s19, 1
      %p226 = scmp.ne.s32.totalorder %s221, %s223
      %p227 = scmp.eq.s32.totalorder %s19, 0
      %p228 = por %p226, %p227
      %p229 = scmp.ne.s32.totalorder %s221, %s223
      %p230 = scmp.eq.s32.totalorder %s24, 1
      %p231 = por %p229, %p230
      %p232 = scmp.ne.s32.totalorder %s223, %s224
      %p233 = scmp.eq.s32.totalorder %s24, 0
      %p234 = por %p232, %p233
      %p235 = scmp.ne.s32.totalorder %s223, %s224
      %p236 = scmp.eq.s32.totalorder %s25, 1
      %p237 = por %p235, %p236
      %p239 = scmp.ne.s32.totalorder %s224, %s238
      %p240 = scmp.eq.s32.totalorder %s25, 0
      %p241 = por %p239, %p240
      %s242 = ssub.s32 %s19, %s26
      %p243 = scmp.eq.s32.totalorder %s242, 0
      %s245 = sadd.s32 %s244, 1
      %s246 = scalar_select %p243, %s244, %s245
      %p249 = pneg %p243
      %p250 = scmp.eq.s32.totalorder %s19, 1
      %p251 = por %p249, %p250
      %p252 = scmp.ne.s32.totalorder %s244, %s247
      %p253 = scmp.eq.s32.totalorder %s19, 0
      %p254 = por %p252, %p253
      %p255 = scmp.ne.s32.totalorder %s244, %s247
      %p256 = scmp.eq.s32.totalorder %s24, 1
      %p257 = por %p255, %p256
      %p258 = scmp.ne.s32.totalorder %s247, %s248
      %p259 = scmp.eq.s32.totalorder %s24, 0
      %p260 = por %p258, %p259
      %p261 = scmp.ne.s32.totalorder %s247, %s248
      %p262 = scmp.eq.s32.totalorder %s25, 1
      %p263 = por %p261, %p262
      %p265 = scmp.ne.s32.totalorder %s248, %s264
      %p266 = scmp.eq.s32.totalorder %s25, 0
      %p267 = por %p265, %p266
      %p268 = scmp.le.s32.totalorder 1, %s19
      %p269 = scmp.lt.s32.totalorder %s19, 3
      %p270 = pnand %p268, %p269
      %p271 = pneg %p270
      // Predicated region
      $region9: #{mario_model.1} parent=5 // pred_check
        _
      $region10: #{mario_model.1} parent=5 // pred_check_branch
        %273 = sbr.rel (%p270) target = $region12
      $region11: #{mario_model.1} parent=5 // pred_region
        %s274 = ssub.s32 %s19, 1
        // Predicated region
        $region13: #{mario_model.1} parent=11 // pred_check
          %p275 = pneg %p66
        $region14: #{mario_model.1} parent=11 // pred_check_branch
          %277 = sbr.rel (%p275) target = $region16
        $region15: #{mario_model.1} parent=11 // pred_region
          _
        $region16: #{mario_model.1} parent=11 // pred_fallthru
          _
        // Predicated region
        $region17: #{mario_model.1} parent=11 // pred_check
          %p278 = pneg %p87
        $region18: #{mario_model.1} parent=11 // pred_check_branch
          %280 = sbr.rel (%p278) target = $region20
        $region19: #{mario_model.1} parent=11 // pred_region
          _
        $region20: #{mario_model.1} parent=11 // pred_fallthru
          _
        // Predicated region
        $region21: #{mario_model.1} parent=11 // pred_check
          %p281 = pneg %p108
        $region22: #{mario_model.1} parent=11 // pred_check_branch
          %283 = sbr.rel (%p281) target = $region24
        $region23: #{mario_model.1} parent=11 // pred_region
          _
        $region24: #{mario_model.1} parent=11 // pred_fallthru
          _
        // Predicated region
        $region25: #{mario_model.1} parent=11 // pred_check
          %p284 = pneg %p129
        $region26: #{mario_model.1} parent=11 // pred_check_branch
          %286 = sbr.rel (%p284) target = $region28
        $region27: #{mario_model.1} parent=11 // pred_region
          _
        $region28: #{mario_model.1} parent=11 // pred_fallthru
          _
        // Predicated region
        $region29: #{mario_model.1} parent=11 // pred_check
          %p287 = pneg %p150
        $region30: #{mario_model.1} parent=11 // pred_check_branch
          %289 = sbr.rel (%p287) target = $region32
        $region31: #{mario_model.1} parent=11 // pred_region
          _
        $region32: #{mario_model.1} parent=11 // pred_fallthru
          _
        // Predicated region
        $region33: #{mario_model.1} parent=11 // pred_check
          %p290 = pneg %p171
        $region34: #{mario_model.1} parent=11 // pred_check_branch
          %292 = sbr.rel (%p290) target = $region36
        $region35: #{mario_model.1} parent=11 // pred_region
          _
        $region36: #{mario_model.1} parent=11 // pred_fallthru
          _
        // Predicated region
        $region37: #{mario_model.1} parent=11 // pred_check
          %p293 = pneg %p192
        $region38: #{mario_model.1} parent=11 // pred_check_branch
          %295 = sbr.rel (%p293) target = $region40
        $region39: #{mario_model.1} parent=11 // pred_region
          _
        $region40: #{mario_model.1} parent=11 // pred_fallthru
          _
        // Predicated region
        $region41: #{mario_model.1} parent=11 // pred_check
          %p296 = pneg %p213
        $region42: #{mario_model.1} parent=11 // pred_check_branch
          %298 = sbr.rel (%p296) target = $region44
        $region43: #{mario_model.1} parent=11 // pred_region
          _
        $region44: #{mario_model.1} parent=11 // pred_fallthru
          _
        // Predicated region
        $region45: #{mario_model.1} parent=11 // pred_check
          %p299 = pneg %p234
        $region46: #{mario_model.1} parent=11 // pred_check_branch
          %301 = sbr.rel (%p299) target = $region48
        $region47: #{mario_model.1} parent=11 // pred_region
          _
        $region48: #{mario_model.1} parent=11 // pred_fallthru
          _
      $region12: #{mario_model.1} parent=5 // pred_fallthru
        _
      %p302 = scmp.lt.s32.totalorder %s19, 2
      // Predicated region
      $region49: #{mario_model.1} parent=5 // pred_check
        %p303 = pneg %p302
      $region50: #{mario_model.1} parent=5 // pred_check_branch
        %305 = sbr.rel (%p303) target = $region52
      $region51: #{mario_model.1} parent=5 // pred_region
        // Predicated region
        $region53: #{mario_model.1} parent=51 // pred_check
          %p306 = pneg %p39
        $region54: #{mario_model.1} parent=51 // pred_check_branch
          %308 = sbr.rel (%p306) target = $region56
        $region55: #{mario_model.1} parent=51 // pred_region
          %p309 = scmp.lt.s32.totalorder %s19, 1
          %s310 = scalar_select %p309, %s19, 1
          %s311 = smul.addr %s310, 4
          %s312 = smul.addr %s311, 2
          %s313 = scalar_lea.vmem %s0, %s312
        $region56: #{mario_model.1} parent=51 // pred_fallthru
          _
      $region52: #{mario_model.1} parent=5 // pred_fallthru
        _
      %p314 = scmp.le.s32.totalorder 1, %s19
      %p315 = scmp.lt.s32.totalorder %s19, 3
      %p316 = pnand %p314, %p315
      %p317 = pneg %p316
      // Predicated region
      $region57: #{mario_model.1} parent=5 // pred_check
        _
      $region58: #{mario_model.1} parent=5 // pred_check_branch
        %319 = sbr.rel (%p316) target = $region60
      $region59: #{mario_model.1} parent=5 // pred_region
        %s320 = ssub.s32 %s19, 1
        %p321 = scmp.lt.s32.totalorder %s24, 1
        %s322 = scalar_select %p321, %s24, 1
        %s323 = smul.addr %s322, 4
        %s324 = smul.addr %s323, 2
        %s325 = scalar_lea.vmem %s0, %s324
        %p326 = pneg %p45
        %p327 = pneg %p42
        %p328 = pneg %p66
        %p329 = pneg %p63
        %p330 = pneg %p87
        %p331 = pneg %p84
        %p332 = pneg %p108
        %p333 = pneg %p105
        %p334 = pneg %p129
        %p335 = pneg %p126
        %p336 = pneg %p150
        %p337 = pneg %p147
        %p338 = pneg %p171
        %p339 = pneg %p168
        %p340 = pneg %p192
        %p341 = pneg %p189
        %p342 = pneg %p213
        %p343 = pneg %p210
        %p344 = pneg %p234
        %p345 = pneg %p231
        %p346 = pneg %p260
        %p347 = pneg %p257
        %s348 = sand.u32 %s247, 1
        %s349 = scalar_lea.sflag [#allocation3], %s348
        %s350 = sand.u32 %s247, 1
        %s351 = scalar_lea.vmem [#allocation2], %s350
        %p352 = scmp.lt.s32.totalorder %s24, 1
        %s353 = scalar_select %p352, %s24, 1
        %s354 = smul.addr %s353, 4
        %s355 = smul.addr %s354, 2
        %s356 = scalar_lea.vmem %s0, %s355
        %v358 = vld [vmem:[%s356] sm:$0x3f]
        %v359 = vld [vmem:[%s2] sm:$0xf]
        %v360 = vld [vmem:[%s356] sm:$0xff]
        %s361 = scalar_lea.vmem %s2, 4
        %v362 = vld [vmem:[%s361] sm:$0xf]
        %v364 = vcombine.high %v360, %v360
        %v366 = vunpack.c.l.s4 1983009808
        %v367 = vunpack.c.0.s8 %v366
        %v368 = vlaneseq
        %v369 = vshrl.u32 %v368, 7
        %v370 = vsub.s32 %v367, %v369
        %v371 = vrot.slane %v360, %v370
        %v373 = vunpack.c.l.s4 1983009808
        %v374 = vunpack.c.0.s8 %v373
        %v375 = vlaneseq
        %v376 = vshrl.u32 %v375, 7
        %v377 = vsub.s32 %v374, %v376
        %v378 = vrot.slane %v364, %v377
        %v379 = vcombine.high %v371, %v371
        %v380 = vcombine.high %v378, %v378
        %381 = vrot.lane.b32.xlu0 %v371, 127
        %v382 = vpop.permute.xlu0 %381
        %383 = vrot.lane.b32.xlu0 %v379, 127
        %v384 = vpop.permute.xlu0 %383
        %385 = vrot.lane.b32.xlu0 %v378, 127
        %v386 = vpop.permute.xlu0 %385
        %387 = vrot.lane.b32.xlu0 %v380, 127
        %v388 = vpop.permute.xlu0 %387
        %vm389 = vcmask 1039360
        %v390 = vsel %vm389, %v382, %v384
        %v391 = vsel %vm389, %v384, %v386
        %v392 = vsel %vm389, %v386, %v388
        %vm393 = vcmask 31744
        %v395 = vsel %vm393, %v362, 0
        %vm397 = vcmask 1041408
        %v399 = vsel %vm397, %v390, 0
        %v402 = vsel %vm397, %v391, 0
        %v405 = vsel %vm397, %v392, 0
        %407 = vmatprep.subr.bf16.mxu0 %v402
        %408 = vmatpush1.bf16.msra.mxu0 %v399
        %409 = vmatprep.subr.bf16.mxu0 0
        %410 = vmatpush1.bf16.msra.mxu0 0
        %411 = vmatprep.subr.bf16.mxu0 0
        %412 = vmatpush1.bf16.msra.mxu0 0
        %413 = vmatprep.subr.bf16.mxu0 0
        %414 = vmatpush1.bf16.msra.mxu0 0
        %415 = vmatprep.subr.bf16.mxu0 0
        %416 = vmatpush1.bf16.msra.mxu0 0
        %417 = vmatprep.subr.bf16.mxu0 0
        %418 = vmatpush1.bf16.msra.mxu0 0
        %419 = vmatprep.subr.bf16.mxu0 0
        %420 = vmatpush1.bf16.msra.mxu0 0
        %421 = vmatprep.subr.bf16.mxu0 0
        %422 = vmatpush1.bf16.msra.mxu0 0
        %423 = vmatprep.subr.bf16.mxu0 0
        %424 = vmatpush1.bf16.msra.mxu0 0
        %425 = vmatprep.subr.bf16.mxu0 0
        %426 = vmatpush1.bf16.msra.mxu0 0
        %427 = vmatprep.subr.bf16.mxu0 0
        %428 = vmatpush1.bf16.msra.mxu0 0
        %429 = vmatprep.subr.bf16.mxu0 0
        %430 = vmatpush1.bf16.msra.mxu0 0
        %431 = vmatprep.subr.bf16.mxu0 0
        %432 = vmatpush1.bf16.msra.mxu0 0
        %433 = vmatprep.subr.bf16.mxu0 0
        %434 = vmatpush1.bf16.msra.mxu0 0
        %435 = vmatprep.subr.bf16.mxu0 0
        %436 = vmatpush1.bf16.msra.mxu0 0
        %437 = vmatprep.subr.bf16.mxu0 0
        %438 = vmatpush1.bf16.msra.mxu0 0
        %439 = vmatprep.mubr.bf16.mxu0 0
        %440 = vmatmul.mubr.bf16.gmra.mrb[0].mxu0 %v395
        %v441 = vpop.f32.mrb[0].mxu0
        %v442 = vadd.f32 0.0, %v441
        %v443 = vpop.f32.mrb[0].mxu0
        %v444 = vadd.f32 0.0, %v443
        %v445 = vpop.f32.mrb[0].mxu0
        %v446 = vpop.f32.mrb[0].mxu0
        %447 = vdwg.mxu0
        %448 = vmatprep.subr.bf16.mxu0 0
        %449 = vmatpush1.bf16.msra.mxu0 %v405
        %450 = vmatprep.subr.bf16.mxu0 0
        %451 = vmatpush1.bf16.msra.mxu0 0
        %452 = vmatprep.subr.bf16.mxu0 0
        %453 = vmatpush1.bf16.msra.mxu0 0
        %454 = vmatprep.subr.bf16.mxu0 0
        %455 = vmatpush1.bf16.msra.mxu0 0
        %456 = vmatprep.subr.bf16.mxu0 0
        %457 = vmatpush1.bf16.msra.mxu0 0
        %458 = vmatprep.subr.bf16.mxu0 0
        %459 = vmatpush1.bf16.msra.mxu0 0
        %460 = vmatprep.subr.bf16.mxu0 0
        %461 = vmatpush1.bf16.msra.mxu0 0
        %462 = vmatprep.subr.bf16.mxu0 0
        %463 = vmatpush1.bf16.msra.mxu0 0
        %464 = vmatprep.subr.bf16.mxu0 0
        %465 = vmatpush1.bf16.msra.mxu0 0
        %466 = vmatprep.subr.bf16.mxu0 0
        %467 = vmatpush1.bf16.msra.mxu0 0
        %468 = vmatprep.subr.bf16.mxu0 0
        %469 = vmatpush1.bf16.msra.mxu0 0
        %470 = vmatprep.subr.bf16.mxu0 0
        %471 = vmatpush1.bf16.msra.mxu0 0
        %472 = vmatprep.subr.bf16.mxu0 0
        %473 = vmatpush1.bf16.msra.mxu0 0
        %474 = vmatprep.subr.bf16.mxu0 0
        %475 = vmatpush1.bf16.msra.mxu0 0
        %476 = vmatprep.subr.bf16.mxu0 0
        %477 = vmatpush1.bf16.msra.mxu0 0
        %478 = vmatprep.subr.bf16.mxu0 0
        %479 = vmatpush1.bf16.msra.mxu0 0
        %480 = vmatprep.mubr.bf16.mxu0 0
        %481 = vmatmul.mubr.bf16.gmra.mrb[0].mxu0 %v395
        %v482 = vpop.f32.mrb[0].mxu0
        %v483 = vadd.f32 0.0, %v482
        %v484 = vpop.f32.mrb[0].mxu0
        %v485 = vpop.f32.mrb[0].mxu0
        %v486 = vpop.f32.mrb[0].mxu0
        %487 = vdwg.mxu0
        %v489 = vcombine.high %v358, %v358
        %v491 = vunpack.c.l.s4 1983009808
        %v492 = vunpack.c.0.s8 %v491
        %v493 = vlaneseq
        %v494 = vshrl.u32 %v493, 7
        %v495 = vsub.s32 %v492, %v494
        %v496 = vrot.slane %v358, %v495
        %v498 = vunpack.c.l.s4 1983009808
        %v499 = vunpack.c.0.s8 %v498
        %v500 = vlaneseq
        %v501 = vshrl.u32 %v500, 7
        %v502 = vsub.s32 %v499, %v501
        %v503 = vrot.slane %v489, %v502
        %v504 = vcombine.high %v496, %v496
        %v506 = vsel %vm393, %v359, 0
        %v509 = vsel %vm397, %v496, 0
        %v512 = vsel %vm397, %v504, 0
        %v515 = vsel %vm397, %v503, 0
        %517 = vmatprep.subr.bf16.mxu0 %v512
        %518 = vmatpush1.bf16.msra.mxu0 %v509
        %519 = vmatprep.subr.bf16.mxu0 0
        %520 = vmatpush1.bf16.msra.mxu0 0
        %521 = vmatprep.subr.bf16.mxu0 0
        %522 = vmatpush1.bf16.msra.mxu0 0
        %523 = vmatprep.subr.bf16.mxu0 0
        %524 = vmatpush1.bf16.msra.mxu0 0
        %525 = vmatprep.subr.bf16.mxu0 0
        %526 = vmatpush1.bf16.msra.mxu0 0
        %527 = vmatprep.subr.bf16.mxu0 0
        %528 = vmatpush1.bf16.msra.mxu0 0
        %529 = vmatprep.subr.bf16.mxu0 0
        %530 = vmatpush1.bf16.msra.mxu0 0
        %531 = vmatprep.subr.bf16.mxu0 0
        %532 = vmatpush1.bf16.msra.mxu0 0
        %533 = vmatprep.subr.bf16.mxu0 0
        %534 = vmatpush1.bf16.msra.mxu0 0
        %535 = vmatprep.subr.bf16.mxu0 0
        %536 = vmatpush1.bf16.msra.mxu0 0
        %537 = vmatprep.subr.bf16.mxu0 0
        %538 = vmatpush1.bf16.msra.mxu0 0
        %539 = vmatprep.subr.bf16.mxu0 0
        %540 = vmatpush1.bf16.msra.mxu0 0
        %541 = vmatprep.subr.bf16.mxu0 0
        %542 = vmatpush1.bf16.msra.mxu0 0
        %543 = vmatprep.subr.bf16.mxu0 0
        %544 = vmatpush1.bf16.msra.mxu0 0
        %545 = vmatprep.subr.bf16.mxu0 0
        %546 = vmatpush1.bf16.msra.mxu0 0
        %547 = vmatprep.subr.bf16.mxu0 0
        %548 = vmatpush1.bf16.msra.mxu0 0
        %549 = vmatprep.mubr.bf16.mxu0 0
        %550 = vmatmul.mubr.bf16.gmra.mrb[0].mxu0 %v506
        %v551 = vpop.f32.mrb[0].mxu0
        %v552 = vadd.f32 %v442, %v551
        %v553 = vpop.f32.mrb[0].mxu0
        %v554 = vadd.f32 %v444, %v553
        %v555 = vpop.f32.mrb[0].mxu0
        %v556 = vpop.f32.mrb[0].mxu0
        %557 = vdwg.mxu0
        %558 = vmatprep.subr.bf16.mxu0 0
        %559 = vmatpush1.bf16.msra.mxu0 %v515
        %560 = vmatprep.subr.bf16.mxu0 0
        %561 = vmatpush1.bf16.msra.mxu0 0
        %562 = vmatprep.subr.bf16.mxu0 0
        %563 = vmatpush1.bf16.msra.mxu0 0
        %564 = vmatprep.subr.bf16.mxu0 0
        %565 = vmatpush1.bf16.msra.mxu0 0
        %566 = vmatprep.subr.bf16.mxu0 0
        %567 = vmatpush1.bf16.msra.mxu0 0
        %568 = vmatprep.subr.bf16.mxu0 0
        %569 = vmatpush1.bf16.msra.mxu0 0
        %570 = vmatprep.subr.bf16.mxu0 0
        %571 = vmatpush1.bf16.msra.mxu0 0
        %572 = vmatprep.subr.bf16.mxu0 0
        %573 = vmatpush1.bf16.msra.mxu0 0
        %574 = vmatprep.subr.bf16.mxu0 0
        %575 = vmatpush1.bf16.msra.mxu0 0
        %576 = vmatprep.subr.bf16.mxu0 0
        %577 = vmatpush1.bf16.msra.mxu0 0
        %578 = vmatprep.subr.bf16.mxu0 0
        %579 = vmatpush1.bf16.msra.mxu0 0
        %580 = vmatprep.subr.bf16.mxu0 0
        %581 = vmatpush1.bf16.msra.mxu0 0
        %582 = vmatprep.subr.bf16.mxu0 0
        %583 = vmatpush1.bf16.msra.mxu0 0
        %584 = vmatprep.subr.bf16.mxu0 0
        %585 = vmatpush1.bf16.msra.mxu0 0
        %586 = vmatprep.subr.bf16.mxu0 0
        %587 = vmatpush1.bf16.msra.mxu0 0
        %588 = vmatprep.subr.bf16.mxu0 0
        %589 = vmatpush1.bf16.msra.mxu0 0
        %590 = vmatprep.mubr.bf16.mxu0 0
        %591 = vmatmul.mubr.bf16.gmra.mrb[0].mxu0 %v506
        %v592 = vpop.f32.mrb[0].mxu0
        %v593 = vadd.f32 %v483, %v592
        %v594 = vpop.f32.mrb[0].mxu0
        %v595 = vpop.f32.mrb[0].mxu0
        %v596 = vpop.f32.mrb[0].mxu0
        %597 = vdwg.mxu0
        %v598 = vld [vmem:[%s356] sm:$0xff]
        %s599 = scalar_lea.vmem %s2, 8
        %v600 = vld [vmem:[%s599] sm:$0xf]
        %v602 = vcombine.high %v598, %v598
        %v604 = vunpack.c.l.s4 1983009808
        %v605 = vunpack.c.0.s8 %v604
        %v606 = vlaneseq
        %v607 = vshrl.u32 %v606, 7
        %v608 = vsub.s32 %v605, %v607
        %v609 = vrot.slane %v598, %v608
        %v611 = vunpack.c.l.s4 1983009808
        %v612 = vunpack.c.0.s8 %v611
        %v613 = vlaneseq
        %v614 = vshrl.u32 %v613, 7
        %v615 = vsub.s32 %v612, %v614
        %v616 = vrot.slane %v602, %v615
        %v617 = vcombine.high %v609, %v609
        %v618 = vcombine.high %v616, %v616
        %619 = vrot.lane.b32.xlu0 %v609, 126
        %v620 = vpop.permute.xlu0 %619
        %621 = vrot.lane.b32.xlu0 %v617, 126
        %v622 = vpop.permute.xlu0 %621
        %623 = vrot.lane.b32.xlu0 %v616, 126
        %v624 = vpop.permute.xlu0 %623
        %625 = vrot.lane.b32.xlu0 %v618, 126
        %v626 = vpop.permute.xlu0 %625
        %vm627 = vcmask 1031168
        %v628 = vsel %vm627, %v620, %v622
        %v629 = vsel %vm627, %v622, %v624
        %v630 = vsel %vm627, %v624, %v626
        %v632 = vsel %vm393, %v600, 0
        %v635 = vsel %vm397, %v628, 0
        %v638 = vsel %vm397, %v629, 0
        %v641 = vsel %vm397, %v630, 0
        %643 = vmatprep.subr.bf16.mxu0 %v638
        %644 = vmatpush1.bf16.msra.mxu0 %v635
        %645 = vmatprep.subr.bf16.mxu0 0
        %646 = vmatpush1.bf16.msra.mxu0 0
        %647 = vmatprep.subr.bf16.mxu0 0
        %648 = vmatpush1.bf16.msra.mxu0 0
        %649 = vmatprep.subr.bf16.mxu0 0
        %650 = vmatpush1.bf16.msra.mxu0 0
        %651 = vmatprep.subr.bf16.mxu0 0
        %652 = vmatpush1.bf16.msra.mxu0 0
        %653 = vmatprep.subr.bf16.mxu0 0
        %654 = vmatpush1.bf16.msra.mxu0 0
        %655 = vmatprep.subr.bf16.mxu0 0
        %656 = vmatpush1.bf16.msra.mxu0 0
        %657 = vmatprep.subr.bf16.mxu0 0
        %658 = vmatpush1.bf16.msra.mxu0 0
        %659 = vmatprep.subr.bf16.mxu0 0
        %660 = vmatpush1.bf16.msra.mxu0 0
        %661 = vmatprep.subr.bf16.mxu0 0
        %662 = vmatpush1.bf16.msra.mxu0 0
        %663 = vmatprep.subr.bf16.mxu0 0
        %664 = vmatpush1.bf16.msra.mxu0 0
        %665 = vmatprep.subr.bf16.mxu0 0
        %666 = vmatpush1.bf16.msra.mxu0 0
        %667 = vmatprep.subr.bf16.mxu0 0
        %668 = vmatpush1.bf16.msra.mxu0 0
        %669 = vmatprep.subr.bf16.mxu0 0
        %670 = vmatpush1.bf16.msra.mxu0 0
        %671 = vmatprep.subr.bf16.mxu0 0
        %672 = vmatpush1.bf16.msra.mxu0 0
        %673 = vmatprep.subr.bf16.mxu0 0
        %674 = vmatpush1.bf16.msra.mxu0 0
        %675 = vmatprep.mubr.bf16.mxu0 0
        %676 = vmatmul.mubr.bf16.gmra.mrb[0].mxu0 %v632
        %v677 = vpop.f32.mrb[0].mxu0
        %v678 = vadd.f32 0.0, %v677
        %v679 = vpop.f32.mrb[0].mxu0
        %v680 = vadd.f32 0.0, %v679
        %v681 = vpop.f32.mrb[0].mxu0
        %v682 = vpop.f32.mrb[0].mxu0
        %683 = vdwg.mxu0
        %684 = vmatprep.subr.bf16.mxu0 0
        %685 = vmatpush1.bf16.msra.mxu0 %v641
        %686 = vmatprep.subr.bf16.mxu0 0
        %687 = vmatpush1.bf16.msra.mxu0 0
        %688 = vmatprep.subr.bf16.mxu0 0
        %689 = vmatpush1.bf16.msra.mxu0 0
        %690 = vmatprep.subr.bf16.mxu0 0
        %691 = vmatpush1.bf16.msra.mxu0 0
        %692 = vmatprep.subr.bf16.mxu0 0
        %693 = vmatpush1.bf16.msra.mxu0 0
        %694 = vmatprep.subr.bf16.mxu0 0
        %695 = vmatpush1.bf16.msra.mxu0 0
        %696 = vmatprep.subr.bf16.mxu0 0
        %697 = vmatpush1.bf16.msra.mxu0 0
        %698 = vmatprep.subr.bf16.mxu0 0
        %699 = vmatpush1.bf16.msra.mxu0 0
        %700 = vmatprep.subr.bf16.mxu0 0
        %701 = vmatpush1.bf16.msra.mxu0 0
        %702 = vmatprep.subr.bf16.mxu0 0
        %703 = vmatpush1.bf16.msra.mxu0 0
        %704 = vmatprep.subr.bf16.mxu0 0
        %705 = vmatpush1.bf16.msra.mxu0 0
        %706 = vmatprep.subr.bf16.mxu0 0
        %707 = vmatpush1.bf16.msra.mxu0 0
        %708 = vmatprep.subr.bf16.mxu0 0
        %709 = vmatpush1.bf16.msra.mxu0 0
        %710 = vmatprep.subr.bf16.mxu0 0
        %711 = vmatpush1.bf16.msra.mxu0 0
        %712 = vmatprep.subr.bf16.mxu0 0
        %713 = vmatpush1.bf16.msra.mxu0 0
        %714 = vmatprep.subr.bf16.mxu0 0
        %715 = vmatpush1.bf16.msra.mxu0 0
        %716 = vmatprep.mubr.bf16.mxu0 0
        %717 = vmatmul.mubr.bf16.gmra.mrb[0].mxu0 %v632
        %v718 = vpop.f32.mrb[0].mxu0
        %v719 = vadd.f32 0.0, %v718
        %v720 = vpop.f32.mrb[0].mxu0
        %v721 = vpop.f32.mrb[0].mxu0
        %v722 = vpop.f32.mrb[0].mxu0
        %723 = vdwg.mxu0
        %v724 = vadd.f32 %v552, %v678
        %v725 = vadd.f32 %v554, %v680
        %v726 = vadd.f32 %v593, %v719
        %v727 = vld [vmem:[%s356] sm:$0xff]
        %s728 = scalar_lea.vmem %s2, 12
        %v729 = vld [vmem:[%s728] sm:$0xf]
        %v731 = vcombine.high %v727, %v727
        %v733 = vunpack.c.l.s4 1983009808
        %v734 = vunpack.c.0.s8 %v733
        %v735 = vlaneseq
        %v736 = vshrl.u32 %v735, 7
        %v737 = vsub.s32 %v734, %v736
        %v738 = vrot.slane %v727, %v737
        %v740 = vunpack.c.l.s4 1983009808
        %v741 = vunpack.c.0.s8 %v740
        %v742 = vlaneseq
        %v743 = vshrl.u32 %v742, 7
        %v744 = vsub.s32 %v741, %v743
        %v745 = vrot.slane %v731, %v744
        %v746 = vcombine.high %v738, %v738
        %v747 = vcombine.high %v745, %v745
        %748 = vrot.lane.b32.xlu0 %v738, 110
        %v749 = vpop.permute.xlu0 %748
        %750 = vrot.lane.b32.xlu0 %v746, 110
        %v751 = vpop.permute.xlu0 %750
        %752 = vrot.lane.b32.xlu0 %v745, 110
        %v753 = vpop.permute.xlu0 %752
        %754 = vrot.lane.b32.xlu0 %v747, 110
        %v755 = vpop.permute.xlu0 %754
        %vm756 = vcmask 900096
        %v757 = vsel %vm756, %v749, %v751
        %v758 = vsel %vm756, %v751, %v753
        %v759 = vsel %vm756, %v753, %v755
        %v761 = vsel %vm393, %v729, 0
        %v764 = vsel %vm397, %v757, 0
        %v767 = vsel %vm397, %v758, 0
        %v770 = vsel %vm397, %v759, 0
        %772 = vmatprep.subr.bf16.mxu0 %v767
        %773 = vmatpush1.bf16.msra.mxu0 %v764
        %774 = vmatprep.subr.bf16.mxu0 0
        %775 = vmatpush1.bf16.msra.mxu0 0
        %776 = vmatprep.subr.bf16.mxu0 0
        %777 = vmatpush1.bf16.msra.mxu0 0
        %778 = vmatprep.subr.bf16.mxu0 0
        %779 = vmatpush1.bf16.msra.mxu0 0
        %780 = vmatprep.subr.bf16.mxu0 0
        %781 = vmatpush1.bf16.msra.mxu0 0
        %782 = vmatprep.subr.bf16.mxu0 0
        %783 = vmatpush1.bf16.msra.mxu0 0
        %784 = vmatprep.subr.bf16.mxu0 0
        %785 = vmatpush1.bf16.msra.mxu0 0
        %786 = vmatprep.subr.bf16.mxu0 0
        %787 = vmatpush1.bf16.msra.mxu0 0
        %788 = vmatprep.subr.bf16.mxu0 0
        %789 = vmatpush1.bf16.msra.mxu0 0
        %790 = vmatprep.subr.bf16.mxu0 0
        %791 = vmatpush1.bf16.msra.mxu0 0
        %792 = vmatprep.subr.bf16.mxu0 0
        %793 = vmatpush1.bf16.msra.mxu0 0
        %794 = vmatprep.subr.bf16.mxu0 0
        %795 = vmatpush1.bf16.msra.mxu0 0
        %796 = vmatprep.subr.bf16.mxu0 0
        %797 = vmatpush1.bf16.msra.mxu0 0
        %798 = vmatprep.subr.bf16.mxu0 0
        %799 = vmatpush1.bf16.msra.mxu0 0
        %800 = vmatprep.subr.bf16.mxu0 0
        %801 = vmatpush1.bf16.msra.mxu0 0
        %802 = vmatprep.subr.bf16.mxu0 0
        %803 = vmatpush1.bf16.msra.mxu0 0
        %804 = vmatprep.mubr.bf16.mxu0 0
        %805 = vmatmul.mubr.bf16.gmra.mrb[0].mxu0 %v761
        %v806 = vpop.f32.mrb[0].mxu0
        %v807 = vadd.f32 0.0, %v806
        %v808 = vpop.f32.mrb[0].mxu0
        %v809 = vadd.f32 0.0, %v808
        %v810 = vpop.f32.mrb[0].mxu0
        %v811 = vpop.f32.mrb[0].mxu0
        %812 = vdwg.mxu0
        %813 = vmatprep.subr.bf16.mxu0 0
        %814 = vmatpush1.bf16.msra.mxu0 %v770
        %815 = vmatprep.subr.bf16.mxu0 0
        %816 = vmatpush1.bf16.msra.mxu0 0
        %817 = vmatprep.subr.bf16.mxu0 0
        %818 = vmatpush1.bf16.msra.mxu0 0
        %819 = vmatprep.subr.bf16.mxu0 0
        %820 = vmatpush1.bf16.msra.mxu0 0
        %821 = vmatprep.subr.bf16.mxu0 0
        %822 = vmatpush1.bf16.msra.mxu0 0
        %823 = vmatprep.subr.bf16.mxu0 0
        %824 = vmatpush1.bf16.msra.mxu0 0
        %825 = vmatprep.subr.bf16.mxu0 0
        %826 = vmatpush1.bf16.msra.mxu0 0
        %827 = vmatprep.subr.bf16.mxu0 0
        %828 = vmatpush1.bf16.msra.mxu0 0
        %829 = vmatprep.subr.bf16.mxu0 0
        %830 = vmatpush1.bf16.msra.mxu0 0
        %831 = vmatprep.subr.bf16.mxu0 0
        %832 = vmatpush1.bf16.msra.mxu0 0
        %833 = vmatprep.subr.bf16.mxu0 0
        %834 = vmatpush1.bf16.msra.mxu0 0
        %835 = vmatprep.subr.bf16.mxu0 0
        %836 = vmatpush1.bf16.msra.mxu0 0
        %837 = vmatprep.subr.bf16.mxu0 0
        %838 = vmatpush1.bf16.msra.mxu0 0
        %839 = vmatprep.subr.bf16.mxu0 0
        %840 = vmatpush1.bf16.msra.mxu0 0
        %841 = vmatprep.subr.bf16.mxu0 0
        %842 = vmatpush1.bf16.msra.mxu0 0
        %843 = vmatprep.subr.bf16.mxu0 0
        %844 = vmatpush1.bf16.msra.mxu0 0
        %845 = vmatprep.mubr.bf16.mxu0 0
        %846 = vmatmul.mubr.bf16.gmra.mrb[0].mxu0 %v761
        %v847 = vpop.f32.mrb[0].mxu0
        %v848 = vadd.f32 0.0, %v847
        %v849 = vpop.f32.mrb[0].mxu0
        %v850 = vpop.f32.mrb[0].mxu0
        %v851 = vpop.f32.mrb[0].mxu0
        %852 = vdwg.mxu0
        %v853 = vadd.f32 %v724, %v807
        %v854 = vadd.f32 %v725, %v809
        %v855 = vadd.f32 %v726, %v848
        %v856 = vld [vmem:[%s356] sm:$0xff]
        %s857 = scalar_lea.vmem %s2, 16
        %v858 = vld [vmem:[%s857] sm:$0xf]
        %v860 = vcombine.high %v856, %v856
        %v862 = vunpack.c.l.s4 1983009808
        %v863 = vunpack.c.0.s8 %v862
        %v864 = vlaneseq
        %v865 = vshrl.u32 %v864, 7
        %v866 = vsub.s32 %v863, %v865
        %v867 = vrot.slane %v856, %v866
        %v869 = vunpack.c.l.s4 1983009808
        %v870 = vunpack.c.0.s8 %v869
        %v871 = vlaneseq
        %v872 = vshrl.u32 %v871, 7
        %v873 = vsub.s32 %v870, %v872
        %v874 = vrot.slane %v860, %v873
        %v875 = vcombine.high %v867, %v867
        %v876 = vcombine.high %v874, %v874
        %877 = vrot.lane.b32.xlu0 %v867, 109
        %v878 = vpop.permute.xlu0 %877
        %879 = vrot.lane.b32.xlu0 %v875, 109
        %v880 = vpop.permute.xlu0 %879
        %881 = vrot.lane.b32.xlu0 %v874, 109
        %v882 = vpop.permute.xlu0 %881
        %883 = vrot.lane.b32.xlu0 %v876, 109
        %v884 = vpop.permute.xlu0 %883
        %vm885 = vcmask 891904
        %v886 = vsel %vm885, %v878, %v880
        %v887 = vsel %vm885, %v880, %v882
        %v888 = vsel %vm885, %v882, %v884
        %v890 = vsel %vm393, %v858, 0
        %v893 = vsel %vm397, %v886, 0
        %v896 = vsel %vm397, %v887, 0
        %v899 = vsel %vm397, %v888, 0
        %901 = vmatprep.subr.bf16.mxu0 %v896
        %902 = vmatpush1.bf16.msra.mxu0 %v893
        %903 = vmatprep.subr.bf16.mxu0 0
        %904 = vmatpush1.bf16.msra.mxu0 0
        %905 = vmatprep.subr.bf16.mxu0 0
        %906 = vmatpush1.bf16.msra.mxu0 0
        %907 = vmatprep.subr.bf16.mxu0 0
        %908 = vmatpush1.bf16.msra.mxu0 0
        %909 = vmatprep.subr.bf16.mxu0 0
        %910 = vmatpush1.bf16.msra.mxu0 0
        %911 = vmatprep.subr.bf16.mxu0 0
        %912 = vmatpush1.bf16.msra.mxu0 0
        %913 = vmatprep.subr.bf16.mxu0 0
        %914 = vmatpush1.bf16.msra.mxu0 0
        %915 = vmatprep.subr.bf16.mxu0 0
        %916 = vmatpush1.bf16.msra.mxu0 0
        %917 = vmatprep.subr.bf16.mxu0 0
        %918 = vmatpush1.bf16.msra.mxu0 0
        %919 = vmatprep.subr.bf16.mxu0 0
        %920 = vmatpush1.bf16.msra.mxu0 0
        %921 = vmatprep.subr.bf16.mxu0 0
        %922 = vmatpush1.bf16.msra.mxu0 0
        %923 = vmatprep.subr.bf16.mxu0 0
        %924 = vmatpush1.bf16.msra.mxu0 0
        %925 = vmatprep.subr.bf16.mxu0 0
        %926 = vmatpush1.bf16.msra.mxu0 0
        %927 = vmatprep.subr.bf16.mxu0 0
        %928 = vmatpush1.bf16.msra.mxu0 0
        %929 = vmatprep.subr.bf16.mxu0 0
        %930 = vmatpush1.bf16.msra.mxu0 0
        %931 = vmatprep.subr.bf16.mxu0 0
        %932 = vmatpush1.bf16.msra.mxu0 0
        %933 = vmatprep.mubr.bf16.mxu0 0
        %934 = vmatmul.mubr.bf16.gmra.mrb[0].mxu0 %v890
        %v935 = vpop.f32.mrb[0].mxu0
        %v936 = vadd.f32 0.0, %v935
        %v937 = vpop.f32.mrb[0].mxu0
        %v938 = vadd.f32 0.0, %v937
        %v939 = vpop.f32.mrb[0].mxu0
        %v940 = vpop.f32.mrb[0].mxu0
        %941 = vdwg.mxu0
        %942 = vmatprep.subr.bf16.mxu0 0
        %943 = vmatpush1.bf16.msra.mxu0 %v899
        %944 = vmatprep.subr.bf16.mxu0 0
        %945 = vmatpush1.bf16.msra.mxu0 0
        %946 = vmatprep.subr.bf16.mxu0 0
        %947 = vmatpush1.bf16.msra.mxu0 0
        %948 = vmatprep.subr.bf16.mxu0 0
        %949 = vmatpush1.bf16.msra.mxu0 0
        %950 = vmatprep.subr.bf16.mxu0 0
        %951 = vmatpush1.bf16.msra.mxu0 0
        %952 = vmatprep.subr.bf16.mxu0 0
        %953 = vmatpush1.bf16.msra.mxu0 0
        %954 = vmatprep.subr.bf16.mxu0 0
        %955 = vmatpush1.bf16.msra.mxu0 0
        %956 = vmatprep.subr.bf16.mxu0 0
        %957 = vmatpush1.bf16.msra.mxu0 0
        %958 = vmatprep.subr.bf16.mxu0 0
        %959 = vmatpush1.bf16.msra.mxu0 0
        %960 = vmatprep.subr.bf16.mxu0 0
        %961 = vmatpush1.bf16.msra.mxu0 0
        %962 = vmatprep.subr.bf16.mxu0 0
        %963 = vmatpush1.bf16.msra.mxu0 0
        %964 = vmatprep.subr.bf16.mxu0 0
        %965 = vmatpush1.bf16.msra.mxu0 0
        %966 = vmatprep.subr.bf16.mxu0 0
        %967 = vmatpush1.bf16.msra.mxu0 0
        %968 = vmatprep.subr.bf16.mxu0 0
        %969 = vmatpush1.bf16.msra.mxu0 0
        %970 = vmatprep.subr.bf16.mxu0 0
        %971 = vmatpush1.bf16.msra.mxu0 0
        %972 = vmatprep.subr.bf16.mxu0 0
        %973 = vmatpush1.bf16.msra.mxu0 0
        %974 = vmatprep.mubr.bf16.mxu0 0
        %975 = vmatmul.mubr.bf16.gmra.mrb[0].mxu0 %v890
        %v976 = vpop.f32.mrb[0].mxu0
        %v977 = vadd.f32 0.0, %v976
        %v978 = vpop.f32.mrb[0].mxu0
        %v979 = vpop.f32.mrb[0].mxu0
        %v980 = vpop.f32.mrb[0].mxu0
        %981 = vdwg.mxu0
        %v982 = vadd.f32 %v853, %v936
        %v983 = vadd.f32 %v854, %v938
        %v984 = vadd.f32 %v855, %v977
        %v985 = vld [vmem:[%s356] sm:$0xff]
        %s986 = scalar_lea.vmem %s2, 20
        %v987 = vld [vmem:[%s986] sm:$0xf]
        %v989 = vcombine.high %v985, %v985
        %v991 = vunpack.c.l.s4 1983009808
        %v992 = vunpack.c.0.s8 %v991
        %v993 = vlaneseq
        %v994 = vshrl.u32 %v993, 7
        %v995 = vsub.s32 %v992, %v994
        %v996 = vrot.slane %v985, %v995
        %v998 = vunpack.c.l.s4 1983009808
        %v999 = vunpack.c.0.s8 %v998
        %v1000 = vlaneseq
        %v1001 = vshrl.u32 %v1000, 7
        %v1002 = vsub.s32 %v999, %v1001
        %v1003 = vrot.slane %v989, %v1002
        %v1004 = vcombine.high %v996, %v996
        %v1005 = vcombine.high %v1003, %v1003
        %1006 = vrot.lane.b32.xlu0 %v996, 108
        %v1007 = vpop.permute.xlu0 %1006
        %1008 = vrot.lane.b32.xlu0 %v1004, 108
        %v1009 = vpop.permute.xlu0 %1008
        %1010 = vrot.lane.b32.xlu0 %v1003, 108
        %v1011 = vpop.permute.xlu0 %1010
        %1012 = vrot.lane.b32.xlu0 %v1005, 108
        %v1013 = vpop.permute.xlu0 %1012
        %vm1014 = vcmask 883712
        %v1015 = vsel %vm1014, %v1007, %v1009
        %v1016 = vsel %vm1014, %v1009, %v1011
        %v1017 = vsel %vm1014, %v1011, %v1013
        %v1019 = vsel %vm393, %v987, 0
        %v1022 = vsel %vm397, %v1015, 0
        %v1025 = vsel %vm397, %v1016, 0
        %v1028 = vsel %vm397, %v1017, 0
        %1030 = vmatprep.subr.bf16.mxu0 %v1025
        %1031 = vmatpush1.bf16.msra.mxu0 %v1022
        %1032 = vmatprep.subr.bf16.mxu0 0
        %1033 = vmatpush1.bf16.msra.mxu0 0
        %1034 = vmatprep.subr.bf16.mxu0 0
        %1035 = vmatpush1.bf16.msra.mxu0 0
        %1036 = vmatprep.subr.bf16.mxu0 0
        %1037 = vmatpush1.bf16.msra.mxu0 0
        %1038 = vmatprep.subr.bf16.mxu0 0
        %1039 = vmatpush1.bf16.msra.mxu0 0
        %1040 = vmatprep.subr.bf16.mxu0 0
        %1041 = vmatpush1.bf16.msra.mxu0 0
        %1042 = vmatprep.subr.bf16.mxu0 0
        %1043 = vmatpush1.bf16.msra.mxu0 0
        %1044 = vmatprep.subr.bf16.mxu0 0
        %1045 = vmatpush1.bf16.msra.mxu0 0
        %1046 = vmatprep.subr.bf16.mxu0 0
        %1047 = vmatpush1.bf16.msra.mxu0 0
        %1048 = vmatprep.subr.bf16.mxu0 0
        %1049 = vmatpush1.bf16.msra.mxu0 0
        %1050 = vmatprep.subr.bf16.mxu0 0
        %1051 = vmatpush1.bf16.msra.mxu0 0
        %1052 = vmatprep.subr.bf16.mxu0 0
        %1053 = vmatpush1.bf16.msra.mxu0 0
        %1054 = vmatprep.subr.bf16.mxu0 0
        %1055 = vmatpush1.bf16.msra.mxu0 0
        %1056 = vmatprep.subr.bf16.mxu0 0
        %1057 = vmatpush1.bf16.msra.mxu0 0
        %1058 = vmatprep.subr.bf16.mxu0 0
        %1059 = vmatpush1.bf16.msra.mxu0 0
        %1060 = vmatprep.subr.bf16.mxu0 0
        %1061 = vmatpush1.bf16.msra.mxu0 0
        %1062 = vmatprep.mubr.bf16.mxu0 0
        %1063 = vmatmul.mubr.bf16.gmra.mrb[0].mxu0 %v1019
        %v1064 = vpop.f32.mrb[0].mxu0
        %v1065 = vadd.f32 0.0, %v1064
        %v1066 = vpop.f32.mrb[0].mxu0
        %v1067 = vadd.f32 0.0, %v1066
        %v1068 = vpop.f32.mrb[0].mxu0
        %v1069 = vpop.f32.mrb[0].mxu0
        %1070 = vdwg.mxu0
        %1071 = vmatprep.subr.bf16.mxu0 0
        %1072 = vmatpush1.bf16.msra.mxu0 %v1028
        %1073 = vmatprep.subr.bf16.mxu0 0
        %1074 = vmatpush1.bf16.msra.mxu0 0
        %1075 = vmatprep.subr.bf16.mxu0 0
        %1076 = vmatpush1.bf16.msra.mxu0 0
        %1077 = vmatprep.subr.bf16.mxu0 0
        %1078 = vmatpush1.bf16.msra.mxu0 0
        %1079 = vmatprep.subr.bf16.mxu0 0
        %1080 = vmatpush1.bf16.msra.mxu0 0
        %1081 = vmatprep.subr.bf16.mxu0 0
        %1082 = vmatpush1.bf16.msra.mxu0 0
        %1083 = vmatprep.subr.bf16.mxu0 0
        %1084 = vmatpush1.bf16.msra.mxu0 0
        %1085 = vmatprep.subr.bf16.mxu0 0
        %1086 = vmatpush1.bf16.msra.mxu0 0
        %1087 = vmatprep.subr.bf16.mxu0 0
        %1088 = vmatpush1.bf16.msra.mxu0 0
        %1089 = vmatprep.subr.bf16.mxu0 0
        %1090 = vmatpush1.bf16.msra.mxu0 0
        %1091 = vmatprep.subr.bf16.mxu0 0
        %1092 = vmatpush1.bf16.msra.mxu0 0
        %1093 = vmatprep.subr.bf16.mxu0 0
        %1094 = vmatpush1.bf16.msra.mxu0 0
        %1095 = vmatprep.subr.bf16.mxu0 0
        %1096 = vmatpush1.bf16.msra.mxu0 0
        %1097 = vmatprep.subr.bf16.mxu0 0
        %1098 = vmatpush1.bf16.msra.mxu0 0
        %1099 = vmatprep.subr.bf16.mxu0 0
        %1100 = vmatpush1.bf16.msra.mxu0 0
        %1101 = vmatprep.subr.bf16.mxu0 0
        %1102 = vmatpush1.bf16.msra.mxu0 0
        %1103 = vmatprep.mubr.bf16.mxu0 0
        %1104 = vmatmul.mubr.bf16.gmra.mrb[0].mxu0 %v1019
        %v1105 = vpop.f32.mrb[0].mxu0
        %v1106 = vadd.f32 0.0, %v1105
        %v1107 = vpop.f32.mrb[0].mxu0
        %v1108 = vpop.f32.mrb[0].mxu0
        %v1109 = vpop.f32.mrb[0].mxu0
        %1110 = vdwg.mxu0
        %v1111 = vadd.f32 %v982, %v1065
        %v1112 = vadd.f32 %v983, %v1067
        %v1113 = vadd.f32 %v984, %v1106
        %v1114 = vld [vmem:[%s356] sm:$0xff]
        %s1115 = scalar_lea.vmem %s2, 24
        %v1116 = vld [vmem:[%s1115] sm:$0xf]
        %v1118 = vcombine.high %v1114, %v1114
        %v1120 = vunpack.c.l.s4 1983009808
        %v1121 = vunpack.c.0.s8 %v1120
        %v1122 = vlaneseq
        %v1123 = vshrl.u32 %v1122, 7
        %v1124 = vsub.s32 %v1121, %v1123
        %v1125 = vrot.slane %v1114, %v1124
        %v1127 = vunpack.c.l.s4 1983009808
        %v1128 = vunpack.c.0.s8 %v1127
        %v1129 = vlaneseq
        %v1130 = vshrl.u32 %v1129, 7
        %v1131 = vsub.s32 %v1128, %v1130
        %v1132 = vrot.slane %v1118, %v1131
        %v1133 = vcombine.high %v1125, %v1125
        %v1134 = vcombine.high %v1132, %v1132
        %1135 = vrot.lane.b32.xlu0 %v1125, 92
        %v1136 = vpop.permute.xlu0 %1135
        %1137 = vrot.lane.b32.xlu0 %v1133, 92
        %v1138 = vpop.permute.xlu0 %1137
        %1139 = vrot.lane.b32.xlu0 %v1132, 92
        %v1140 = vpop.permute.xlu0 %1139
        %1141 = vrot.lane.b32.xlu0 %v1134, 92
        %v1142 = vpop.permute.xlu0 %1141
        %vm1143 = vcmask 752640
        %v1144 = vsel %vm1143, %v1136, %v1138
        %v1145 = vsel %vm1143, %v1138, %v1140
        %v1146 = vsel %vm1143, %v1140, %v1142
        %v1148 = vsel %vm393, %v1116, 0
        %v1151 = vsel %vm397, %v1144, 0
        %v1154 = vsel %vm397, %v1145, 0
        %v1157 = vsel %vm397, %v1146, 0
        %1159 = vmatprep.subr.bf16.mxu0 %v1154
        %1160 = vmatpush1.bf16.msra.mxu0 %v1151
        %1161 = vmatprep.subr.bf16.mxu0 0
        %1162 = vmatpush1.bf16.msra.mxu0 0
        %1163 = vmatprep.subr.bf16.mxu0 0
        %1164 = vmatpush1.bf16.msra.mxu0 0
        %1165 = vmatprep.subr.bf16.mxu0 0
        %1166 = vmatpush1.bf16.msra.mxu0 0
        %1167 = vmatprep.subr.bf16.mxu0 0
        %1168 = vmatpush1.bf16.msra.mxu0 0
        %1169 = vmatprep.subr.bf16.mxu0 0
        %1170 = vmatpush1.bf16.msra.mxu0 0
        %1171 = vmatprep.subr.bf16.mxu0 0
        %1172 = vmatpush1.bf16.msra.mxu0 0
        %1173 = vmatprep.subr.bf16.mxu0 0
        %1174 = vmatpush1.bf16.msra.mxu0 0
        %1175 = vmatprep.subr.bf16.mxu0 0
        %1176 = vmatpush1.bf16.msra.mxu0 0
        %1177 = vmatprep.subr.bf16.mxu0 0
        %1178 = vmatpush1.bf16.msra.mxu0 0
        %1179 = vmatprep.subr.bf16.mxu0 0
        %1180 = vmatpush1.bf16.msra.mxu0 0
        %1181 = vmatprep.subr.bf16.mxu0 0
        %1182 = vmatpush1.bf16.msra.mxu0 0
        %1183 = vmatprep.subr.bf16.mxu0 0
        %1184 = vmatpush1.bf16.msra.mxu0 0
        %1185 = vmatprep.subr.bf16.mxu0 0
        %1186 = vmatpush1.bf16.msra.mxu0 0
        %1187 = vmatprep.subr.bf16.mxu0 0
        %1188 = vmatpush1.bf16.msra.mxu0 0
        %1189 = vmatprep.subr.bf16.mxu0 0
        %1190 = vmatpush1.bf16.msra.mxu0 0
        %1191 = vmatprep.mubr.bf16.mxu0 0
        %1192 = vmatmul.mubr.bf16.gmra.mrb[0].mxu0 %v1148
        %v1193 = vpop.f32.mrb[0].mxu0
        %v1194 = vadd.f32 0.0, %v1193
        %v1195 = vpop.f32.mrb[0].mxu0
        %v1196 = vadd.f32 0.0, %v1195
        %v1197 = vpop.f32.mrb[0].mxu0
        %v1198 = vpop.f32.mrb[0].mxu0
        %1199 = vdwg.mxu0
        %1200 = vmatprep.subr.bf16.mxu0 0
        %1201 = vmatpush1.bf16.msra.mxu0 %v1157
        %1202 = vmatprep.subr.bf16.mxu0 0
        %1203 = vmatpush1.bf16.msra.mxu0 0
        %1204 = vmatprep.subr.bf16.mxu0 0
        %1205 = vmatpush1.bf16.msra.mxu0 0
        %1206 = vmatprep.subr.bf16.mxu0 0
        %1207 = vmatpush1.bf16.msra.mxu0 0
        %1208 = vmatprep.subr.bf16.mxu0 0
        %1209 = vmatpush1.bf16.msra.mxu0 0
        %1210 = vmatprep.subr.bf16.mxu0 0
        %1211 = vmatpush1.bf16.msra.mxu0 0
        %1212 = vmatprep.subr.bf16.mxu0 0
        %1213 = vmatpush1.bf16.msra.mxu0 0
        %1214 = vmatprep.subr.bf16.mxu0 0
        %1215 = vmatpush1.bf16.msra.mxu0 0
        %1216 = vmatprep.subr.bf16.mxu0 0
        %1217 = vmatpush1.bf16.msra.mxu0 0
        %1218 = vmatprep.subr.bf16.mxu0 0
        %1219 = vmatpush1.bf16.msra.mxu0 0
        %1220 = vmatprep.subr.bf16.mxu0 0
        %1221 = vmatpush1.bf16.msra.mxu0 0
        %1222 = vmatprep.subr.bf16.mxu0 0
        %1223 = vmatpush1.bf16.msra.mxu0 0
        %1224 = vmatprep.subr.bf16.mxu0 0
        %1225 = vmatpush1.bf16.msra.mxu0 0
        %1226 = vmatprep.subr.bf16.mxu0 0
        %1227 = vmatpush1.bf16.msra.mxu0 0
        %1228 = vmatprep.subr.bf16.mxu0 0
        %1229 = vmatpush1.bf16.msra.mxu0 0
        %1230 = vmatprep.subr.bf16.mxu0 0
        %1231 = vmatpush1.bf16.msra.mxu0 0
        %1232 = vmatprep.mubr.bf16.mxu0 0
        %1233 = vmatmul.mubr.bf16.gmra.mrb[0].mxu0 %v1148
        %v1234 = vpop.f32.mrb[0].mxu0
        %v1235 = vadd.f32 0.0, %v1234
        %v1236 = vpop.f32.mrb[0].mxu0
        %v1237 = vpop.f32.mrb[0].mxu0
        %v1238 = vpop.f32.mrb[0].mxu0
        %1239 = vdwg.mxu0
        %v1240 = vadd.f32 %v1111, %v1194
        %v1241 = vadd.f32 %v1112, %v1196
        %v1242 = vadd.f32 %v1113, %v1235
        %v1243 = vld [vmem:[%s356] sm:$0xff]
        %s1244 = scalar_lea.vmem %s2, 28
        %v1245 = vld [vmem:[%s1244] sm:$0xf]
        %v1247 = vcombine.high %v1243, %v1243
        %v1249 = vunpack.c.l.s4 1983009808
        %v1250 = vunpack.c.0.s8 %v1249
        %v1251 = vlaneseq
        %v1252 = vshrl.u32 %v1251, 7
        %v1253 = vsub.s32 %v1250, %v1252
        %v1254 = vrot.slane %v1243, %v1253
        %v1256 = vunpack.c.l.s4 1983009808
        %v1257 = vunpack.c.0.s8 %v1256
        %v1258 = vlaneseq
        %v1259 = vshrl.u32 %v1258, 7
        %v1260 = vsub.s32 %v1257, %v1259
        %v1261 = vrot.slane %v1247, %v1260
        %v1262 = vcombine.high %v1254, %v1254
        %v1263 = vcombine.high %v1261, %v1261
        %1264 = vrot.lane.b32.xlu0 %v1254, 91
        %v1265 = vpop.permute.xlu0 %1264
        %1266 = vrot.lane.b32.xlu0 %v1262, 91
        %v1267 = vpop.permute.xlu0 %1266
        %1268 = vrot.lane.b32.xlu0 %v1261, 91
        %v1269 = vpop.permute.xlu0 %1268
        %1270 = vrot.lane.b32.xlu0 %v1263, 91
        %v1271 = vpop.permute.xlu0 %1270
        %vm1272 = vcmask 744448
        %v1273 = vsel %vm1272, %v1265, %v1267
        %v1274 = vsel %vm1272, %v1267, %v1269
        %v1275 = vsel %vm1272, %v1269, %v1271
        %v1277 = vsel %vm393, %v1245, 0
        %v1280 = vsel %vm397, %v1273, 0
        %v1283 = vsel %vm397, %v1274, 0
        %v1286 = vsel %vm397, %v1275, 0
        %1288 = vmatprep.subr.bf16.mxu0 %v1283
        %1289 = vmatpush1.bf16.msra.mxu0 %v1280
        %1290 = vmatprep.subr.bf16.mxu0 0
        %1291 = vmatpush1.bf16.msra.mxu0 0
        %1292 = vmatprep.subr.bf16.mxu0 0
        %1293 = vmatpush1.bf16.msra.mxu0 0
        %1294 = vmatprep.subr.bf16.mxu0 0
        %1295 = vmatpush1.bf16.msra.mxu0 0
        %1296 = vmatprep.subr.bf16.mxu0 0
        %1297 = vmatpush1.bf16.msra.mxu0 0
        %1298 = vmatprep.subr.bf16.mxu0 0
        %1299 = vmatpush1.bf16.msra.mxu0 0
        %1300 = vmatprep.subr.bf16.mxu0 0
        %1301 = vmatpush1.bf16.msra.mxu0 0
        %1302 = vmatprep.subr.bf16.mxu0 0
        %1303 = vmatpush1.bf16.msra.mxu0 0
        %1304 = vmatprep.subr.bf16.mxu0 0
        %1305 = vmatpush1.bf16.msra.mxu0 0
        %1306 = vmatprep.subr.bf16.mxu0 0
        %1307 = vmatpush1.bf16.msra.mxu0 0
        %1308 = vmatprep.subr.bf16.mxu0 0
        %1309 = vmatpush1.bf16.msra.mxu0 0
        %1310 = vmatprep.subr.bf16.mxu0 0
        %1311 = vmatpush1.bf16.msra.mxu0 0
        %1312 = vmatprep.subr.bf16.mxu0 0
        %1313 = vmatpush1.bf16.msra.mxu0 0
        %1314 = vmatprep.subr.bf16.mxu0 0
        %1315 = vmatpush1.bf16.msra.mxu0 0
        %1316 = vmatprep.subr.bf16.mxu0 0
        %1317 = vmatpush1.bf16.msra.mxu0 0
        %1318 = vmatprep.subr.bf16.mxu0 0
        %1319 = vmatpush1.bf16.msra.mxu0 0
        %1320 = vmatprep.mubr.bf16.mxu0 0
        %1321 = vmatmul.mubr.bf16.gmra.mrb[0].mxu0 %v1277
        %v1322 = vpop.f32.mrb[0].mxu0
        %v1323 = vadd.f32 0.0, %v1322
        %v1324 = vpop.f32.mrb[0].mxu0
        %v1325 = vadd.f32 0.0, %v1324
        %v1326 = vpop.f32.mrb[0].mxu0
        %v1327 = vpop.f32.mrb[0].mxu0
        %1328 = vdwg.mxu0
        %1329 = vmatprep.subr.bf16.mxu0 0
        %1330 = vmatpush1.bf16.msra.mxu0 %v1286
        %1331 = vmatprep.subr.bf16.mxu0 0
        %1332 = vmatpush1.bf16.msra.mxu0 0
        %1333 = vmatprep.subr.bf16.mxu0 0
        %1334 = vmatpush1.bf16.msra.mxu0 0
        %1335 = vmatprep.subr.bf16.mxu0 0
        %1336 = vmatpush1.bf16.msra.mxu0 0
        %1337 = vmatprep.subr.bf16.mxu0 0
        %1338 = vmatpush1.bf16.msra.mxu0 0
        %1339 = vmatprep.subr.bf16.mxu0 0
        %1340 = vmatpush1.bf16.msra.mxu0 0
        %1341 = vmatprep.subr.bf16.mxu0 0
        %1342 = vmatpush1.bf16.msra.mxu0 0
        %1343 = vmatprep.subr.bf16.mxu0 0
        %1344 = vmatpush1.bf16.msra.mxu0 0
        %1345 = vmatprep.subr.bf16.mxu0 0
        %1346 = vmatpush1.bf16.msra.mxu0 0
        %1347 = vmatprep.subr.bf16.mxu0 0
        %1348 = vmatpush1.bf16.msra.mxu0 0
        %1349 = vmatprep.subr.bf16.mxu0 0
        %1350 = vmatpush1.bf16.msra.mxu0 0
        %1351 = vmatprep.subr.bf16.mxu0 0
        %1352 = vmatpush1.bf16.msra.mxu0 0
        %1353 = vmatprep.subr.bf16.mxu0 0
        %1354 = vmatpush1.bf16.msra.mxu0 0
        %1355 = vmatprep.subr.bf16.mxu0 0
        %1356 = vmatpush1.bf16.msra.mxu0 0
        %1357 = vmatprep.subr.bf16.mxu0 0
        %1358 = vmatpush1.bf16.msra.mxu0 0
        %1359 = vmatprep.subr.bf16.mxu0 0
        %1360 = vmatpush1.bf16.msra.mxu0 0
        %1361 = vmatprep.mubr.bf16.mxu0 0
        %1362 = vmatmul.mubr.bf16.gmra.mrb[0].mxu0 %v1277
        %v1363 = vpop.f32.mrb[0].mxu0
        %v1364 = vadd.f32 0.0, %v1363
        %v1365 = vpop.f32.mrb[0].mxu0
        %v1366 = vpop.f32.mrb[0].mxu0
        %v1367 = vpop.f32.mrb[0].mxu0
        %1368 = vdwg.mxu0
        %v1369 = vadd.f32 %v1240, %v1323
        %v1370 = vadd.f32 %v1241, %v1325
        %v1371 = vadd.f32 %v1242, %v1364
        %v1372 = vld [vmem:[%s356] sm:$0xff]
        %s1373 = scalar_lea.vmem %s2, 32
        %v1374 = vld [vmem:[%s1373] sm:$0xf]
        %v1376 = vcombine.high %v1372, %v1372
        %v1378 = vunpack.c.l.s4 1983009808
        %v1379 = vunpack.c.0.s8 %v1378
        %v1380 = vlaneseq
        %v1381 = vshrl.u32 %v1380, 7
        %v1382 = vsub.s32 %v1379, %v1381
        %v1383 = vrot.slane %v1372, %v1382
        %v1385 = vunpack.c.l.s4 1983009808
        %v1386 = vunpack.c.0.s8 %v1385
        %v1387 = vlaneseq
        %v1388 = vshrl.u32 %v1387, 7
        %v1389 = vsub.s32 %v1386, %v1388
        %v1390 = vrot.slane %v1376, %v1389
        %v1391 = vcombine.high %v1383, %v1383
        %v1392 = vcombine.high %v1390, %v1390
        %1393 = vrot.lane.b32.xlu0 %v1383, 90
        %v1394 = vpop.permute.xlu0 %1393
        %1395 = vrot.lane.b32.xlu0 %v1391, 90
        %v1396 = vpop.permute.xlu0 %1395
        %1397 = vrot.lane.b32.xlu0 %v1390, 90
        %v1398 = vpop.permute.xlu0 %1397
        %1399 = vrot.lane.b32.xlu0 %v1392, 90
        %v1400 = vpop.permute.xlu0 %1399
        %vm1401 = vcmask 736256
        %v1402 = vsel %vm1401, %v1394, %v1396
        %v1403 = vsel %vm1401, %v1396, %v1398
        %v1404 = vsel %vm1401, %v1398, %v1400
        %v1406 = vsel %vm393, %v1374, 0
        %v1409 = vsel %vm397, %v1402, 0
        %v1412 = vsel %vm397, %v1403, 0
        %v1415 = vsel %vm397, %v1404, 0
        %1417 = vmatprep.subr.bf16.mxu0 %v1412
        %1418 = vmatpush1.bf16.msra.mxu0 %v1409
        %1419 = vmatprep.subr.bf16.mxu0 0
        %1420 = vmatpush1.bf16.msra.mxu0 0
        %1421 = vmatprep.subr.bf16.mxu0 0
        %1422 = vmatpush1.bf16.msra.mxu0 0
        %1423 = vmatprep.subr.bf16.mxu0 0
        %1424 = vmatpush1.bf16.msra.mxu0 0
        %1425 = vmatprep.subr.bf16.mxu0 0
        %1426 = vmatpush1.bf16.msra.mxu0 0
        %1427 = vmatprep.subr.bf16.mxu0 0
        %1428 = vmatpush1.bf16.msra.mxu0 0
        %1429 = vmatprep.subr.bf16.mxu0 0
        %1430 = vmatpush1.bf16.msra.mxu0 0
        %1431 = vmatprep.subr.bf16.mxu0 0
        %1432 = vmatpush1.bf16.msra.mxu0 0
        %1433 = vmatprep.subr.bf16.mxu0 0
        %1434 = vmatpush1.bf16.msra.mxu0 0
        %1435 = vmatprep.subr.bf16.mxu0 0
        %1436 = vmatpush1.bf16.msra.mxu0 0
        %1437 = vmatprep.subr.bf16.mxu0 0
        %1438 = vmatpush1.bf16.msra.mxu0 0
        %1439 = vmatprep.subr.bf16.mxu0 0
        %1440 = vmatpush1.bf16.msra.mxu0 0
        %1441 = vmatprep.subr.bf16.mxu0 0
        %1442 = vmatpush1.bf16.msra.mxu0 0
        %1443 = vmatprep.subr.bf16.mxu0 0
        %1444 = vmatpush1.bf16.msra.mxu0 0
        %1445 = vmatprep.subr.bf16.mxu0 0
        %1446 = vmatpush1.bf16.msra.mxu0 0
        %1447 = vmatprep.subr.bf16.mxu0 0
        %1448 = vmatpush1.bf16.msra.mxu0 0
        %1449 = vmatprep.mubr.bf16.mxu0 0
        %1450 = vmatmul.mubr.bf16.gmra.mrb[0].mxu0 %v1406
        %v1451 = vpop.f32.mrb[0].mxu0
        %v1452 = vadd.f32 0.0, %v1451
        %v1453 = vpop.f32.mrb[0].mxu0
        %v1454 = vadd.f32 0.0, %v1453
        %v1455 = vpop.f32.mrb[0].mxu0
        %v1456 = vpop.f32.mrb[0].mxu0
        %1457 = vdwg.mxu0
        %1458 = vmatprep.subr.bf16.mxu0 0
        %1459 = vmatpush1.bf16.msra.mxu0 %v1415
        %1460 = vmatprep.subr.bf16.mxu0 0
        %1461 = vmatpush1.bf16.msra.mxu0 0
        %1462 = vmatprep.subr.bf16.mxu0 0
        %1463 = vmatpush1.bf16.msra.mxu0 0
        %1464 = vmatprep.subr.bf16.mxu0 0
        %1465 = vmatpush1.bf16.msra.mxu0 0
        %1466 = vmatprep.subr.bf16.mxu0 0
        %1467 = vmatpush1.bf16.msra.mxu0 0
        %1468 = vmatprep.subr.bf16.mxu0 0
        %1469 = vmatpush1.bf16.msra.mxu0 0
        %1470 = vmatprep.subr.bf16.mxu0 0
        %1471 = vmatpush1.bf16.msra.mxu0 0
        %1472 = vmatprep.subr.bf16.mxu0 0
        %1473 = vmatpush1.bf16.msra.mxu0 0
        %1474 = vmatprep.subr.bf16.mxu0 0
        %1475 = vmatpush1.bf16.msra.mxu0 0
        %1476 = vmatprep.subr.bf16.mxu0 0
        %1477 = vmatpush1.bf16.msra.mxu0 0
        %1478 = vmatprep.subr.bf16.mxu0 0
        %1479 = vmatpush1.bf16.msra.mxu0 0
        %1480 = vmatprep.subr.bf16.mxu0 0
        %1481 = vmatpush1.bf16.msra.mxu0 0
        %1482 = vmatprep.subr.bf16.mxu0 0
        %1483 = vmatpush1.bf16.msra.mxu0 0
        %1484 = vmatprep.subr.bf16.mxu0 0
        %1485 = vmatpush1.bf16.msra.mxu0 0
        %1486 = vmatprep.subr.bf16.mxu0 0
        %1487 = vmatpush1.bf16.msra.mxu0 0
        %1488 = vmatprep.subr.bf16.mxu0 0
        %1489 = vmatpush1.bf16.msra.mxu0 0
        %1490 = vmatprep.mubr.bf16.mxu0 0
        %1491 = vmatmul.mubr.bf16.gmra.mrb[0].mxu0 %v1406
        %v1492 = vpop.f32.mrb[0].mxu0
        %v1493 = vadd.f32 0.0, %v1492
        %v1494 = vpop.f32.mrb[0].mxu0
        %v1495 = vpop.f32.mrb[0].mxu0
        %v1496 = vpop.f32.mrb[0].mxu0
        %1497 = vdwg.mxu0
        %v1498 = vadd.f32 %v1369, %v1452
        %v1499 = vadd.f32 %v1370, %v1454
        %v1500 = vadd.f32 %v1371, %v1493
        %v1501 = vld [vmem:[%s3] sm:$0xff]
        %1503 = vset.pattern.permute.xlu0 0
        %1504 = vperm.xlu0 %1503, %v1501
        %v1505 = vpop.permute.xlu0 %1504
        %v1507 = vadd.f32 %v1498, %v1505
        %v1508 = vadd.f32 %v1499, %v1505
        %v1509 = vadd.f32 %v1500, %v1505
        %v1510 = vmax.f32 %v1507, 0.0
        %v1511 = vmax.f32 %v1508, 0.0
        %v1512 = vmax.f32 %v1509, 0.0
        %v1513 = vld [vmem:[%s1] sm:$0x7]
        %v1515 = vlaneseq
        %v1516 = vshrl.u32 %v1515, 7
        %v1517 = vsub.s32 0, %v1516
        %v1518 = vrot.slane %v1513, %v1517
        %v1519 = vlaneseq
        %v1520 = vshrl.u32 %v1519, 7
        %v1521 = vsub.s32 1, %v1520
        %v1522 = vrot.slane %v1513, %v1521
        %v1523 = vlaneseq
        %v1524 = vshrl.u32 %v1523, 7
        %v1525 = vsub.s32 2, %v1524
        %v1526 = vrot.slane %v1513, %v1525
        %v1530 = vmul.f32 %v1510, %v1518
        %v1531 = vmul.f32 %v1511, %v1522
        %v1532 = vmul.f32 %v1512, %v1526
        %v1533 = vpack.c.bf16 %v1530, %v1530
        %v1534 = vpack.c.bf16 %v1531, %v1531
        %v1535 = vpack.c.bf16 %v1532, %v1532
        %v1536 = vld [vmem:[%s4] sm:$0xf]
        %v1537 = vld [vmem:[%s4 + $0x4] sm:$0xf]
        %s1538 = scalar_lea.vmem %s4, 8
        %v1539 = vld [vmem:[%s1538] sm:$0xf]
        %v1540 = vld [vmem:[%s1538 + $0x4] sm:$0xf]
        %v1543 = vunpack.c.l.b16 %v1539
        %v1544 = vunpack.c.l.b16 %v1540
        %v1545 = vpack.c.b16 %v1544, %v1543
        %1549 = vrot.lane.b32.xlu0 %v1533, 127
        %v1550 = vpop.permute.xlu0 %1549
        %1551 = vrot.lane.b32.xlu0 %v1534, 127
        %v1552 = vpop.permute.xlu0 %1551
        %1553 = vrot.lane.b32.xlu0 %v1535, 127
        %v1554 = vpop.permute.xlu0 %1553
        %v1555 = vsel %vm389, %v1550, %v1552
        %v1556 = vsel %vm389, %v1552, %v1554
        %vm1557 = vcmask 64512
        %v1559 = vsel %vm1557, %v1545, 0
        %vm1561 = vcmask 1043456
        %v1563 = vsel %vm1561, %v1555, 0
        %v1566 = vsel %vm1561, %v1556, 0
        %v1569 = vsel %vm1561, %v1554, 0
        %1571 = vmatprep.subr.bf16.mxu0 %v1566
        %1572 = vmatpush1.bf16.msra.mxu0 %v1563
        %1573 = vmatprep.subr.bf16.mxu0 0
        %1574 = vmatpush1.bf16.msra.mxu0 0
        %1575 = vmatprep.subr.bf16.mxu0 0
        %1576 = vmatpush1.bf16.msra.mxu0 0
        %1577 = vmatprep.subr.bf16.mxu0 0
        %1578 = vmatpush1.bf16.msra.mxu0 0
        %1579 = vmatprep.subr.bf16.mxu0 0
        %1580 = vmatpush1.bf16.msra.mxu0 0
        %1581 = vmatprep.subr.bf16.mxu0 0
        %1582 = vmatpush1.bf16.msra.mxu0 0
        %1583 = vmatprep.subr.bf16.mxu0 0
        %1584 = vmatpush1.bf16.msra.mxu0 0
        %1585 = vmatprep.subr.bf16.mxu0 0
        %1586 = vmatpush1.bf16.msra.mxu0 0
        %1587 = vmatprep.subr.bf16.mxu0 0
        %1588 = vmatpush1.bf16.msra.mxu0 0
        %1589 = vmatprep.subr.bf16.mxu0 0
        %1590 = vmatpush1.bf16.msra.mxu0 0
        %1591 = vmatprep.subr.bf16.mxu0 0
        %1592 = vmatpush1.bf16.msra.mxu0 0
        %1593 = vmatprep.subr.bf16.mxu0 0
        %1594 = vmatpush1.bf16.msra.mxu0 0
        %1595 = vmatprep.subr.bf16.mxu0 0
        %1596 = vmatpush1.bf16.msra.mxu0 0
        %1597 = vmatprep.subr.bf16.mxu0 0
        %1598 = vmatpush1.bf16.msra.mxu0 0
        %1599 = vmatprep.subr.bf16.mxu0 0
        %1600 = vmatpush1.bf16.msra.mxu0 0
        %1601 = vmatprep.subr.bf16.mxu0 0
        %1602 = vmatpush1.bf16.msra.mxu0 0
        %1603 = vmatprep.mubr.bf16.mxu0 0
        %1604 = vmatmul.mubr.bf16.gmra.mrb[0].mxu0 %v1559
        %v1605 = vpop.f32.mrb[0].mxu0
        %v1606 = vadd.f32 0.0, %v1605
        %v1607 = vpop.f32.mrb[0].mxu0
        %v1608 = vadd.f32 0.0, %v1607
        %v1609 = vpop.f32.mrb[0].mxu0
        %v1610 = vadd.f32 0.0, %v1609
        %v1611 = vpop.f32.mrb[0].mxu0
        %v1612 = vadd.f32 0.0, %v1611
        %1613 = vdwg.mxu0
        %1614 = vmatprep.subr.bf16.mxu0 0
        %1615 = vmatpush1.bf16.msra.mxu0 %v1569
        %1616 = vmatprep.subr.bf16.mxu0 0
        %1617 = vmatpush1.bf16.msra.mxu0 0
        %1618 = vmatprep.subr.bf16.mxu0 0
        %1619 = vmatpush1.bf16.msra.mxu0 0
        %1620 = vmatprep.subr.bf16.mxu0 0
        %1621 = vmatpush1.bf16.msra.mxu0 0
        %1622 = vmatprep.subr.bf16.mxu0 0
        %1623 = vmatpush1.bf16.msra.mxu0 0
        %1624 = vmatprep.subr.bf16.mxu0 0
        %1625 = vmatpush1.bf16.msra.mxu0 0
        %1626 = vmatprep.subr.bf16.mxu0 0
        %1627 = vmatpush1.bf16.msra.mxu0 0
        %1628 = vmatprep.subr.bf16.mxu0 0
        %1629 = vmatpush1.bf16.msra.mxu0 0
        %1630 = vmatprep.subr.bf16.mxu0 0
        %1631 = vmatpush1.bf16.msra.mxu0 0
        %1632 = vmatprep.subr.bf16.mxu0 0
        %1633 = vmatpush1.bf16.msra.mxu0 0
        %1634 = vmatprep.subr.bf16.mxu0 0
        %1635 = vmatpush1.bf16.msra.mxu0 0
        %1636 = vmatprep.subr.bf16.mxu0 0
        %1637 = vmatpush1.bf16.msra.mxu0 0
        %1638 = vmatprep.subr.bf16.mxu0 0
        %1639 = vmatpush1.bf16.msra.mxu0 0
        %1640 = vmatprep.subr.bf16.mxu0 0
        %1641 = vmatpush1.bf16.msra.mxu0 0
        %1642 = vmatprep.subr.bf16.mxu0 0
        %1643 = vmatpush1.bf16.msra.mxu0 0
        %1644 = vmatprep.subr.bf16.mxu0 0
        %1645 = vmatpush1.bf16.msra.mxu0 0
        %1646 = vmatprep.mubr.bf16.mxu0 0
        %1647 = vmatmul.mubr.bf16.gmra.mrb[0].mxu0 %v1559
        %v1648 = vpop.f32.mrb[0].mxu0
        %v1649 = vadd.f32 0.0, %v1648
        %v1650 = vpop.f32.mrb[0].mxu0
        %v1651 = vpop.f32.mrb[0].mxu0
        %v1652 = vadd.f32 0.0, %v1651
        %v1653 = vpop.f32.mrb[0].mxu0
        %1654 = vdwg.mxu0
        %v1657 = vunpack.c.l.b16 %v1536
        %v1658 = vunpack.c.l.b16 %v1537
        %v1659 = vpack.c.b16 %v1658, %v1657
        %v1661 = vsel %vm1557, %v1659, 0
        %v1664 = vsel %vm1561, %v1533, 0
        %v1667 = vsel %vm1561, %v1534, 0
        %v1670 = vsel %vm1561, %v1535, 0
        %1672 = vmatprep.subr.bf16.mxu0 %v1667
        %1673 = vmatpush1.bf16.msra.mxu0 %v1664
        %1674 = vmatprep.subr.bf16.mxu0 0
        %1675 = vmatpush1.bf16.msra.mxu0 0
        %1676 = vmatprep.subr.bf16.mxu0 0
        %1677 = vmatpush1.bf16.msra.mxu0 0
        %1678 = vmatprep.subr.bf16.mxu0 0
        %1679 = vmatpush1.bf16.msra.mxu0 0
        %1680 = vmatprep.subr.bf16.mxu0 0
        %1681 = vmatpush1.bf16.msra.mxu0 0
        %1682 = vmatprep.subr.bf16.mxu0 0
        %1683 = vmatpush1.bf16.msra.mxu0 0
        %1684 = vmatprep.subr.bf16.mxu0 0
        %1685 = vmatpush1.bf16.msra.mxu0 0
        %1686 = vmatprep.subr.bf16.mxu0 0
        %1687 = vmatpush1.bf16.msra.mxu0 0
        %1688 = vmatprep.subr.bf16.mxu0 0
        %1689 = vmatpush1.bf16.msra.mxu0 0
        %1690 = vmatprep.subr.bf16.mxu0 0
        %1691 = vmatpush1.bf16.msra.mxu0 0
        %1692 = vmatprep.subr.bf16.mxu0 0
        %1693 = vmatpush1.bf16.msra.mxu0 0
        %1694 = vmatprep.subr.bf16.mxu0 0
        %1695 = vmatpush1.bf16.msra.mxu0 0
        %1696 = vmatprep.subr.bf16.mxu0 0
        %1697 = vmatpush1.bf16.msra.mxu0 0
        %1698 = vmatprep.subr.bf16.mxu0 0
        %1699 = vmatpush1.bf16.msra.mxu0 0
        %1700 = vmatprep.subr.bf16.mxu0 0
        %1701 = vmatpush1.bf16.msra.mxu0 0
        %1702 = vmatprep.subr.bf16.mxu0 0
        %1703 = vmatpush1.bf16.msra.mxu0 0
        %1704 = vmatprep.mubr.bf16.mxu0 0
        %1705 = vmatmul.mubr.bf16.gmra.mrb[0].mxu0 %v1661
        %v1706 = vpop.f32.mrb[0].mxu0
        %v1707 = vadd.f32 %v1606, %v1706
        %v1708 = vpop.f32.mrb[0].mxu0
        %v1709 = vadd.f32 %v1608, %v1708
        %v1710 = vpop.f32.mrb[0].mxu0
        %v1711 = vadd.f32 %v1610, %v1710
        %v1712 = vpop.f32.mrb[0].mxu0
        %v1713 = vadd.f32 %v1612, %v1712
        %1714 = vdwg.mxu0
        %1715 = vmatprep.subr.bf16.mxu0 0
        %1716 = vmatpush1.bf16.msra.mxu0 %v1670
        %1717 = vmatprep.subr.bf16.mxu0 0
        %1718 = vmatpush1.bf16.msra.mxu0 0
        %1719 = vmatprep.subr.bf16.mxu0 0
        %1720 = vmatpush1.bf16.msra.mxu0 0
        %1721 = vmatprep.subr.bf16.mxu0 0
        %1722 = vmatpush1.bf16.msra.mxu0 0
        %1723 = vmatprep.subr.bf16.mxu0 0
        %1724 = vmatpush1.bf16.msra.mxu0 0
        %1725 = vmatprep.subr.bf16.mxu0 0
        %1726 = vmatpush1.bf16.msra.mxu0 0
        %1727 = vmatprep.subr.bf16.mxu0 0
        %1728 = vmatpush1.bf16.msra.mxu0 0
        %1729 = vmatprep.subr.bf16.mxu0 0
        %1730 = vmatpush1.bf16.msra.mxu0 0
        %1731 = vmatprep.subr.bf16.mxu0 0
        %1732 = vmatpush1.bf16.msra.mxu0 0
        %1733 = vmatprep.subr.bf16.mxu0 0
        %1734 = vmatpush1.bf16.msra.mxu0 0
        %1735 = vmatprep.subr.bf16.mxu0 0
        %1736 = vmatpush1.bf16.msra.mxu0 0
        %1737 = vmatprep.subr.bf16.mxu0 0
        %1738 = vmatpush1.bf16.msra.mxu0 0
        %1739 = vmatprep.subr.bf16.mxu0 0
        %1740 = vmatpush1.bf16.msra.mxu0 0
        %1741 = vmatprep.subr.bf16.mxu0 0
        %1742 = vmatpush1.bf16.msra.mxu0 0
        %1743 = vmatprep.subr.bf16.mxu0 0
        %1744 = vmatpush1.bf16.msra.mxu0 0
        %1745 = vmatprep.subr.bf16.mxu0 0
        %1746 = vmatpush1.bf16.msra.mxu0 0
        %1747 = vmatprep.mubr.bf16.mxu0 0
        %1748 = vmatmul.mubr.bf16.gmra.mrb[0].mxu0 %v1661
        %v1749 = vpop.f32.mrb[0].mxu0
        %v1750 = vadd.f32 %v1649, %v1749
        %v1751 = vpop.f32.mrb[0].mxu0
        %v1752 = vpop.f32.mrb[0].mxu0
        %v1753 = vadd.f32 %v1652, %v1752
        %v1754 = vpop.f32.mrb[0].mxu0
        %1755 = vdwg.mxu0
        %s1756 = scalar_lea.vmem %s4, 16
        %v1757 = vld [vmem:[%s1756] sm:$0xf]
        %v1758 = vld [vmem:[%s1756 + $0x4] sm:$0xf]
        %v1761 = vunpack.c.l.b16 %v1757
        %v1762 = vunpack.c.l.b16 %v1758
        %v1763 = vpack.c.b16 %v1762, %v1761
        %1764 = vrot.lane.b32.xlu0 %v1533, 126
        %v1765 = vpop.permute.xlu0 %1764
        %1766 = vrot.lane.b32.xlu0 %v1534, 126
        %v1767 = vpop.permute.xlu0 %1766
        %1768 = vrot.lane.b32.xlu0 %v1535, 126
        %v1769 = vpop.permute.xlu0 %1768
        %v1770 = vsel %vm627, %v1765, %v1767
        %v1771 = vsel %vm627, %v1767, %v1769
        %v1773 = vsel %vm1557, %v1763, 0
        %v1776 = vsel %vm1561, %v1770, 0
        %v1779 = vsel %vm1561, %v1771, 0
        %v1782 = vsel %vm1561, %v1769, 0
        %1784 = vmatprep.subr.bf16.mxu0 %v1779
        %1785 = vmatpush1.bf16.msra.mxu0 %v1776
        %1786 = vmatprep.subr.bf16.mxu0 0
        %1787 = vmatpush1.bf16.msra.mxu0 0
        %1788 = vmatprep.subr.bf16.mxu0 0
        %1789 = vmatpush1.bf16.msra.mxu0 0
        %1790 = vmatprep.subr.bf16.mxu0 0
        %1791 = vmatpush1.bf16.msra.mxu0 0
        %1792 = vmatprep.subr.bf16.mxu0 0
        %1793 = vmatpush1.bf16.msra.mxu0 0
        %1794 = vmatprep.subr.bf16.mxu0 0
        %1795 = vmatpush1.bf16.msra.mxu0 0
        %1796 = vmatprep.subr.bf16.mxu0 0
        %1797 = vmatpush1.bf16.msra.mxu0 0
        %1798 = vmatprep.subr.bf16.mxu0 0
        %1799 = vmatpush1.bf16.msra.mxu0 0
        %1800 = vmatprep.subr.bf16.mxu0 0
        %1801 = vmatpush1.bf16.msra.mxu0 0
        %1802 = vmatprep.subr.bf16.mxu0 0
        %1803 = vmatpush1.bf16.msra.mxu0 0
        %1804 = vmatprep.subr.bf16.mxu0 0
        %1805 = vmatpush1.bf16.msra.mxu0 0
        %1806 = vmatprep.subr.bf16.mxu0 0
        %1807 = vmatpush1.bf16.msra.mxu0 0
        %1808 = vmatprep.subr.bf16.mxu0 0
        %1809 = vmatpush1.bf16.msra.mxu0 0
        %1810 = vmatprep.subr.bf16.mxu0 0
        %1811 = vmatpush1.bf16.msra.mxu0 0
        %1812 = vmatprep.subr.bf16.mxu0 0
        %1813 = vmatpush1.bf16.msra.mxu0 0
        %1814 = vmatprep.subr.bf16.mxu0 0
        %1815 = vmatpush1.bf16.msra.mxu0 0
        %1816 = vmatprep.mubr.bf16.mxu0 0
        %1817 = vmatmul.mubr.bf16.gmra.mrb[0].mxu0 %v1773
        %v1818 = vpop.f32.mrb[0].mxu0
        %v1819 = vadd.f32 0.0, %v1818
        %v1820 = vpop.f32.mrb[0].mxu0
        %v1821 = vadd.f32 0.0, %v1820
        %v1822 = vpop.f32.mrb[0].mxu0
        %v1823 = vadd.f32 0.0, %v1822
        %v1824 = vpop.f32.mrb[0].mxu0
        %v1825 = vadd.f32 0.0, %v1824
        %1826 = vdwg.mxu0
        %1827 = vmatprep.subr.bf16.mxu0 0
        %1828 = vmatpush1.bf16.msra.mxu0 %v1782
        %1829 = vmatprep.subr.bf16.mxu0 0
        %1830 = vmatpush1.bf16.msra.mxu0 0
        %1831 = vmatprep.subr.bf16.mxu0 0
        %1832 = vmatpush1.bf16.msra.mxu0 0
        %1833 = vmatprep.subr.bf16.mxu0 0
        %1834 = vmatpush1.bf16.msra.mxu0 0
        %1835 = vmatprep.subr.bf16.mxu0 0
        %1836 = vmatpush1.bf16.msra.mxu0 0
        %1837 = vmatprep.subr.bf16.mxu0 0
        %1838 = vmatpush1.bf16.msra.mxu0 0
        %1839 = vmatprep.subr.bf16.mxu0 0
        %1840 = vmatpush1.bf16.msra.mxu0 0
        %1841 = vmatprep.subr.bf16.mxu0 0
        %1842 = vmatpush1.bf16.msra.mxu0 0
        %1843 = vmatprep.subr.bf16.mxu0 0
        %1844 = vmatpush1.bf16.msra.mxu0 0
        %1845 = vmatprep.subr.bf16.mxu0 0
        %1846 = vmatpush1.bf16.msra.mxu0 0
        %1847 = vmatprep.subr.bf16.mxu0 0
        %1848 = vmatpush1.bf16.msra.mxu0 0
        %1849 = vmatprep.subr.bf16.mxu0 0
        %1850 = vmatpush1.bf16.msra.mxu0 0
        %1851 = vmatprep.subr.bf16.mxu0 0
        %1852 = vmatpush1.bf16.msra.mxu0 0
        %1853 = vmatprep.subr.bf16.mxu0 0
        %1854 = vmatpush1.bf16.msra.mxu0 0
        %1855 = vmatprep.subr.bf16.mxu0 0
        %1856 = vmatpush1.bf16.msra.mxu0 0
        %1857 = vmatprep.subr.bf16.mxu0 0
        %1858 = vmatpush1.bf16.msra.mxu0 0
        %1859 = vmatprep.mubr.bf16.mxu0 0
        %1860 = vmatmul.mubr.bf16.gmra.mrb[0].mxu0 %v1773
        %v1861 = vpop.f32.mrb[0].mxu0
        %v1862 = vadd.f32 0.0, %v1861
        %v1863 = vpop.f32.mrb[0].mxu0
        %v1864 = vpop.f32.mrb[0].mxu0
        %v1865 = vadd.f32 0.0, %v1864
        %v1866 = vpop.f32.mrb[0].mxu0
        %1867 = vdwg.mxu0
        %v1868 = vadd.f32 %v1707, %v1819
        %v1869 = vadd.f32 %v1709, %v1821
        %v1870 = vadd.f32 %v1750, %v1862
        %v1871 = vadd.f32 %v1711, %v1823
        %v1872 = vadd.f32 %v1713, %v1825
        %v1873 = vadd.f32 %v1753, %v1865
        %s1874 = scalar_lea.vmem %s4, 24
        %v1875 = vld [vmem:[%s1874] sm:$0xf]
        %v1876 = vld [vmem:[%s1874 + $0x4] sm:$0xf]
        %v1879 = vunpack.c.l.b16 %v1875
        %v1880 = vunpack.c.l.b16 %v1876
        %v1881 = vpack.c.b16 %v1880, %v1879
        %1882 = vrot.lane.b32.xlu0 %v1533, 110
        %v1883 = vpop.permute.xlu0 %1882
        %1884 = vrot.lane.b32.xlu0 %v1534, 110
        %v1885 = vpop.permute.xlu0 %1884
        %1886 = vrot.lane.b32.xlu0 %v1535, 110
        %v1887 = vpop.permute.xlu0 %1886
        %v1888 = vsel %vm756, %v1883, %v1885
        %v1889 = vsel %vm756, %v1885, %v1887
        %v1891 = vsel %vm1557, %v1881, 0
        %v1894 = vsel %vm1561, %v1888, 0
        %v1897 = vsel %vm1561, %v1889, 0
        %v1900 = vsel %vm1561, %v1887, 0
        %1902 = vmatprep.subr.bf16.mxu0 %v1897
        %1903 = vmatpush1.bf16.msra.mxu0 %v1894
        %1904 = vmatprep.subr.bf16.mxu0 0
        %1905 = vmatpush1.bf16.msra.mxu0 0
        %1906 = vmatprep.subr.bf16.mxu0 0
        %1907 = vmatpush1.bf16.msra.mxu0 0
        %1908 = vmatprep.subr.bf16.mxu0 0
        %1909 = vmatpush1.bf16.msra.mxu0 0
        %1910 = vmatprep.subr.bf16.mxu0 0
        %1911 = vmatpush1.bf16.msra.mxu0 0
        %1912 = vmatprep.subr.bf16.mxu0 0
        %1913 = vmatpush1.bf16.msra.mxu0 0
        %1914 = vmatprep.subr.bf16.mxu0 0
        %1915 = vmatpush1.bf16.msra.mxu0 0
        %1916 = vmatprep.subr.bf16.mxu0 0
        %1917 = vmatpush1.bf16.msra.mxu0 0
        %1918 = vmatprep.subr.bf16.mxu0 0
        %1919 = vmatpush1.bf16.msra.mxu0 0
        %1920 = vmatprep.subr.bf16.mxu0 0
        %1921 = vmatpush1.bf16.msra.mxu0 0
        %1922 = vmatprep.subr.bf16.mxu0 0
        %1923 = vmatpush1.bf16.msra.mxu0 0
        %1924 = vmatprep.subr.bf16.mxu0 0
        %1925 = vmatpush1.bf16.msra.mxu0 0
        %1926 = vmatprep.subr.bf16.mxu0 0
        %1927 = vmatpush1.bf16.msra.mxu0 0
        %1928 = vmatprep.subr.bf16.mxu0 0
        %1929 = vmatpush1.bf16.msra.mxu0 0
        %1930 = vmatprep.subr.bf16.mxu0 0
        %1931 = vmatpush1.bf16.msra.mxu0 0
        %1932 = vmatprep.subr.bf16.mxu0 0
        %1933 = vmatpush1.bf16.msra.mxu0 0
        %1934 = vmatprep.mubr.bf16.mxu0 0
        %1935 = vmatmul.mubr.bf16.gmra.mrb[0].mxu0 %v1891
        %v1936 = vpop.f32.mrb[0].mxu0
        %v1937 = vadd.f32 0.0, %v1936
        %v1938 = vpop.f32.mrb[0].mxu0
        %v1939 = vadd.f32 0.0, %v1938
        %v1940 = vpop.f32.mrb[0].mxu0
        %v1941 = vadd.f32 0.0, %v1940
        %v1942 = vpop.f32.mrb[0].mxu0
        %v1943 = vadd.f32 0.0, %v1942
        %1944 = vdwg.mxu0
        %1945 = vmatprep.subr.bf16.mxu0 0
        %1946 = vmatpush1.bf16.msra.mxu0 %v1900
        %1947 = vmatprep.subr.bf16.mxu0 0
        %1948 = vmatpush1.bf16.msra.mxu0 0
        %1949 = vmatprep.subr.bf16.mxu0 0
        %1950 = vmatpush1.bf16.msra.mxu0 0
        %1951 = vmatprep.subr.bf16.mxu0 0
        %1952 = vmatpush1.bf16.msra.mxu0 0
        %1953 = vmatprep.subr.bf16.mxu0 0
        %1954 = vmatpush1.bf16.msra.mxu0 0
        %1955 = vmatprep.subr.bf16.mxu0 0
        %1956 = vmatpush1.bf16.msra.mxu0 0
        %1957 = vmatprep.subr.bf16.mxu0 0
        %1958 = vmatpush1.bf16.msra.mxu0 0
        %1959 = vmatprep.subr.bf16.mxu0 0
        %1960 = vmatpush1.bf16.msra.mxu0 0
        %1961 = vmatprep.subr.bf16.mxu0 0
        %1962 = vmatpush1.bf16.msra.mxu0 0
        %1963 = vmatprep.subr.bf16.mxu0 0
        %1964 = vmatpush1.bf16.msra.mxu0 0
        %1965 = vmatprep.subr.bf16.mxu0 0
        %1966 = vmatpush1.bf16.msra.mxu0 0
        %1967 = vmatprep.subr.bf16.mxu0 0
        %1968 = vmatpush1.bf16.msra.mxu0 0
        %1969 = vmatprep.subr.bf16.mxu0 0
        %1970 = vmatpush1.bf16.msra.mxu0 0
        %1971 = vmatprep.subr.bf16.mxu0 0
        %1972 = vmatpush1.bf16.msra.mxu0 0
        %1973 = vmatprep.subr.bf16.mxu0 0
        %1974 = vmatpush1.bf16.msra.mxu0 0
        %1975 = vmatprep.subr.bf16.mxu0 0
        %1976 = vmatpush1.bf16.msra.mxu0 0
        %1977 = vmatprep.mubr.bf16.mxu0 0
        %1978 = vmatmul.mubr.bf16.gmra.mrb[0].mxu0 %v1891
        %v1979 = vpop.f32.mrb[0].mxu0
        %v1980 = vadd.f32 0.0, %v1979
        %v1981 = vpop.f32.mrb[0].mxu0
        %v1982 = vpop.f32.mrb[0].mxu0
        %v1983 = vadd.f32 0.0, %v1982
        %v1984 = vpop.f32.mrb[0].mxu0
        %1985 = vdwg.mxu0
        %v1986 = vadd.f32 %v1868, %v1937
        %v1987 = vadd.f32 %v1869, %v1939
        %v1988 = vadd.f32 %v1870, %v1980
        %v1989 = vadd.f32 %v1871, %v1941
        %v1990 = vadd.f32 %v1872, %v1943
        %v1991 = vadd.f32 %v1873, %v1983
        %s1992 = scalar_lea.vmem %s4, 32
        %v1993 = vld [vmem:[%s1992] sm:$0xf]
        %v1994 = vld [vmem:[%s1992 + $0x4] sm:$0xf]
        %v1997 = vunpack.c.l.b16 %v1993
        %v1998 = vunpack.c.l.b16 %v1994
        %v1999 = vpack.c.b16 %v1998, %v1997
        %2000 = vrot.lane.b32.xlu0 %v1533, 109
        %v2001 = vpop.permute.xlu0 %2000
        %2002 = vrot.lane.b32.xlu0 %v1534, 109
        %v2003 = vpop.permute.xlu0 %2002
        %2004 = vrot.lane.b32.xlu0 %v1535, 109
        %v2005 = vpop.permute.xlu0 %2004
        %v2006 = vsel %vm885, %v2001, %v2003
        %v2007 = vsel %vm885, %v2003, %v2005
        %v2009 = vsel %vm1557, %v1999, 0
        %v2012 = vsel %vm1561, %v2006, 0
        %v2015 = vsel %vm1561, %v2007, 0
        %v2018 = vsel %vm1561, %v2005, 0
        %2020 = vmatprep.subr.bf16.mxu0 %v2015
        %2021 = vmatpush1.bf16.msra.mxu0 %v2012
        %2022 = vmatprep.subr.bf16.mxu0 0
        %2023 = vmatpush1.bf16.msra.mxu0 0
        %2024 = vmatprep.subr.bf16.mxu0 0
        %2025 = vmatpush1.bf16.msra.mxu0 0
        %2026 = vmatprep.subr.bf16.mxu0 0
        %2027 = vmatpush1.bf16.msra.mxu0 0
        %2028 = vmatprep.subr.bf16.mxu0 0
        %2029 = vmatpush1.bf16.msra.mxu0 0
        %2030 = vmatprep.subr.bf16.mxu0 0
        %2031 = vmatpush1.bf16.msra.mxu0 0
        %2032 = vmatprep.subr.bf16.mxu0 0
        %2033 = vmatpush1.bf16.msra.mxu0 0
        %2034 = vmatprep.subr.bf16.mxu0 0
        %2035 = vmatpush1.bf16.msra.mxu0 0
        %2036 = vmatprep.subr.bf16.mxu0 0
        %2037 = vmatpush1.bf16.msra.mxu0 0
        %2038 = vmatprep.subr.bf16.mxu0 0
        %2039 = vmatpush1.bf16.msra.mxu0 0
        %2040 = vmatprep.subr.bf16.mxu0 0
        %2041 = vmatpush1.bf16.msra.mxu0 0
        %2042 = vmatprep.subr.bf16.mxu0 0
        %2043 = vmatpush1.bf16.msra.mxu0 0
        %2044 = vmatprep.subr.bf16.mxu0 0
        %2045 = vmatpush1.bf16.msra.mxu0 0
        %2046 = vmatprep.subr.bf16.mxu0 0
        %2047 = vmatpush1.bf16.msra.mxu0 0
        %2048 = vmatprep.subr.bf16.mxu0 0
        %2049 = vmatpush1.bf16.msra.mxu0 0
        %2050 = vmatprep.subr.bf16.mxu0 0
        %2051 = vmatpush1.bf16.msra.mxu0 0
        %2052 = vmatprep.mubr.bf16.mxu0 0
        %2053 = vmatmul.mubr.bf16.gmra.mrb[0].mxu0 %v2009
        %v2054 = vpop.f32.mrb[0].mxu0
        %v2055 = vadd.f32 0.0, %v2054
        %v2056 = vpop.f32.mrb[0].mxu0
        %v2057 = vadd.f32 0.0, %v2056
        %v2058 = vpop.f32.mrb[0].mxu0
        %v2059 = vadd.f32 0.0, %v2058
        %v2060 = vpop.f32.mrb[0].mxu0
        %v2061 = vadd.f32 0.0, %v2060
        %2062 = vdwg.mxu0
        %2063 = vmatprep.subr.bf16.mxu0 0
        %2064 = vmatpush1.bf16.msra.mxu0 %v2018
        %2065 = vmatprep.subr.bf16.mxu0 0
        %2066 = vmatpush1.bf16.msra.mxu0 0
        %2067 = vmatprep.subr.bf16.mxu0 0
        %2068 = vmatpush1.bf16.msra.mxu0 0
        %2069 = vmatprep.subr.bf16.mxu0 0
        %2070 = vmatpush1.bf16.msra.mxu0 0
        %2071 = vmatprep.subr.bf16.mxu0 0
        %2072 = vmatpush1.bf16.msra.mxu0 0
        %2073 = vmatprep.subr.bf16.mxu0 0
        %2074 = vmatpush1.bf16.msra.mxu0 0
        %2075 = vmatprep.subr.bf16.mxu0 0
        %2076 = vmatpush1.bf16.msra.mxu0 0
        %2077 = vmatprep.subr.bf16.mxu0 0
        %2078 = vmatpush1.bf16.msra.mxu0 0
        %2079 = vmatprep.subr.bf16.mxu0 0
        %2080 = vmatpush1.bf16.msra.mxu0 0
        %2081 = vmatprep.subr.bf16.mxu0 0
        %2082 = vmatpush1.bf16.msra.mxu0 0
        %2083 = vmatprep.subr.bf16.mxu0 0
        %2084 = vmatpush1.bf16.msra.mxu0 0
        %2085 = vmatprep.subr.bf16.mxu0 0
        %2086 = vmatpush1.bf16.msra.mxu0 0
        %2087 = vmatprep.subr.bf16.mxu0 0
        %2088 = vmatpush1.bf16.msra.mxu0 0
        %2089 = vmatprep.subr.bf16.mxu0 0
        %2090 = vmatpush1.bf16.msra.mxu0 0
        %2091 = vmatprep.subr.bf16.mxu0 0
        %2092 = vmatpush1.bf16.msra.mxu0 0
        %2093 = vmatprep.subr.bf16.mxu0 0
        %2094 = vmatpush1.bf16.msra.mxu0 0
        %2095 = vmatprep.mubr.bf16.mxu0 0
        %2096 = vmatmul.mubr.bf16.gmra.mrb[0].mxu0 %v2009
        %v2097 = vpop.f32.mrb[0].mxu0
        %v2098 = vadd.f32 0.0, %v2097
        %v2099 = vpop.f32.mrb[0].mxu0
        %v2100 = vpop.f32.mrb[0].mxu0
        %v2101 = vadd.f32 0.0, %v2100
        %v2102 = vpop.f32.mrb[0].mxu0
        %2103 = vdwg.mxu0
        %v2104 = vadd.f32 %v1986, %v2055
        %v2105 = vadd.f32 %v1987, %v2057
        %v2106 = vadd.f32 %v1988, %v2098
        %v2107 = vadd.f32 %v1989, %v2059
        %v2108 = vadd.f32 %v1990, %v2061
        %v2109 = vadd.f32 %v1991, %v2101
        %s2110 = scalar_lea.vmem %s4, 40
        %v2111 = vld [vmem:[%s2110] sm:$0xf]
        %v2112 = vld [vmem:[%s2110 + $0x4] sm:$0xf]
        %v2115 = vunpack.c.l.b16 %v2111
        %v2116 = vunpack.c.l.b16 %v2112
        %v2117 = vpack.c.b16 %v2116, %v2115
        %2118 = vrot.lane.b32.xlu0 %v1533, 108
        %v2119 = vpop.permute.xlu0 %2118
        %2120 = vrot.lane.b32.xlu0 %v1534, 108
        %v2121 = vpop.permute.xlu0 %2120
        %2122 = vrot.lane.b32.xlu0 %v1535, 108
        %v2123 = vpop.permute.xlu0 %2122
        %v2124 = vsel %vm1014, %v2119, %v2121
        %v2125 = vsel %vm1014, %v2121, %v2123
        %v2127 = vsel %vm1557, %v2117, 0
        %v2130 = vsel %vm1561, %v2124, 0
        %v2133 = vsel %vm1561, %v2125, 0
        %v2136 = vsel %vm1561, %v2123, 0
        %2138 = vmatprep.subr.bf16.mxu0 %v2133
        %2139 = vmatpush1.bf16.msra.mxu0 %v2130
        %2140 = vmatprep.subr.bf16.mxu0 0
        %2141 = vmatpush1.bf16.msra.mxu0 0
        %2142 = vmatprep.subr.bf16.mxu0 0
        %2143 = vmatpush1.bf16.msra.mxu0 0
        %2144 = vmatprep.subr.bf16.mxu0 0
        %2145 = vmatpush1.bf16.msra.mxu0 0
        %2146 = vmatprep.subr.bf16.mxu0 0
        %2147 = vmatpush1.bf16.msra.mxu0 0
        %2148 = vmatprep.subr.bf16.mxu0 0
        %2149 = vmatpush1.bf16.msra.mxu0 0
        %2150 = vmatprep.subr.bf16.mxu0 0
        %2151 = vmatpush1.bf16.msra.mxu0 0
        %2152 = vmatprep.subr.bf16.mxu0 0
        %2153 = vmatpush1.bf16.msra.mxu0 0
        %2154 = vmatprep.subr.bf16.mxu0 0
        %2155 = vmatpush1.bf16.msra.mxu0 0
        %2156 = vmatprep.subr.bf16.mxu0 0
        %2157 = vmatpush1.bf16.msra.mxu0 0
        %2158 = vmatprep.subr.bf16.mxu0 0
        %2159 = vmatpush1.bf16.msra.mxu0 0
        %2160 = vmatprep.subr.bf16.mxu0 0
        %2161 = vmatpush1.bf16.msra.mxu0 0
        %2162 = vmatprep.subr.bf16.mxu0 0
        %2163 = vmatpush1.bf16.msra.mxu0 0
        %2164 = vmatprep.subr.bf16.mxu0 0
        %2165 = vmatpush1.bf16.msra.mxu0 0
        %2166 = vmatprep.subr.bf16.mxu0 0
        %2167 = vmatpush1.bf16.msra.mxu0 0
        %2168 = vmatprep.subr.bf16.mxu0 0
        %2169 = vmatpush1.bf16.msra.mxu0 0
        %2170 = vmatprep.mubr.bf16.mxu0 0
        %2171 = vmatmul.mubr.bf16.gmra.mrb[0].mxu0 %v2127
        %v2172 = vpop.f32.mrb[0].mxu0
        %v2173 = vadd.f32 0.0, %v2172
        %v2174 = vpop.f32.mrb[0].mxu0
        %v2175 = vadd.f32 0.0, %v2174
        %v2176 = vpop.f32.mrb[0].mxu0
        %v2177 = vadd.f32 0.0, %v2176
        %v2178 = vpop.f32.mrb[0].mxu0
        %v2179 = vadd.f32 0.0, %v2178
        %2180 = vdwg.mxu0
        %2181 = vmatprep.subr.bf16.mxu0 0
        %2182 = vmatpush1.bf16.msra.mxu0 %v2136
        %2183 = vmatprep.subr.bf16.mxu0 0
        %2184 = vmatpush1.bf16.msra.mxu0 0
        %2185 = vmatprep.subr.bf16.mxu0 0
        %2186 = vmatpush1.bf16.msra.mxu0 0
        %2187 = vmatprep.subr.bf16.mxu0 0
        %2188 = vmatpush1.bf16.msra.mxu0 0
        %2189 = vmatprep.subr.bf16.mxu0 0
        %2190 = vmatpush1.bf16.msra.mxu0 0
        %2191 = vmatprep.subr.bf16.mxu0 0
        %2192 = vmatpush1.bf16.msra.mxu0 0
        %2193 = vmatprep.subr.bf16.mxu0 0
        %2194 = vmatpush1.bf16.msra.mxu0 0
        %2195 = vmatprep.subr.bf16.mxu0 0
        %2196 = vmatpush1.bf16.msra.mxu0 0
        %2197 = vmatprep.subr.bf16.mxu0 0
        %2198 = vmatpush1.bf16.msra.mxu0 0
        %2199 = vmatprep.subr.bf16.mxu0 0
        %2200 = vmatpush1.bf16.msra.mxu0 0
        %2201 = vmatprep.subr.bf16.mxu0 0
        %2202 = vmatpush1.bf16.msra.mxu0 0
        %2203 = vmatprep.subr.bf16.mxu0 0
        %2204 = vmatpush1.bf16.msra.mxu0 0
        %2205 = vmatprep.subr.bf16.mxu0 0
        %2206 = vmatpush1.bf16.msra.mxu0 0
        %2207 = vmatprep.subr.bf16.mxu0 0
        %2208 = vmatpush1.bf16.msra.mxu0 0
        %2209 = vmatprep.subr.bf16.mxu0 0
        %2210 = vmatpush1.bf16.msra.mxu0 0
        %2211 = vmatprep.subr.bf16.mxu0 0
        %2212 = vmatpush1.bf16.msra.mxu0 0
        %2213 = vmatprep.mubr.bf16.mxu0 0
        %2214 = vmatmul.mubr.bf16.gmra.mrb[0].mxu0 %v2127
        %v2215 = vpop.f32.mrb[0].mxu0
        %v2216 = vadd.f32 0.0, %v2215
        %v2217 = vpop.f32.mrb[0].mxu0
        %v2218 = vpop.f32.mrb[0].mxu0
        %v2219 = vadd.f32 0.0, %v2218
        %v2220 = vpop.f32.mrb[0].mxu0
        %2221 = vdwg.mxu0
        %v2222 = vadd.f32 %v2104, %v2173
        %v2223 = vadd.f32 %v2105, %v2175
        %v2224 = vadd.f32 %v2106, %v2216
        %v2225 = vadd.f32 %v2107, %v2177
        %v2226 = vadd.f32 %v2108, %v2179
        %v2227 = vadd.f32 %v2109, %v2219
        %s2228 = scalar_lea.vmem %s4, 48
        %v2229 = vld [vmem:[%s2228] sm:$0xf]
        %v2230 = vld [vmem:[%s2228 + $0x4] sm:$0xf]
        %v2233 = vunpack.c.l.b16 %v2229
        %v2234 = vunpack.c.l.b16 %v2230
        %v2235 = vpack.c.b16 %v2234, %v2233
        %2236 = vrot.lane.b32.xlu0 %v1533, 92
        %v2237 = vpop.permute.xlu0 %2236
        %2238 = vrot.lane.b32.xlu0 %v1534, 92
        %v2239 = vpop.permute.xlu0 %2238
        %2240 = vrot.lane.b32.xlu0 %v1535, 92
        %v2241 = vpop.permute.xlu0 %2240
        %v2242 = vsel %vm1143, %v2237, %v2239
        %v2243 = vsel %vm1143, %v2239, %v2241
        %v2245 = vsel %vm1557, %v2235, 0
        %v2248 = vsel %vm1561, %v2242, 0
        %v2251 = vsel %vm1561, %v2243, 0
        %v2254 = vsel %vm1561, %v2241, 0
        %2256 = vmatprep.subr.bf16.mxu0 %v2251
        %2257 = vmatpush1.bf16.msra.mxu0 %v2248
        %2258 = vmatprep.subr.bf16.mxu0 0
        %2259 = vmatpush1.bf16.msra.mxu0 0
        %2260 = vmatprep.subr.bf16.mxu0 0
        %2261 = vmatpush1.bf16.msra.mxu0 0
        %2262 = vmatprep.subr.bf16.mxu0 0
        %2263 = vmatpush1.bf16.msra.mxu0 0
        %2264 = vmatprep.subr.bf16.mxu0 0
        %2265 = vmatpush1.bf16.msra.mxu0 0
        %2266 = vmatprep.subr.bf16.mxu0 0
        %2267 = vmatpush1.bf16.msra.mxu0 0
        %2268 = vmatprep.subr.bf16.mxu0 0
        %2269 = vmatpush1.bf16.msra.mxu0 0
        %2270 = vmatprep.subr.bf16.mxu0 0
        %2271 = vmatpush1.bf16.msra.mxu0 0
        %2272 = vmatprep.subr.bf16.mxu0 0
        %2273 = vmatpush1.bf16.msra.mxu0 0
        %2274 = vmatprep.subr.bf16.mxu0 0
        %2275 = vmatpush1.bf16.msra.mxu0 0
        %2276 = vmatprep.subr.bf16.mxu0 0
        %2277 = vmatpush1.bf16.msra.mxu0 0
        %2278 = vmatprep.subr.bf16.mxu0 0
        %2279 = vmatpush1.bf16.msra.mxu0 0
        %2280 = vmatprep.subr.bf16.mxu0 0
        %2281 = vmatpush1.bf16.msra.mxu0 0
        %2282 = vmatprep.subr.bf16.mxu0 0
        %2283 = vmatpush1.bf16.msra.mxu0 0
        %2284 = vmatprep.subr.bf16.mxu0 0
        %2285 = vmatpush1.bf16.msra.mxu0 0
        %2286 = vmatprep.subr.bf16.mxu0 0
        %2287 = vmatpush1.bf16.msra.mxu0 0
        %2288 = vmatprep.mubr.bf16.mxu0 0
        %2289 = vmatmul.mubr.bf16.gmra.mrb[0].mxu0 %v2245
        %v2290 = vpop.f32.mrb[0].mxu0
        %v2291 = vadd.f32 0.0, %v2290
        %v2292 = vpop.f32.mrb[0].mxu0
        %v2293 = vadd.f32 0.0, %v2292
        %v2294 = vpop.f32.mrb[0].mxu0
        %v2295 = vadd.f32 0.0, %v2294
        %v2296 = vpop.f32.mrb[0].mxu0
        %v2297 = vadd.f32 0.0, %v2296
        %2298 = vdwg.mxu0
        %2299 = vmatprep.subr.bf16.mxu0 0
        %2300 = vmatpush1.bf16.msra.mxu0 %v2254
        %2301 = vmatprep.subr.bf16.mxu0 0
        %2302 = vmatpush1.bf16.msra.mxu0 0
        %2303 = vmatprep.subr.bf16.mxu0 0
        %2304 = vmatpush1.bf16.msra.mxu0 0
        %2305 = vmatprep.subr.bf16.mxu0 0
        %2306 = vmatpush1.bf16.msra.mxu0 0
        %2307 = vmatprep.subr.bf16.mxu0 0
        %2308 = vmatpush1.bf16.msra.mxu0 0
        %2309 = vmatprep.subr.bf16.mxu0 0
        %2310 = vmatpush1.bf16.msra.mxu0 0
        %2311 = vmatprep.subr.bf16.mxu0 0
        %2312 = vmatpush1.bf16.msra.mxu0 0
        %2313 = vmatprep.subr.bf16.mxu0 0
        %2314 = vmatpush1.bf16.msra.mxu0 0
        %2315 = vmatprep.subr.bf16.mxu0 0
        %2316 = vmatpush1.bf16.msra.mxu0 0
        %2317 = vmatprep.subr.bf16.mxu0 0
        %2318 = vmatpush1.bf16.msra.mxu0 0
        %2319 = vmatprep.subr.bf16.mxu0 0
        %2320 = vmatpush1.bf16.msra.mxu0 0
        %2321 = vmatprep.subr.bf16.mxu0 0
        %2322 = vmatpush1.bf16.msra.mxu0 0
        %2323 = vmatprep.subr.bf16.mxu0 0
        %2324 = vmatpush1.bf16.msra.mxu0 0
        %2325 = vmatprep.subr.bf16.mxu0 0
        %2326 = vmatpush1.bf16.msra.mxu0 0
        %2327 = vmatprep.subr.bf16.mxu0 0
        %2328 = vmatpush1.bf16.msra.mxu0 0
        %2329 = vmatprep.subr.bf16.mxu0 0
        %2330 = vmatpush1.bf16.msra.mxu0 0
        %2331 = vmatprep.mubr.bf16.mxu0 0
        %2332 = vmatmul.mubr.bf16.gmra.mrb[0].mxu0 %v2245
        %v2333 = vpop.f32.mrb[0].mxu0
        %v2334 = vadd.f32 0.0, %v2333
        %v2335 = vpop.f32.mrb[0].mxu0
        %v2336 = vpop.f32.mrb[0].mxu0
        %v2337 = vadd.f32 0.0, %v2336
        %v2338 = vpop.f32.mrb[0].mxu0
        %2339 = vdwg.mxu0
        %v2340 = vadd.f32 %v2222, %v2291
        %v2341 = vadd.f32 %v2223, %v2293
        %v2342 = vadd.f32 %v2224, %v2334
        %v2343 = vadd.f32 %v2225, %v2295
        %v2344 = vadd.f32 %v2226, %v2297
        %v2345 = vadd.f32 %v2227, %v2337
        %s2346 = scalar_lea.vmem %s4, 56
        %v2347 = vld [vmem:[%s2346] sm:$0xf]
        %v2348 = vld [vmem:[%s2346 + $0x4] sm:$0xf]
        %v2351 = vunpack.c.l.b16 %v2347
        %v2352 = vunpack.c.l.b16 %v2348
        %v2353 = vpack.c.b16 %v2352, %v2351
        %2354 = vrot.lane.b32.xlu0 %v1533, 91
        %v2355 = vpop.permute.xlu0 %2354
        %2356 = vrot.lane.b32.xlu0 %v1534, 91
        %v2357 = vpop.permute.xlu0 %2356
        %2358 = vrot.lane.b32.xlu0 %v1535, 91
        %v2359 = vpop.permute.xlu0 %2358
        %v2360 = vsel %vm1272, %v2355, %v2357
        %v2361 = vsel %vm1272, %v2357, %v2359
        %v2363 = vsel %vm1557, %v2353, 0
        %v2366 = vsel %vm1561, %v2360, 0
        %v2369 = vsel %vm1561, %v2361, 0
        %v2372 = vsel %vm1561, %v2359, 0
        %2374 = vmatprep.subr.bf16.mxu0 %v2369
        %2375 = vmatpush1.bf16.msra.mxu0 %v2366
        %2376 = vmatprep.subr.bf16.mxu0 0
        %2377 = vmatpush1.bf16.msra.mxu0 0
        %2378 = vmatprep.subr.bf16.mxu0 0
        %2379 = vmatpush1.bf16.msra.mxu0 0
        %2380 = vmatprep.subr.bf16.mxu0 0
        %2381 = vmatpush1.bf16.msra.mxu0 0
        %2382 = vmatprep.subr.bf16.mxu0 0
        %2383 = vmatpush1.bf16.msra.mxu0 0
        %2384 = vmatprep.subr.bf16.mxu0 0
        %2385 = vmatpush1.bf16.msra.mxu0 0
        %2386 = vmatprep.subr.bf16.mxu0 0
        %2387 = vmatpush1.bf16.msra.mxu0 0
        %2388 = vmatprep.subr.bf16.mxu0 0
        %2389 = vmatpush1.bf16.msra.mxu0 0
        %2390 = vmatprep.subr.bf16.mxu0 0
        %2391 = vmatpush1.bf16.msra.mxu0 0
        %2392 = vmatprep.subr.bf16.mxu0 0
        %2393 = vmatpush1.bf16.msra.mxu0 0
        %2394 = vmatprep.subr.bf16.mxu0 0
        %2395 = vmatpush1.bf16.msra.mxu0 0
        %2396 = vmatprep.subr.bf16.mxu0 0
        %2397 = vmatpush1.bf16.msra.mxu0 0
        %2398 = vmatprep.subr.bf16.mxu0 0
        %2399 = vmatpush1.bf16.msra.mxu0 0
        %2400 = vmatprep.subr.bf16.mxu0 0
        %2401 = vmatpush1.bf16.msra.mxu0 0
        %2402 = vmatprep.subr.bf16.mxu0 0
        %2403 = vmatpush1.bf16.msra.mxu0 0
        %2404 = vmatprep.subr.bf16.mxu0 0
        %2405 = vmatpush1.bf16.msra.mxu0 0
        %2406 = vmatprep.mubr.bf16.mxu0 0
        %2407 = vmatmul.mubr.bf16.gmra.mrb[0].mxu0 %v2363
        %v2408 = vpop.f32.mrb[0].mxu0
        %v2409 = vadd.f32 0.0, %v2408
        %v2410 = vpop.f32.mrb[0].mxu0
        %v2411 = vadd.f32 0.0, %v2410
        %v2412 = vpop.f32.mrb[0].mxu0
        %v2413 = vadd.f32 0.0, %v2412
        %v2414 = vpop.f32.mrb[0].mxu0
        %v2415 = vadd.f32 0.0, %v2414
        %2416 = vdwg.mxu0
        %2417 = vmatprep.subr.bf16.mxu0 0
        %2418 = vmatpush1.bf16.msra.mxu0 %v2372
        %2419 = vmatprep.subr.bf16.mxu0 0
        %2420 = vmatpush1.bf16.msra.mxu0 0
        %2421 = vmatprep.subr.bf16.mxu0 0
        %2422 = vmatpush1.bf16.msra.mxu0 0
        %2423 = vmatprep.subr.bf16.mxu0 0
        %2424 = vmatpush1.bf16.msra.mxu0 0
        %2425 = vmatprep.subr.bf16.mxu0 0
        %2426 = vmatpush1.bf16.msra.mxu0 0
        %2427 = vmatprep.subr.bf16.mxu0 0
        %2428 = vmatpush1.bf16.msra.mxu0 0
        %2429 = vmatprep.subr.bf16.mxu0 0
        %2430 = vmatpush1.bf16.msra.mxu0 0
        %2431 = vmatprep.subr.bf16.mxu0 0
        %2432 = vmatpush1.bf16.msra.mxu0 0
        %2433 = vmatprep.subr.bf16.mxu0 0
        %2434 = vmatpush1.bf16.msra.mxu0 0
        %2435 = vmatprep.subr.bf16.mxu0 0
        %2436 = vmatpush1.bf16.msra.mxu0 0
        %2437 = vmatprep.subr.bf16.mxu0 0
        %2438 = vmatpush1.bf16.msra.mxu0 0
        %2439 = vmatprep.subr.bf16.mxu0 0
        %2440 = vmatpush1.bf16.msra.mxu0 0
        %2441 = vmatprep.subr.bf16.mxu0 0
        %2442 = vmatpush1.bf16.msra.mxu0 0
        %2443 = vmatprep.subr.bf16.mxu0 0
        %2444 = vmatpush1.bf16.msra.mxu0 0
        %2445 = vmatprep.subr.bf16.mxu0 0
        %2446 = vmatpush1.bf16.msra.mxu0 0
        %2447 = vmatprep.subr.bf16.mxu0 0
        %2448 = vmatpush1.bf16.msra.mxu0 0
        %2449 = vmatprep.mubr.bf16.mxu0 0
        %2450 = vmatmul.mubr.bf16.gmra.mrb[0].mxu0 %v2363
        %v2451 = vpop.f32.mrb[0].mxu0
        %v2452 = vadd.f32 0.0, %v2451
        %v2453 = vpop.f32.mrb[0].mxu0
        %v2454 = vpop.f32.mrb[0].mxu0
        %v2455 = vadd.f32 0.0, %v2454
        %v2456 = vpop.f32.mrb[0].mxu0
        %2457 = vdwg.mxu0
        %v2458 = vadd.f32 %v2340, %v2409
        %v2459 = vadd.f32 %v2341, %v2411
        %v2460 = vadd.f32 %v2342, %v2452
        %v2461 = vadd.f32 %v2343, %v2413
        %v2462 = vadd.f32 %v2344, %v2415
        %v2463 = vadd.f32 %v2345, %v2455
        %s2464 = scalar_lea.vmem %s4, 64
        %v2465 = vld [vmem:[%s2464] sm:$0xf]
        %v2466 = vld [vmem:[%s2464 + $0x4] sm:$0xf]
        %v2469 = vunpack.c.l.b16 %v2465
        %v2470 = vunpack.c.l.b16 %v2466
        %v2471 = vpack.c.b16 %v2470, %v2469
        %2472 = vrot.lane.b32.xlu0 %v1533, 90
        %v2473 = vpop.permute.xlu0 %2472
        %2474 = vrot.lane.b32.xlu0 %v1534, 90
        %v2475 = vpop.permute.xlu0 %2474
        %2476 = vrot.lane.b32.xlu0 %v1535, 90
        %v2477 = vpop.permute.xlu0 %2476
        %v2478 = vsel %vm1401, %v2473, %v2475
        %v2479 = vsel %vm1401, %v2475, %v2477
        %v2481 = vsel %vm1557, %v2471, 0
        %v2484 = vsel %vm1561, %v2478, 0
        %v2487 = vsel %vm1561, %v2479, 0
        %v2490 = vsel %vm1561, %v2477, 0
        %2492 = vmatprep.subr.bf16.mxu0 %v2487
        %2493 = vmatpush1.bf16.msra.mxu0 %v2484
        %2494 = vmatprep.subr.bf16.mxu0 0
        %2495 = vmatpush1.bf16.msra.mxu0 0
        %2496 = vmatprep.subr.bf16.mxu0 0
        %2497 = vmatpush1.bf16.msra.mxu0 0
        %2498 = vmatprep.subr.bf16.mxu0 0
        %2499 = vmatpush1.bf16.msra.mxu0 0
        %2500 = vmatprep.subr.bf16.mxu0 0
        %2501 = vmatpush1.bf16.msra.mxu0 0
        %2502 = vmatprep.subr.bf16.mxu0 0
        %2503 = vmatpush1.bf16.msra.mxu0 0
        %2504 = vmatprep.subr.bf16.mxu0 0
        %2505 = vmatpush1.bf16.msra.mxu0 0
        %2506 = vmatprep.subr.bf16.mxu0 0
        %2507 = vmatpush1.bf16.msra.mxu0 0
        %2508 = vmatprep.subr.bf16.mxu0 0
        %2509 = vmatpush1.bf16.msra.mxu0 0
        %2510 = vmatprep.subr.bf16.mxu0 0
        %2511 = vmatpush1.bf16.msra.mxu0 0
        %2512 = vmatprep.subr.bf16.mxu0 0
        %2513 = vmatpush1.bf16.msra.mxu0 0
        %2514 = vmatprep.subr.bf16.mxu0 0
        %2515 = vmatpush1.bf16.msra.mxu0 0
        %2516 = vmatprep.subr.bf16.mxu0 0
        %2517 = vmatpush1.bf16.msra.mxu0 0
        %2518 = vmatprep.subr.bf16.mxu0 0
        %2519 = vmatpush1.bf16.msra.mxu0 0
        %2520 = vmatprep.subr.bf16.mxu0 0
        %2521 = vmatpush1.bf16.msra.mxu0 0
        %2522 = vmatprep.subr.bf16.mxu0 0
        %2523 = vmatpush1.bf16.msra.mxu0 0
        %2524 = vmatprep.mubr.bf16.mxu0 0
        %2525 = vmatmul.mubr.bf16.gmra.mrb[0].mxu0 %v2481
        %v2526 = vpop.f32.mrb[0].mxu0
        %v2527 = vadd.f32 0.0, %v2526
        %v2528 = vpop.f32.mrb[0].mxu0
        %v2529 = vadd.f32 0.0, %v2528
        %v2530 = vpop.f32.mrb[0].mxu0
        %v2531 = vadd.f32 0.0, %v2530
        %v2532 = vpop.f32.mrb[0].mxu0
        %v2533 = vadd.f32 0.0, %v2532
        %2534 = vdwg.mxu0
        %2535 = vmatprep.subr.bf16.mxu0 0
        %2536 = vmatpush1.bf16.msra.mxu0 %v2490
        %2537 = vmatprep.subr.bf16.mxu0 0
        %2538 = vmatpush1.bf16.msra.mxu0 0
        %2539 = vmatprep.subr.bf16.mxu0 0
        %2540 = vmatpush1.bf16.msra.mxu0 0
        %2541 = vmatprep.subr.bf16.mxu0 0
        %2542 = vmatpush1.bf16.msra.mxu0 0
        %2543 = vmatprep.subr.bf16.mxu0 0
        %2544 = vmatpush1.bf16.msra.mxu0 0
        %2545 = vmatprep.subr.bf16.mxu0 0
        %2546 = vmatpush1.bf16.msra.mxu0 0
        %2547 = vmatprep.subr.bf16.mxu0 0
        %2548 = vmatpush1.bf16.msra.mxu0 0
        %2549 = vmatprep.subr.bf16.mxu0 0
        %2550 = vmatpush1.bf16.msra.mxu0 0
        %2551 = vmatprep.subr.bf16.mxu0 0
        %2552 = vmatpush1.bf16.msra.mxu0 0
        %2553 = vmatprep.subr.bf16.mxu0 0
        %2554 = vmatpush1.bf16.msra.mxu0 0
        %2555 = vmatprep.subr.bf16.mxu0 0
        %2556 = vmatpush1.bf16.msra.mxu0 0
        %2557 = vmatprep.subr.bf16.mxu0 0
        %2558 = vmatpush1.bf16.msra.mxu0 0
        %2559 = vmatprep.subr.bf16.mxu0 0
        %2560 = vmatpush1.bf16.msra.mxu0 0
        %2561 = vmatprep.subr.bf16.mxu0 0
        %2562 = vmatpush1.bf16.msra.mxu0 0
        %2563 = vmatprep.subr.bf16.mxu0 0
        %2564 = vmatpush1.bf16.msra.mxu0 0
        %2565 = vmatprep.subr.bf16.mxu0 0
        %2566 = vmatpush1.bf16.msra.mxu0 0
        %2567 = vmatprep.mubr.bf16.mxu0 0
        %2568 = vmatmul.mubr.bf16.gmra.mrb[0].mxu0 %v2481
        %v2569 = vpop.f32.mrb[0].mxu0
        %v2570 = vadd.f32 0.0, %v2569
        %v2571 = vpop.f32.mrb[0].mxu0
        %v2572 = vpop.f32.mrb[0].mxu0
        %v2573 = vadd.f32 0.0, %v2572
        %v2574 = vpop.f32.mrb[0].mxu0
        %2575 = vdwg.mxu0
        %v2576 = vadd.f32 %v2458, %v2527
        %v2577 = vadd.f32 %v2459, %v2529
        %v2578 = vadd.f32 %v2460, %v2570
        %v2579 = vadd.f32 %v2461, %v2531
        %v2580 = vadd.f32 %v2462, %v2533
        %v2581 = vadd.f32 %v2463, %v2573
        %v2582 = vld [vmem:[%s5] sm:$0xff]
        %v2583 = vld [vmem:[%s5 + $0x8] sm:$0xff]
        %2585 = vset.pattern.permute.xlu0 0
        %2586 = vperm.xlu0 %2585, %v2582
        %v2587 = vpop.permute.xlu0 %2586
        %2590 = vset.pattern.permute.xlu0 0
        %2591 = vperm.xlu0 %2590, %v2583
        %v2592 = vpop.permute.xlu0 %2591
        %v2594 = vadd.f32 %v2576, %v2587
        %v2595 = vadd.f32 %v2577, %v2587
        %v2596 = vadd.f32 %v2578, %v2587
        %v2597 = vadd.f32 %v2579, %v2592
        %v2598 = vadd.f32 %v2580, %v2592
        %v2599 = vadd.f32 %v2581, %v2592
        %v2600 = vmax.f32 %v2594, 0.0
        %v2601 = vmax.f32 %v2595, 0.0
        %v2602 = vmax.f32 %v2596, 0.0
        %v2603 = vmax.f32 %v2597, 0.0
        %v2604 = vmax.f32 %v2598, 0.0
        %v2605 = vmax.f32 %v2599, 0.0
        %v2606 = vpack.c.bf16 %v2603, %v2600
        %v2607 = vpack.c.bf16 %v2604, %v2601
        %v2608 = vpack.c.bf16 %v2605, %v2602
        %v2609 = vld [vmem:[%s6] sm:$0xf]
        %v2610 = vld [vmem:[%s6 + $0x4] sm:$0xf]
        %v2611 = vld [vmem:[%s6 + $0x8] sm:$0xf]
        %v2612 = vld [vmem:[%s6 + $0xc] sm:$0xf]
        %v2613 = vld [vmem:[%s6 + $0x10] sm:$0xf]
        %v2614 = vld [vmem:[%s6 + $0x14] sm:$0xf]
        %v2615 = vld [vmem:[%s6 + $0x18] sm:$0xf]
        %v2616 = vld [vmem:[%s6 + $0x1c] sm:$0xf]
        %v2617 = vld [vmem:[%s6 + $0x20] sm:$0xf]
        %v2618 = vld [vmem:[%s6 + $0x24] sm:$0xf]
        %v2619 = vld [vmem:[%s6 + $0x28] sm:$0xf]
        %v2620 = vld [vmem:[%s6 + $0x2c] sm:$0xf]
        %v2621 = vld [vmem:[%s6 + $0x30] sm:$0xf]
        %v2622 = vld [vmem:[%s6 + $0x34] sm:$0xf]
        %v2623 = vld [vmem:[%s6 + $0x38] sm:$0xf]
        %v2624 = vld [vmem:[%s6 + $0x3c] sm:$0xf]
        %v2625 = vld [vmem:[%s6 + $0x40] sm:$0xf]
        %v2626 = vld [vmem:[%s6 + $0x44] sm:$0xf]
        %v2627 = vld [vmem:[%s6 + $0x48] sm:$0xf]
        %v2628 = vld [vmem:[%s6 + $0x4c] sm:$0xf]
        %v2629 = vld [vmem:[%s6 + $0x50] sm:$0xf]
        %v2630 = vld [vmem:[%s6 + $0x54] sm:$0xf]
        %v2631 = vld [vmem:[%s6 + $0x58] sm:$0xf]
        %v2632 = vld [vmem:[%s6 + $0x5c] sm:$0xf]
        %v2633 = vld [vmem:[%s6 + $0x60] sm:$0xf]
        %v2634 = vld [vmem:[%s6 + $0x64] sm:$0xf]
        %v2635 = vld [vmem:[%s6 + $0x68] sm:$0xf]
        %v2636 = vld [vmem:[%s6 + $0x6c] sm:$0xf]
        %v2637 = vld [vmem:[%s6 + $0x70] sm:$0xf]
        %v2638 = vld [vmem:[%s6 + $0x74] sm:$0xf]
        %v2639 = vld [vmem:[%s6 + $0x78] sm:$0xf]
        %v2640 = vld [vmem:[%s6 + $0x7c] sm:$0xf]
        %v2641 = vld [vmem:[%s6 + $0x80] sm:$0xf]
        %v2642 = vld [vmem:[%s6 + $0x84] sm:$0xf]
        %v2643 = vld [vmem:[%s6 + $0x88] sm:$0xf]
        %v2644 = vld [vmem:[%s6 + $0x8c] sm:$0xf]
        %s2645 = scalar_lea.vmem %s6, 144
        %v2646 = vld [vmem:[%s2645] sm:$0xf]
        %v2647 = vld [vmem:[%s2645 + $0x4] sm:$0xf]
        %v2648 = vld [vmem:[%s2645 + $0x8] sm:$0xf]
        %v2649 = vld [vmem:[%s2645 + $0xc] sm:$0xf]
        %v2650 = vld [vmem:[%s2645 + $0x10] sm:$0xf]
        %v2651 = vld [vmem:[%s2645 + $0x14] sm:$0xf]
        %v2652 = vld [vmem:[%s2645 + $0x18] sm:$0xf]
        %v2653 = vld [vmem:[%s2645 + $0x1c] sm:$0xf]
        %v2654 = vld [vmem:[%s2645 + $0x20] sm:$0xf]
        %v2655 = vld [vmem:[%s2645 + $0x24] sm:$0xf]
        %v2656 = vld [vmem:[%s2645 + $0x28] sm:$0xf]
        %v2657 = vld [vmem:[%s2645 + $0x2c] sm:$0xf]
        %v2658 = vld [vmem:[%s2645 + $0x30] sm:$0xf]
        %v2659 = vld [vmem:[%s2645 + $0x34] sm:$0xf]
        %v2660 = vld [vmem:[%s2645 + $0x38] sm:$0xf]
        %v2661 = vld [vmem:[%s2645 + $0x3c] sm:$0xf]
        %v2662 = vld [vmem:[%s2645 + $0x40] sm:$0xf]
        %v2663 = vld [vmem:[%s2645 + $0x44] sm:$0xf]
        %v2664 = vld [vmem:[%s2645 + $0x48] sm:$0xf]
        %v2665 = vld [vmem:[%s2645 + $0x4c] sm:$0xf]
        %v2666 = vld [vmem:[%s2645 + $0x50] sm:$0xf]
        %v2667 = vld [vmem:[%s2645 + $0x54] sm:$0xf]
        %v2668 = vld [vmem:[%s2645 + $0x58] sm:$0xf]
        %v2669 = vld [vmem:[%s2645 + $0x5c] sm:$0xf]
        %v2670 = vld [vmem:[%s2645 + $0x60] sm:$0xf]
        %v2671 = vld [vmem:[%s2645 + $0x64] sm:$0xf]
        %v2672 = vld [vmem:[%s2645 + $0x68] sm:$0xf]
        %v2673 = vld [vmem:[%s2645 + $0x6c] sm:$0xf]
        %v2674 = vld [vmem:[%s2645 + $0x70] sm:$0xf]
        %v2675 = vld [vmem:[%s2645 + $0x74] sm:$0xf]
        %v2676 = vld [vmem:[%s2645 + $0x78] sm:$0xf]
        %v2677 = vld [vmem:[%s2645 + $0x7c] sm:$0xf]
        %v2678 = vld [vmem:[%s2645 + $0x80] sm:$0xf]
        %v2679 = vld [vmem:[%s2645 + $0x84] sm:$0xf]
        %v2680 = vld [vmem:[%s2645 + $0x88] sm:$0xf]
        %v2681 = vld [vmem:[%s2645 + $0x8c] sm:$0xf]
        %v2683 = vshrl.u32 %v2606, 16
        %v2686 = vshrl.u32 %v2607, 16
        %v2689 = vshrl.u32 %v2608, 16
        %v2729 = vunpack.c.l.b16 %v2646
        %v2730 = vunpack.c.l.b16 %v2647
        %v2731 = vunpack.c.l.b16 %v2648
        %v2732 = vunpack.c.l.b16 %v2649
        %v2733 = vunpack.c.l.b16 %v2650
        %v2734 = vunpack.c.l.b16 %v2651
        %v2735 = vunpack.c.l.b16 %v2652
        %v2736 = vunpack.c.l.b16 %v2653
        %v2737 = vunpack.c.l.b16 %v2654
        %v2738 = vunpack.c.l.b16 %v2655
        %v2739 = vunpack.c.l.b16 %v2656
        %v2740 = vunpack.c.l.b16 %v2657
        %v2741 = vunpack.c.l.b16 %v2658
        %v2742 = vunpack.c.l.b16 %v2659
        %v2743 = vunpack.c.l.b16 %v2660
        %v2744 = vunpack.c.l.b16 %v2661
        %v2745 = vunpack.c.l.b16 %v2662
        %v2746 = vunpack.c.l.b16 %v2663
        %v2747 = vunpack.c.l.b16 %v2664
        %v2748 = vunpack.c.l.b16 %v2665
        %v2749 = vunpack.c.l.b16 %v2666
        %v2750 = vunpack.c.l.b16 %v2667
        %v2751 = vunpack.c.l.b16 %v2668
        %v2752 = vunpack.c.l.b16 %v2669
        %v2753 = vunpack.c.l.b16 %v2670
        %v2754 = vunpack.c.l.b16 %v2671
        %v2755 = vunpack.c.l.b16 %v2672
        %v2756 = vunpack.c.l.b16 %v2673
        %v2757 = vunpack.c.l.b16 %v2674
        %v2758 = vunpack.c.l.b16 %v2675
        %v2759 = vunpack.c.l.b16 %v2676
        %v2760 = vunpack.c.l.b16 %v2677
        %v2761 = vunpack.c.l.b16 %v2678
        %v2762 = vunpack.c.l.b16 %v2679
        %v2763 = vunpack.c.l.b16 %v2680
        %v2764 = vunpack.c.l.b16 %v2681
        %v2765 = vpack.c.b16 %v2730, %v2729
        %v2766 = vpack.c.b16 %v2732, %v2731
        %v2767 = vpack.c.b16 %v2734, %v2733
        %v2768 = vpack.c.b16 %v2736, %v2735
        %v2769 = vpack.c.b16 %v2738, %v2737
        %v2770 = vpack.c.b16 %v2740, %v2739
        %v2771 = vpack.c.b16 %v2742, %v2741
        %v2772 = vpack.c.b16 %v2744, %v2743
        %v2773 = vpack.c.b16 %v2746, %v2745
        %v2774 = vpack.c.b16 %v2748, %v2747
        %v2775 = vpack.c.b16 %v2750, %v2749
        %v2776 = vpack.c.b16 %v2752, %v2751
        %v2777 = vpack.c.b16 %v2754, %v2753
        %v2778 = vpack.c.b16 %v2756, %v2755
        %v2779 = vpack.c.b16 %v2758, %v2757
        %v2780 = vpack.c.b16 %v2760, %v2759
        %v2781 = vpack.c.b16 %v2762, %v2761
        %v2782 = vpack.c.b16 %v2764, %v2763
        %vm2801 = vcmask 261120
        %v2803 = vsel %vm2801, %v2689, 0
        %2805 = vmatprep.subr.bf16.mxu0 0
        %2806 = vmatpush1.bf16.msra.mxu0 %v2765
        %2807 = vmatprep.subr.bf16.mxu0 0
        %2808 = vmatpush1.bf16.msra.mxu0 %v2766
        %2809 = vmatprep.subr.bf16.mxu0 0
        %2810 = vmatpush1.bf16.msra.mxu0 %v2767
        %2811 = vmatprep.subr.bf16.mxu0 0
        %2812 = vmatpush1.bf16.msra.mxu0 %v2768
        %2813 = vmatprep.subr.bf16.mxu0 0
        %2814 = vmatpush1.bf16.msra.mxu0 %v2769
        %2815 = vmatprep.subr.bf16.mxu0 0
        %2816 = vmatpush1.bf16.msra.mxu0 %v2770
        %2817 = vmatprep.subr.bf16.mxu0 0
        %2818 = vmatpush1.bf16.msra.mxu0 %v2771
        %2819 = vmatprep.subr.bf16.mxu0 0
        %2820 = vmatpush1.bf16.msra.mxu0 %v2772
        %2821 = vmatprep.subr.bf16.mxu0 0
        %2822 = vmatpush1.bf16.msra.mxu0 %v2773
        %2823 = vmatprep.subr.bf16.mxu0 0
        %2824 = vmatpush1.bf16.msra.mxu0 %v2774
        %2825 = vmatprep.subr.bf16.mxu0 0
        %2826 = vmatpush1.bf16.msra.mxu0 %v2775
        %2827 = vmatprep.subr.bf16.mxu0 0
        %2828 = vmatpush1.bf16.msra.mxu0 %v2776
        %2829 = vmatprep.subr.bf16.mxu0 0
        %2830 = vmatpush1.bf16.msra.mxu0 %v2777
        %2831 = vmatprep.subr.bf16.mxu0 0
        %2832 = vmatpush1.bf16.msra.mxu0 %v2778
        %2833 = vmatprep.subr.bf16.mxu0 0
        %2834 = vmatpush1.bf16.msra.mxu0 %v2779
        %2835 = vmatprep.subr.bf16.mxu0 0
        %2836 = vmatpush1.bf16.msra.mxu0 %v2780
        %2837 = vmatprep.mubr.bf16.mxu0 %v2686
        %2838 = vmatmul.mubr.bf16.gmra.mrb[0].mxu0 %v2683
        %v2839 = vpop.f32.mrb[0].mxu0
        %v2840 = vadd.f32 0.0, %v2839
        %v2841 = vpop.f32.mrb[0].mxu0
        %v2842 = vpop.f32.mrb[0].mxu0
        %v2843 = vpop.f32.mrb[0].mxu0
        %2844 = vdwg.mxu0
        %2845 = vmatprep.subr.bf16.mxu0 0
        %2846 = vmatpush1.bf16.msra.mxu0 %v2781
        %2847 = vmatprep.subr.bf16.mxu0 0
        %2848 = vmatpush1.bf16.msra.mxu0 %v2782
        %2849 = vmatprep.subr.bf16.mxu0 0
        %2850 = vmatpush1.bf16.msra.mxu0 0
        %2851 = vmatprep.subr.bf16.mxu0 0
        %2852 = vmatpush1.bf16.msra.mxu0 0
        %2853 = vmatprep.subr.bf16.mxu0 0
        %2854 = vmatpush1.bf16.msra.mxu0 0
        %2855 = vmatprep.subr.bf16.mxu0 0
        %2856 = vmatpush1.bf16.msra.mxu0 0
        %2857 = vmatprep.subr.bf16.mxu0 0
        %2858 = vmatpush1.bf16.msra.mxu0 0
        %2859 = vmatprep.subr.bf16.mxu0 0
        %2860 = vmatpush1.bf16.msra.mxu0 0
        %2861 = vmatprep.subr.bf16.mxu0 0
        %2862 = vmatpush1.bf16.msra.mxu0 0
        %2863 = vmatprep.subr.bf16.mxu0 0
        %2864 = vmatpush1.bf16.msra.mxu0 0
        %2865 = vmatprep.subr.bf16.mxu0 0
        %2866 = vmatpush1.bf16.msra.mxu0 0
        %2867 = vmatprep.subr.bf16.mxu0 0
        %2868 = vmatpush1.bf16.msra.mxu0 0
        %2869 = vmatprep.subr.bf16.mxu0 0
        %2870 = vmatpush1.bf16.msra.mxu0 0
        %2871 = vmatprep.subr.bf16.mxu0 0
        %2872 = vmatpush1.bf16.msra.mxu0 0
        %2873 = vmatprep.subr.bf16.mxu0 0
        %2874 = vmatpush1.bf16.msra.mxu0 0
        %2875 = vmatprep.subr.bf16.mxu0 0
        %2876 = vmatpush1.bf16.msra.mxu0 0
        %2877 = vmatprep.mubr.bf16.mxu0 0
        %2878 = vmatmul.mubr.bf16.gmra.mrb[0].mxu0 %v2803
        %v2879 = vpop.f32.mrb[0].mxu0
        %v2880 = vadd.f32 %v2840, %v2879
        %v2881 = vpop.f32.mrb[0].mxu0
        %v2882 = vpop.f32.mrb[0].mxu0
        %v2883 = vpop.f32.mrb[0].mxu0
        %2884 = vdwg.mxu0
        %v2921 = vunpack.c.l.b16 %v2609
        %v2922 = vunpack.c.l.b16 %v2610
        %v2923 = vunpack.c.l.b16 %v2611
        %v2924 = vunpack.c.l.b16 %v2612
        %v2925 = vunpack.c.l.b16 %v2613
        %v2926 = vunpack.c.l.b16 %v2614
        %v2927 = vunpack.c.l.b16 %v2615
        %v2928 = vunpack.c.l.b16 %v2616
        %v2929 = vunpack.c.l.b16 %v2617
        %v2930 = vunpack.c.l.b16 %v2618
        %v2931 = vunpack.c.l.b16 %v2619
        %v2932 = vunpack.c.l.b16 %v2620
        %v2933 = vunpack.c.l.b16 %v2621
        %v2934 = vunpack.c.l.b16 %v2622
        %v2935 = vunpack.c.l.b16 %v2623
        %v2936 = vunpack.c.l.b16 %v2624
        %v2937 = vunpack.c.l.b16 %v2625
        %v2938 = vunpack.c.l.b16 %v2626
        %v2939 = vunpack.c.l.b16 %v2627
        %v2940 = vunpack.c.l.b16 %v2628
        %v2941 = vunpack.c.l.b16 %v2629
        %v2942 = vunpack.c.l.b16 %v2630
        %v2943 = vunpack.c.l.b16 %v2631
        %v2944 = vunpack.c.l.b16 %v2632
        %v2945 = vunpack.c.l.b16 %v2633
        %v2946 = vunpack.c.l.b16 %v2634
        %v2947 = vunpack.c.l.b16 %v2635
        %v2948 = vunpack.c.l.b16 %v2636
        %v2949 = vunpack.c.l.b16 %v2637
        %v2950 = vunpack.c.l.b16 %v2638
        %v2951 = vunpack.c.l.b16 %v2639
        %v2952 = vunpack.c.l.b16 %v2640
        %v2953 = vunpack.c.l.b16 %v2641
        %v2954 = vunpack.c.l.b16 %v2642
        %v2955 = vunpack.c.l.b16 %v2643
        %v2956 = vunpack.c.l.b16 %v2644
        %v2957 = vpack.c.b16 %v2922, %v2921
        %v2958 = vpack.c.b16 %v2924, %v2923
        %v2959 = vpack.c.b16 %v2926, %v2925
        %v2960 = vpack.c.b16 %v2928, %v2927
        %v2961 = vpack.c.b16 %v2930, %v2929
        %v2962 = vpack.c.b16 %v2932, %v2931
        %v2963 = vpack.c.b16 %v2934, %v2933
        %v2964 = vpack.c.b16 %v2936, %v2935
        %v2965 = vpack.c.b16 %v2938, %v2937
        %v2966 = vpack.c.b16 %v2940, %v2939
        %v2967 = vpack.c.b16 %v2942, %v2941
        %v2968 = vpack.c.b16 %v2944, %v2943
        %v2969 = vpack.c.b16 %v2946, %v2945
        %v2970 = vpack.c.b16 %v2948, %v2947
        %v2971 = vpack.c.b16 %v2950, %v2949
        %v2972 = vpack.c.b16 %v2952, %v2951
        %v2973 = vpack.c.b16 %v2954, %v2953
        %v2974 = vpack.c.b16 %v2956, %v2955
        %v2993 = vsel %vm2801, %v2608, 0
        %2995 = vmatprep.subr.bf16.mxu0 0
        %2996 = vmatpush1.bf16.msra.mxu0 %v2957
        %2997 = vmatprep.subr.bf16.mxu0 0
        %2998 = vmatpush1.bf16.msra.mxu0 %v2958
        %2999 = vmatprep.subr.bf16.mxu0 0
        %3000 = vmatpush1.bf16.msra.mxu0 %v2959
        %3001 = vmatprep.subr.bf16.mxu0 0
        %3002 = vmatpush1.bf16.msra.mxu0 %v2960
        %3003 = vmatprep.subr.bf16.mxu0 0
        %3004 = vmatpush1.bf16.msra.mxu0 %v2961
        %3005 = vmatprep.subr.bf16.mxu0 0
        %3006 = vmatpush1.bf16.msra.mxu0 %v2962
        %3007 = vmatprep.subr.bf16.mxu0 0
        %3008 = vmatpush1.bf16.msra.mxu0 %v2963
        %3009 = vmatprep.subr.bf16.mxu0 0
        %3010 = vmatpush1.bf16.msra.mxu0 %v2964
        %3011 = vmatprep.subr.bf16.mxu0 0
        %3012 = vmatpush1.bf16.msra.mxu0 %v2965
        %3013 = vmatprep.subr.bf16.mxu0 0
        %3014 = vmatpush1.bf16.msra.mxu0 %v2966
        %3015 = vmatprep.subr.bf16.mxu0 0
        %3016 = vmatpush1.bf16.msra.mxu0 %v2967
        %3017 = vmatprep.subr.bf16.mxu0 0
        %3018 = vmatpush1.bf16.msra.mxu0 %v2968
        %3019 = vmatprep.subr.bf16.mxu0 0
        %3020 = vmatpush1.bf16.msra.mxu0 %v2969
        %3021 = vmatprep.subr.bf16.mxu0 0
        %3022 = vmatpush1.bf16.msra.mxu0 %v2970
        %3023 = vmatprep.subr.bf16.mxu0 0
        %3024 = vmatpush1.bf16.msra.mxu0 %v2971
        %3025 = vmatprep.subr.bf16.mxu0 0
        %3026 = vmatpush1.bf16.msra.mxu0 %v2972
        %3027 = vmatprep.mubr.bf16.mxu0 %v2607
        %3028 = vmatmul.mubr.bf16.gmra.mrb[0].mxu0 %v2606
        %v3029 = vpop.f32.mrb[0].mxu0
        %v3030 = vadd.f32 %v2880, %v3029
        %v3031 = vpop.f32.mrb[0].mxu0
        %v3032 = vpop.f32.mrb[0].mxu0
        %v3033 = vpop.f32.mrb[0].mxu0
        %3034 = vdwg.mxu0
        %3035 = vmatprep.subr.bf16.mxu0 0
        %3036 = vmatpush1.bf16.msra.mxu0 %v2973
        %3037 = vmatprep.subr.bf16.mxu0 0
        %3038 = vmatpush1.bf16.msra.mxu0 %v2974
        %3039 = vmatprep.subr.bf16.mxu0 0
        %3040 = vmatpush1.bf16.msra.mxu0 0
        %3041 = vmatprep.subr.bf16.mxu0 0
        %3042 = vmatpush1.bf16.msra.mxu0 0
        %3043 = vmatprep.subr.bf16.mxu0 0
        %3044 = vmatpush1.bf16.msra.mxu0 0
        %3045 = vmatprep.subr.bf16.mxu0 0
        %3046 = vmatpush1.bf16.msra.mxu0 0
        %3047 = vmatprep.subr.bf16.mxu0 0
        %3048 = vmatpush1.bf16.msra.mxu0 0
        %3049 = vmatprep.subr.bf16.mxu0 0
        %3050 = vmatpush1.bf16.msra.mxu0 0
        %3051 = vmatprep.subr.bf16.mxu0 0
        %3052 = vmatpush1.bf16.msra.mxu0 0
        %3053 = vmatprep.subr.bf16.mxu0 0
        %3054 = vmatpush1.bf16.msra.mxu0 0
        %3055 = vmatprep.subr.bf16.mxu0 0
        %3056 = vmatpush1.bf16.msra.mxu0 0
        %3057 = vmatprep.subr.bf16.mxu0 0
        %3058 = vmatpush1.bf16.msra.mxu0 0
        %3059 = vmatprep.subr.bf16.mxu0 0
        %3060 = vmatpush1.bf16.msra.mxu0 0
        %3061 = vmatprep.subr.bf16.mxu0 0
        %3062 = vmatpush1.bf16.msra.mxu0 0
        %3063 = vmatprep.subr.bf16.mxu0 0
        %3064 = vmatpush1.bf16.msra.mxu0 0
        %3065 = vmatprep.subr.bf16.mxu0 0
        %3066 = vmatpush1.bf16.msra.mxu0 0
        %3067 = vmatprep.mubr.bf16.mxu0 0
        %3068 = vmatmul.mubr.bf16.gmra.mrb[0].mxu0 %v2993
        %v3069 = vpop.f32.mrb[0].mxu0
        %v3070 = vadd.f32 %v3030, %v3069
        %v3071 = vpop.f32.mrb[0].mxu0
        %v3072 = vpop.f32.mrb[0].mxu0
        %v3073 = vpop.f32.mrb[0].mxu0
        %3074 = vdwg.mxu0
        %s3075 = scalar_lea.vmem %s6, 288
        %v3076 = vld [vmem:[%s3075] sm:$0xf]
        %v3077 = vld [vmem:[%s3075 + $0x4] sm:$0xf]
        %v3078 = vld [vmem:[%s3075 + $0x8] sm:$0xf]
        %v3079 = vld [vmem:[%s3075 + $0xc] sm:$0xf]
        %v3080 = vld [vmem:[%s3075 + $0x10] sm:$0xf]
        %v3081 = vld [vmem:[%s3075 + $0x14] sm:$0xf]
        %v3082 = vld [vmem:[%s3075 + $0x18] sm:$0xf]
        %v3083 = vld [vmem:[%s3075 + $0x1c] sm:$0xf]
        %v3084 = vld [vmem:[%s3075 + $0x20] sm:$0xf]
        %v3085 = vld [vmem:[%s3075 + $0x24] sm:$0xf]
        %v3086 = vld [vmem:[%s3075 + $0x28] sm:$0xf]
        %v3087 = vld [vmem:[%s3075 + $0x2c] sm:$0xf]
        %v3088 = vld [vmem:[%s3075 + $0x30] sm:$0xf]
        %v3089 = vld [vmem:[%s3075 + $0x34] sm:$0xf]
        %v3090 = vld [vmem:[%s3075 + $0x38] sm:$0xf]
        %v3091 = vld [vmem:[%s3075 + $0x3c] sm:$0xf]
        %v3092 = vld [vmem:[%s3075 + $0x40] sm:$0xf]
        %v3093 = vld [vmem:[%s3075 + $0x44] sm:$0xf]
        %v3094 = vld [vmem:[%s3075 + $0x48] sm:$0xf]
        %v3095 = vld [vmem:[%s3075 + $0x4c] sm:$0xf]
        %v3096 = vld [vmem:[%s3075 + $0x50] sm:$0xf]
        %v3097 = vld [vmem:[%s3075 + $0x54] sm:$0xf]
        %v3098 = vld [vmem:[%s3075 + $0x58] sm:$0xf]
        %v3099 = vld [vmem:[%s3075 + $0x5c] sm:$0xf]
        %v3100 = vld [vmem:[%s3075 + $0x60] sm:$0xf]
        %v3101 = vld [vmem:[%s3075 + $0x64] sm:$0xf]
        %v3102 = vld [vmem:[%s3075 + $0x68] sm:$0xf]
        %v3103 = vld [vmem:[%s3075 + $0x6c] sm:$0xf]
        %v3104 = vld [vmem:[%s3075 + $0x70] sm:$0xf]
        %v3105 = vld [vmem:[%s3075 + $0x74] sm:$0xf]
        %v3106 = vld [vmem:[%s3075 + $0x78] sm:$0xf]
        %v3107 = vld [vmem:[%s3075 + $0x7c] sm:$0xf]
        %v3108 = vld [vmem:[%s3075 + $0x80] sm:$0xf]
        %v3109 = vld [vmem:[%s3075 + $0x84] sm:$0xf]
        %v3110 = vld [vmem:[%s3075 + $0x88] sm:$0xf]
        %v3111 = vld [vmem:[%s3075 + $0x8c] sm:$0xf]
        %v3115 = vrot.slane %v2606, 1
        %v3116 = vrot.slane %v2607, 1
        %v3117 = vrot.slane %v2608, 1
        %v3156 = vunpack.c.l.b16 %v3076
        %v3157 = vunpack.c.l.b16 %v3077
        %v3158 = vunpack.c.l.b16 %v3078
        %v3159 = vunpack.c.l.b16 %v3079
        %v3160 = vunpack.c.l.b16 %v3080
        %v3161 = vunpack.c.l.b16 %v3081
        %v3162 = vunpack.c.l.b16 %v3082
        %v3163 = vunpack.c.l.b16 %v3083
        %v3164 = vunpack.c.l.b16 %v3084
        %v3165 = vunpack.c.l.b16 %v3085
        %v3166 = vunpack.c.l.b16 %v3086
        %v3167 = vunpack.c.l.b16 %v3087
        %v3168 = vunpack.c.l.b16 %v3088
        %v3169 = vunpack.c.l.b16 %v3089
        %v3170 = vunpack.c.l.b16 %v3090
        %v3171 = vunpack.c.l.b16 %v3091
        %v3172 = vunpack.c.l.b16 %v3092
        %v3173 = vunpack.c.l.b16 %v3093
        %v3174 = vunpack.c.l.b16 %v3094
        %v3175 = vunpack.c.l.b16 %v3095
        %v3176 = vunpack.c.l.b16 %v3096
        %v3177 = vunpack.c.l.b16 %v3097
        %v3178 = vunpack.c.l.b16 %v3098
        %v3179 = vunpack.c.l.b16 %v3099
        %v3180 = vunpack.c.l.b16 %v3100
        %v3181 = vunpack.c.l.b16 %v3101
        %v3182 = vunpack.c.l.b16 %v3102
        %v3183 = vunpack.c.l.b16 %v3103
        %v3184 = vunpack.c.l.b16 %v3104
        %v3185 = vunpack.c.l.b16 %v3105
        %v3186 = vunpack.c.l.b16 %v3106
        %v3187 = vunpack.c.l.b16 %v3107
        %v3188 = vunpack.c.l.b16 %v3108
        %v3189 = vunpack.c.l.b16 %v3109
        %v3190 = vunpack.c.l.b16 %v3110
        %v3191 = vunpack.c.l.b16 %v3111
        %v3192 = vpack.c.b16 %v3157, %v3156
        %v3193 = vpack.c.b16 %v3159, %v3158
        %v3194 = vpack.c.b16 %v3161, %v3160
        %v3195 = vpack.c.b16 %v3163, %v3162
        %v3196 = vpack.c.b16 %v3165, %v3164
        %v3197 = vpack.c.b16 %v3167, %v3166
        %v3198 = vpack.c.b16 %v3169, %v3168
        %v3199 = vpack.c.b16 %v3171, %v3170
        %v3200 = vpack.c.b16 %v3173, %v3172
        %v3201 = vpack.c.b16 %v3175, %v3174
        %v3202 = vpack.c.b16 %v3177, %v3176
        %v3203 = vpack.c.b16 %v3179, %v3178
        %v3204 = vpack.c.b16 %v3181, %v3180
        %v3205 = vpack.c.b16 %v3183, %v3182
        %v3206 = vpack.c.b16 %v3185, %v3184
        %v3207 = vpack.c.b16 %v3187, %v3186
        %v3208 = vpack.c.b16 %v3189, %v3188
        %v3209 = vpack.c.b16 %v3191, %v3190
        %v3229 = vsel %vm2801, %v3117, 0
        %3231 = vmatprep.subr.bf16.mxu0 0
        %3232 = vmatpush1.bf16.msra.mxu0 %v3192
        %3233 = vmatprep.subr.bf16.mxu0 0
        %3234 = vmatpush1.bf16.msra.mxu0 %v3193
        %3235 = vmatprep.subr.bf16.mxu0 0
        %3236 = vmatpush1.bf16.msra.mxu0 %v3194
        %3237 = vmatprep.subr.bf16.mxu0 0
        %3238 = vmatpush1.bf16.msra.mxu0 %v3195
        %3239 = vmatprep.subr.bf16.mxu0 0
        %3240 = vmatpush1.bf16.msra.mxu0 %v3196
        %3241 = vmatprep.subr.bf16.mxu0 0
        %3242 = vmatpush1.bf16.msra.mxu0 %v3197
        %3243 = vmatprep.subr.bf16.mxu0 0
        %3244 = vmatpush1.bf16.msra.mxu0 %v3198
        %3245 = vmatprep.subr.bf16.mxu0 0
        %3246 = vmatpush1.bf16.msra.mxu0 %v3199
        %3247 = vmatprep.subr.bf16.mxu0 0
        %3248 = vmatpush1.bf16.msra.mxu0 %v3200
        %3249 = vmatprep.subr.bf16.mxu0 0
        %3250 = vmatpush1.bf16.msra.mxu0 %v3201
        %3251 = vmatprep.subr.bf16.mxu0 0
        %3252 = vmatpush1.bf16.msra.mxu0 %v3202
        %3253 = vmatprep.subr.bf16.mxu0 0
        %3254 = vmatpush1.bf16.msra.mxu0 %v3203
        %3255 = vmatprep.subr.bf16.mxu0 0
        %3256 = vmatpush1.bf16.msra.mxu0 %v3204
        %3257 = vmatprep.subr.bf16.mxu0 0
        %3258 = vmatpush1.bf16.msra.mxu0 %v3205
        %3259 = vmatprep.subr.bf16.mxu0 0
        %3260 = vmatpush1.bf16.msra.mxu0 %v3206
        %3261 = vmatprep.subr.bf16.mxu0 0
        %3262 = vmatpush1.bf16.msra.mxu0 %v3207
        %3263 = vmatprep.mubr.bf16.mxu0 %v3116
        %3264 = vmatmul.mubr.bf16.gmra.mrb[0].mxu0 %v3115
        %v3265 = vpop.f32.mrb[0].mxu0
        %v3266 = vadd.f32 0.0, %v3265
        %v3267 = vpop.f32.mrb[0].mxu0
        %v3268 = vpop.f32.mrb[0].mxu0
        %v3269 = vpop.f32.mrb[0].mxu0
        %3270 = vdwg.mxu0
        %3271 = vmatprep.subr.bf16.mxu0 0
        %3272 = vmatpush1.bf16.msra.mxu0 %v3208
        %3273 = vmatprep.subr.bf16.mxu0 0
        %3274 = vmatpush1.bf16.msra.mxu0 %v3209
        %3275 = vmatprep.subr.bf16.mxu0 0
        %3276 = vmatpush1.bf16.msra.mxu0 0
        %3277 = vmatprep.subr.bf16.mxu0 0
        %3278 = vmatpush1.bf16.msra.mxu0 0
        %3279 = vmatprep.subr.bf16.mxu0 0
        %3280 = vmatpush1.bf16.msra.mxu0 0
        %3281 = vmatprep.subr.bf16.mxu0 0
        %3282 = vmatpush1.bf16.msra.mxu0 0
        %3283 = vmatprep.subr.bf16.mxu0 0
        %3284 = vmatpush1.bf16.msra.mxu0 0
        %3285 = vmatprep.subr.bf16.mxu0 0
        %3286 = vmatpush1.bf16.msra.mxu0 0
        %3287 = vmatprep.subr.bf16.mxu0 0
        %3288 = vmatpush1.bf16.msra.mxu0 0
        %3289 = vmatprep.subr.bf16.mxu0 0
        %3290 = vmatpush1.bf16.msra.mxu0 0
        %3291 = vmatprep.subr.bf16.mxu0 0
        %3292 = vmatpush1.bf16.msra.mxu0 0
        %3293 = vmatprep.subr.bf16.mxu0 0
        %3294 = vmatpush1.bf16.msra.mxu0 0
        %3295 = vmatprep.subr.bf16.mxu0 0
        %3296 = vmatpush1.bf16.msra.mxu0 0
        %3297 = vmatprep.subr.bf16.mxu0 0
        %3298 = vmatpush1.bf16.msra.mxu0 0
        %3299 = vmatprep.subr.bf16.mxu0 0
        %3300 = vmatpush1.bf16.msra.mxu0 0
        %3301 = vmatprep.subr.bf16.mxu0 0
        %3302 = vmatpush1.bf16.msra.mxu0 0
        %3303 = vmatprep.mubr.bf16.mxu0 0
        %3304 = vmatmul.mubr.bf16.gmra.mrb[0].mxu0 %v3229
        %v3305 = vpop.f32.mrb[0].mxu0
        %v3306 = vadd.f32 %v3266, %v3305
        %v3307 = vpop.f32.mrb[0].mxu0
        %v3308 = vpop.f32.mrb[0].mxu0
        %v3309 = vpop.f32.mrb[0].mxu0
        %3310 = vdwg.mxu0
        %v3311 = vadd.f32 %v3070, %v3306
        %s3312 = scalar_lea.vmem %s6, 432
        %v3313 = vld [vmem:[%s3312] sm:$0xf]
        %v3314 = vld [vmem:[%s3312 + $0x4] sm:$0xf]
        %v3315 = vld [vmem:[%s3312 + $0x8] sm:$0xf]
        %v3316 = vld [vmem:[%s3312 + $0xc] sm:$0xf]
        %v3317 = vld [vmem:[%s3312 + $0x10] sm:$0xf]
        %v3318 = vld [vmem:[%s3312 + $0x14] sm:$0xf]
        %v3319 = vld [vmem:[%s3312 + $0x18] sm:$0xf]
        %v3320 = vld [vmem:[%s3312 + $0x1c] sm:$0xf]
        %v3321 = vld [vmem:[%s3312 + $0x20] sm:$0xf]
        %v3322 = vld [vmem:[%s3312 + $0x24] sm:$0xf]
        %v3323 = vld [vmem:[%s3312 + $0x28] sm:$0xf]
        %v3324 = vld [vmem:[%s3312 + $0x2c] sm:$0xf]
        %v3325 = vld [vmem:[%s3312 + $0x30] sm:$0xf]
        %v3326 = vld [vmem:[%s3312 + $0x34] sm:$0xf]
        %v3327 = vld [vmem:[%s3312 + $0x38] sm:$0xf]
        %v3328 = vld [vmem:[%s3312 + $0x3c] sm:$0xf]
        %v3329 = vld [vmem:[%s3312 + $0x40] sm:$0xf]
        %v3330 = vld [vmem:[%s3312 + $0x44] sm:$0xf]
        %v3331 = vld [vmem:[%s3312 + $0x48] sm:$0xf]
        %v3332 = vld [vmem:[%s3312 + $0x4c] sm:$0xf]
        %v3333 = vld [vmem:[%s3312 + $0x50] sm:$0xf]
        %v3334 = vld [vmem:[%s3312 + $0x54] sm:$0xf]
        %v3335 = vld [vmem:[%s3312 + $0x58] sm:$0xf]
        %v3336 = vld [vmem:[%s3312 + $0x5c] sm:$0xf]
        %v3337 = vld [vmem:[%s3312 + $0x60] sm:$0xf]
        %v3338 = vld [vmem:[%s3312 + $0x64] sm:$0xf]
        %v3339 = vld [vmem:[%s3312 + $0x68] sm:$0xf]
        %v3340 = vld [vmem:[%s3312 + $0x6c] sm:$0xf]
        %v3341 = vld [vmem:[%s3312 + $0x70] sm:$0xf]
        %v3342 = vld [vmem:[%s3312 + $0x74] sm:$0xf]
        %v3343 = vld [vmem:[%s3312 + $0x78] sm:$0xf]
        %v3344 = vld [vmem:[%s3312 + $0x7c] sm:$0xf]
        %v3345 = vld [vmem:[%s3312 + $0x80] sm:$0xf]
        %v3346 = vld [vmem:[%s3312 + $0x84] sm:$0xf]
        %v3347 = vld [vmem:[%s3312 + $0x88] sm:$0xf]
        %v3348 = vld [vmem:[%s3312 + $0x8c] sm:$0xf]
        %v3349 = vrot.slane %v2683, 1
        %v3350 = vrot.slane %v2686, 1
        %v3351 = vrot.slane %v2689, 1
        %v3390 = vunpack.c.l.b16 %v3313
        %v3391 = vunpack.c.l.b16 %v3314
        %v3392 = vunpack.c.l.b16 %v3315
        %v3393 = vunpack.c.l.b16 %v3316
        %v3394 = vunpack.c.l.b16 %v3317
        %v3395 = vunpack.c.l.b16 %v3318
        %v3396 = vunpack.c.l.b16 %v3319
        %v3397 = vunpack.c.l.b16 %v3320
        %v3398 = vunpack.c.l.b16 %v3321
        %v3399 = vunpack.c.l.b16 %v3322
        %v3400 = vunpack.c.l.b16 %v3323
        %v3401 = vunpack.c.l.b16 %v3324
        %v3402 = vunpack.c.l.b16 %v3325
        %v3403 = vunpack.c.l.b16 %v3326
        %v3404 = vunpack.c.l.b16 %v3327
        %v3405 = vunpack.c.l.b16 %v3328
        %v3406 = vunpack.c.l.b16 %v3329
        %v3407 = vunpack.c.l.b16 %v3330
        %v3408 = vunpack.c.l.b16 %v3331
        %v3409 = vunpack.c.l.b16 %v3332
        %v3410 = vunpack.c.l.b16 %v3333
        %v3411 = vunpack.c.l.b16 %v3334
        %v3412 = vunpack.c.l.b16 %v3335
        %v3413 = vunpack.c.l.b16 %v3336
        %v3414 = vunpack.c.l.b16 %v3337
        %v3415 = vunpack.c.l.b16 %v3338
        %v3416 = vunpack.c.l.b16 %v3339
        %v3417 = vunpack.c.l.b16 %v3340
        %v3418 = vunpack.c.l.b16 %v3341
        %v3419 = vunpack.c.l.b16 %v3342
        %v3420 = vunpack.c.l.b16 %v3343
        %v3421 = vunpack.c.l.b16 %v3344
        %v3422 = vunpack.c.l.b16 %v3345
        %v3423 = vunpack.c.l.b16 %v3346
        %v3424 = vunpack.c.l.b16 %v3347
        %v3425 = vunpack.c.l.b16 %v3348
        %v3426 = vpack.c.b16 %v3391, %v3390
        %v3427 = vpack.c.b16 %v3393, %v3392
        %v3428 = vpack.c.b16 %v3395, %v3394
        %v3429 = vpack.c.b16 %v3397, %v3396
        %v3430 = vpack.c.b16 %v3399, %v3398
        %v3431 = vpack.c.b16 %v3401, %v3400
        %v3432 = vpack.c.b16 %v3403, %v3402
        %v3433 = vpack.c.b16 %v3405, %v3404
        %v3434 = vpack.c.b16 %v3407, %v3406
        %v3435 = vpack.c.b16 %v3409, %v3408
        %v3436 = vpack.c.b16 %v3411, %v3410
        %v3437 = vpack.c.b16 %v3413, %v3412
        %v3438 = vpack.c.b16 %v3415, %v3414
        %v3439 = vpack.c.b16 %v3417, %v3416
        %v3440 = vpack.c.b16 %v3419, %v3418
        %v3441 = vpack.c.b16 %v3421, %v3420
        %v3442 = vpack.c.b16 %v3423, %v3422
        %v3443 = vpack.c.b16 %v3425, %v3424
        %v3463 = vsel %vm2801, %v3351, 0
        %3465 = vmatprep.subr.bf16.mxu0 0
        %3466 = vmatpush1.bf16.msra.mxu0 %v3426
        %3467 = vmatprep.subr.bf16.mxu0 0
        %3468 = vmatpush1.bf16.msra.mxu0 %v3427
        %3469 = vmatprep.subr.bf16.mxu0 0
        %3470 = vmatpush1.bf16.msra.mxu0 %v3428
        %3471 = vmatprep.subr.bf16.mxu0 0
        %3472 = vmatpush1.bf16.msra.mxu0 %v3429
        %3473 = vmatprep.subr.bf16.mxu0 0
        %3474 = vmatpush1.bf16.msra.mxu0 %v3430
        %3475 = vmatprep.subr.bf16.mxu0 0
        %3476 = vmatpush1.bf16.msra.mxu0 %v3431
        %3477 = vmatprep.subr.bf16.mxu0 0
        %3478 = vmatpush1.bf16.msra.mxu0 %v3432
        %3479 = vmatprep.subr.bf16.mxu0 0
        %3480 = vmatpush1.bf16.msra.mxu0 %v3433
        %3481 = vmatprep.subr.bf16.mxu0 0
        %3482 = vmatpush1.bf16.msra.mxu0 %v3434
        %3483 = vmatprep.subr.bf16.mxu0 0
        %3484 = vmatpush1.bf16.msra.mxu0 %v3435
        %3485 = vmatprep.subr.bf16.mxu0 0
        %3486 = vmatpush1.bf16.msra.mxu0 %v3436
        %3487 = vmatprep.subr.bf16.mxu0 0
        %3488 = vmatpush1.bf16.msra.mxu0 %v3437
        %3489 = vmatprep.subr.bf16.mxu0 0
        %3490 = vmatpush1.bf16.msra.mxu0 %v3438
        %3491 = vmatprep.subr.bf16.mxu0 0
        %3492 = vmatpush1.bf16.msra.mxu0 %v3439
        %3493 = vmatprep.subr.bf16.mxu0 0
        %3494 = vmatpush1.bf16.msra.mxu0 %v3440
        %3495 = vmatprep.subr.bf16.mxu0 0
        %3496 = vmatpush1.bf16.msra.mxu0 %v3441
        %3497 = vmatprep.mubr.bf16.mxu0 %v3350
        %3498 = vmatmul.mubr.bf16.gmra.mrb[0].mxu0 %v3349
        %v3499 = vpop.f32.mrb[0].mxu0
        %v3500 = vadd.f32 0.0, %v3499
        %v3501 = vpop.f32.mrb[0].mxu0
        %v3502 = vpop.f32.mrb[0].mxu0
        %v3503 = vpop.f32.mrb[0].mxu0
        %3504 = vdwg.mxu0
        %3505 = vmatprep.subr.bf16.mxu0 0
        %3506 = vmatpush1.bf16.msra.mxu0 %v3442
        %3507 = vmatprep.subr.bf16.mxu0 0
        %3508 = vmatpush1.bf16.msra.mxu0 %v3443
        %3509 = vmatprep.subr.bf16.mxu0 0
        %3510 = vmatpush1.bf16.msra.mxu0 0
        %3511 = vmatprep.subr.bf16.mxu0 0
        %3512 = vmatpush1.bf16.msra.mxu0 0
        %3513 = vmatprep.subr.bf16.mxu0 0
        %3514 = vmatpush1.bf16.msra.mxu0 0
        %3515 = vmatprep.subr.bf16.mxu0 0
        %3516 = vmatpush1.bf16.msra.mxu0 0
        %3517 = vmatprep.subr.bf16.mxu0 0
        %3518 = vmatpush1.bf16.msra.mxu0 0
        %3519 = vmatprep.subr.bf16.mxu0 0
        %3520 = vmatpush1.bf16.msra.mxu0 0
        %3521 = vmatprep.subr.bf16.mxu0 0
        %3522 = vmatpush1.bf16.msra.mxu0 0
        %3523 = vmatprep.subr.bf16.mxu0 0
        %3524 = vmatpush1.bf16.msra.mxu0 0
        %3525 = vmatprep.subr.bf16.mxu0 0
        %3526 = vmatpush1.bf16.msra.mxu0 0
        %3527 = vmatprep.subr.bf16.mxu0 0
        %3528 = vmatpush1.bf16.msra.mxu0 0
        %3529 = vmatprep.subr.bf16.mxu0 0
        %3530 = vmatpush1.bf16.msra.mxu0 0
        %3531 = vmatprep.subr.bf16.mxu0 0
        %3532 = vmatpush1.bf16.msra.mxu0 0
        %3533 = vmatprep.subr.bf16.mxu0 0
        %3534 = vmatpush1.bf16.msra.mxu0 0
        %3535 = vmatprep.subr.bf16.mxu0 0
        %3536 = vmatpush1.bf16.msra.mxu0 0
        %3537 = vmatprep.mubr.bf16.mxu0 0
        %3538 = vmatmul.mubr.bf16.gmra.mrb[0].mxu0 %v3463
        %v3539 = vpop.f32.mrb[0].mxu0
        %v3540 = vadd.f32 %v3500, %v3539
        %v3541 = vpop.f32.mrb[0].mxu0
        %v3542 = vpop.f32.mrb[0].mxu0
        %v3543 = vpop.f32.mrb[0].mxu0
        %3544 = vdwg.mxu0
        %v3545 = vadd.f32 %v3311, %v3540
        %s3546 = scalar_lea.vmem %s6, 576
        %v3547 = vld [vmem:[%s3546] sm:$0xf]
        %v3548 = vld [vmem:[%s3546 + $0x4] sm:$0xf]
        %v3549 = vld [vmem:[%s3546 + $0x8] sm:$0xf]
        %v3550 = vld [vmem:[%s3546 + $0xc] sm:$0xf]
        %v3551 = vld [vmem:[%s3546 + $0x10] sm:$0xf]
        %v3552 = vld [vmem:[%s3546 + $0x14] sm:$0xf]
        %v3553 = vld [vmem:[%s3546 + $0x18] sm:$0xf]
        %v3554 = vld [vmem:[%s3546 + $0x1c] sm:$0xf]
        %v3555 = vld [vmem:[%s3546 + $0x20] sm:$0xf]
        %v3556 = vld [vmem:[%s3546 + $0x24] sm:$0xf]
        %v3557 = vld [vmem:[%s3546 + $0x28] sm:$0xf]
        %v3558 = vld [vmem:[%s3546 + $0x2c] sm:$0xf]
        %v3559 = vld [vmem:[%s3546 + $0x30] sm:$0xf]
        %v3560 = vld [vmem:[%s3546 + $0x34] sm:$0xf]
        %v3561 = vld [vmem:[%s3546 + $0x38] sm:$0xf]
        %v3562 = vld [vmem:[%s3546 + $0x3c] sm:$0xf]
        %v3563 = vld [vmem:[%s3546 + $0x40] sm:$0xf]
        %v3564 = vld [vmem:[%s3546 + $0x44] sm:$0xf]
        %v3565 = vld [vmem:[%s3546 + $0x48] sm:$0xf]
        %v3566 = vld [vmem:[%s3546 + $0x4c] sm:$0xf]
        %v3567 = vld [vmem:[%s3546 + $0x50] sm:$0xf]
        %v3568 = vld [vmem:[%s3546 + $0x54] sm:$0xf]
        %v3569 = vld [vmem:[%s3546 + $0x58] sm:$0xf]
        %v3570 = vld [vmem:[%s3546 + $0x5c] sm:$0xf]
        %v3571 = vld [vmem:[%s3546 + $0x60] sm:$0xf]
        %v3572 = vld [vmem:[%s3546 + $0x64] sm:$0xf]
        %v3573 = vld [vmem:[%s3546 + $0x68] sm:$0xf]
        %v3574 = vld [vmem:[%s3546 + $0x6c] sm:$0xf]
        %v3575 = vld [vmem:[%s3546 + $0x70] sm:$0xf]
        %v3576 = vld [vmem:[%s3546 + $0x74] sm:$0xf]
        %v3577 = vld [vmem:[%s3546 + $0x78] sm:$0xf]
        %v3578 = vld [vmem:[%s3546 + $0x7c] sm:$0xf]
        %v3579 = vld [vmem:[%s3546 + $0x80] sm:$0xf]
        %v3580 = vld [vmem:[%s3546 + $0x84] sm:$0xf]
        %v3581 = vld [vmem:[%s3546 + $0x88] sm:$0xf]
        %v3582 = vld [vmem:[%s3546 + $0x8c] sm:$0xf]
        %v3583 = vrot.slane %v2606, 2
        %v3584 = vrot.slane %v2607, 2
        %v3585 = vrot.slane %v2608, 2
        %v3624 = vunpack.c.l.b16 %v3547
        %v3625 = vunpack.c.l.b16 %v3548
        %v3626 = vunpack.c.l.b16 %v3549
        %v3627 = vunpack.c.l.b16 %v3550
        %v3628 = vunpack.c.l.b16 %v3551
        %v3629 = vunpack.c.l.b16 %v3552
        %v3630 = vunpack.c.l.b16 %v3553
        %v3631 = vunpack.c.l.b16 %v3554
        %v3632 = vunpack.c.l.b16 %v3555
        %v3633 = vunpack.c.l.b16 %v3556
        %v3634 = vunpack.c.l.b16 %v3557
        %v3635 = vunpack.c.l.b16 %v3558
        %v3636 = vunpack.c.l.b16 %v3559
        %v3637 = vunpack.c.l.b16 %v3560
        %v3638 = vunpack.c.l.b16 %v3561
        %v3639 = vunpack.c.l.b16 %v3562
        %v3640 = vunpack.c.l.b16 %v3563
        %v3641 = vunpack.c.l.b16 %v3564
        %v3642 = vunpack.c.l.b16 %v3565
        %v3643 = vunpack.c.l.b16 %v3566
        %v3644 = vunpack.c.l.b16 %v3567
        %v3645 = vunpack.c.l.b16 %v3568
        %v3646 = vunpack.c.l.b16 %v3569
        %v3647 = vunpack.c.l.b16 %v3570
        %v3648 = vunpack.c.l.b16 %v3571
        %v3649 = vunpack.c.l.b16 %v3572
        %v3650 = vunpack.c.l.b16 %v3573
        %v3651 = vunpack.c.l.b16 %v3574
        %v3652 = vunpack.c.l.b16 %v3575
        %v3653 = vunpack.c.l.b16 %v3576
        %v3654 = vunpack.c.l.b16 %v3577
        %v3655 = vunpack.c.l.b16 %v3578
        %v3656 = vunpack.c.l.b16 %v3579
        %v3657 = vunpack.c.l.b16 %v3580
        %v3658 = vunpack.c.l.b16 %v3581
        %v3659 = vunpack.c.l.b16 %v3582
        %v3660 = vpack.c.b16 %v3625, %v3624
        %v3661 = vpack.c.b16 %v3627, %v3626
        %v3662 = vpack.c.b16 %v3629, %v3628
        %v3663 = vpack.c.b16 %v3631, %v3630
        %v3664 = vpack.c.b16 %v3633, %v3632
        %v3665 = vpack.c.b16 %v3635, %v3634
        %v3666 = vpack.c.b16 %v3637, %v3636
        %v3667 = vpack.c.b16 %v3639, %v3638
        %v3668 = vpack.c.b16 %v3641, %v3640
        %v3669 = vpack.c.b16 %v3643, %v3642
        %v3670 = vpack.c.b16 %v3645, %v3644
        %v3671 = vpack.c.b16 %v3647, %v3646
        %v3672 = vpack.c.b16 %v3649, %v3648
        %v3673 = vpack.c.b16 %v3651, %v3650
        %v3674 = vpack.c.b16 %v3653, %v3652
        %v3675 = vpack.c.b16 %v3655, %v3654
        %v3676 = vpack.c.b16 %v3657, %v3656
        %v3677 = vpack.c.b16 %v3659, %v3658
        %v3697 = vsel %vm2801, %v3585, 0
        %3699 = vmatprep.subr.bf16.mxu0 0
        %3700 = vmatpush1.bf16.msra.mxu0 %v3660
        %3701 = vmatprep.subr.bf16.mxu0 0
        %3702 = vmatpush1.bf16.msra.mxu0 %v3661
        %3703 = vmatprep.subr.bf16.mxu0 0
        %3704 = vmatpush1.bf16.msra.mxu0 %v3662
        %3705 = vmatprep.subr.bf16.mxu0 0
        %3706 = vmatpush1.bf16.msra.mxu0 %v3663
        %3707 = vmatprep.subr.bf16.mxu0 0
        %3708 = vmatpush1.bf16.msra.mxu0 %v3664
        %3709 = vmatprep.subr.bf16.mxu0 0
        %3710 = vmatpush1.bf16.msra.mxu0 %v3665
        %3711 = vmatprep.subr.bf16.mxu0 0
        %3712 = vmatpush1.bf16.msra.mxu0 %v3666
        %3713 = vmatprep.subr.bf16.mxu0 0
        %3714 = vmatpush1.bf16.msra.mxu0 %v3667
        %3715 = vmatprep.subr.bf16.mxu0 0
        %3716 = vmatpush1.bf16.msra.mxu0 %v3668
        %3717 = vmatprep.subr.bf16.mxu0 0
        %3718 = vmatpush1.bf16.msra.mxu0 %v3669
        %3719 = vmatprep.subr.bf16.mxu0 0
        %3720 = vmatpush1.bf16.msra.mxu0 %v3670
        %3721 = vmatprep.subr.bf16.mxu0 0
        %3722 = vmatpush1.bf16.msra.mxu0 %v3671
        %3723 = vmatprep.subr.bf16.mxu0 0
        %3724 = vmatpush1.bf16.msra.mxu0 %v3672
        %3725 = vmatprep.subr.bf16.mxu0 0
        %3726 = vmatpush1.bf16.msra.mxu0 %v3673
        %3727 = vmatprep.subr.bf16.mxu0 0
        %3728 = vmatpush1.bf16.msra.mxu0 %v3674
        %3729 = vmatprep.subr.bf16.mxu0 0
        %3730 = vmatpush1.bf16.msra.mxu0 %v3675
        %3731 = vmatprep.mubr.bf16.mxu0 %v3584
        %3732 = vmatmul.mubr.bf16.gmra.mrb[0].mxu0 %v3583
        %v3733 = vpop.f32.mrb[0].mxu0
        %v3734 = vadd.f32 0.0, %v3733
        %v3735 = vpop.f32.mrb[0].mxu0
        %v3736 = vpop.f32.mrb[0].mxu0
        %v3737 = vpop.f32.mrb[0].mxu0
        %3738 = vdwg.mxu0
        %3739 = vmatprep.subr.bf16.mxu0 0
        %3740 = vmatpush1.bf16.msra.mxu0 %v3676
        %3741 = vmatprep.subr.bf16.mxu0 0
        %3742 = vmatpush1.bf16.msra.mxu0 %v3677
        %3743 = vmatprep.subr.bf16.mxu0 0
        %3744 = vmatpush1.bf16.msra.mxu0 0
        %3745 = vmatprep.subr.bf16.mxu0 0
        %3746 = vmatpush1.bf16.msra.mxu0 0
        %3747 = vmatprep.subr.bf16.mxu0 0
        %3748 = vmatpush1.bf16.msra.mxu0 0
        %3749 = vmatprep.subr.bf16.mxu0 0
        %3750 = vmatpush1.bf16.msra.mxu0 0
        %3751 = vmatprep.subr.bf16.mxu0 0
        %3752 = vmatpush1.bf16.msra.mxu0 0
        %3753 = vmatprep.subr.bf16.mxu0 0
        %3754 = vmatpush1.bf16.msra.mxu0 0
        %3755 = vmatprep.subr.bf16.mxu0 0
        %3756 = vmatpush1.bf16.msra.mxu0 0
        %3757 = vmatprep.subr.bf16.mxu0 0
        %3758 = vmatpush1.bf16.msra.mxu0 0
        %3759 = vmatprep.subr.bf16.mxu0 0
        %3760 = vmatpush1.bf16.msra.mxu0 0
        %3761 = vmatprep.subr.bf16.mxu0 0
        %3762 = vmatpush1.bf16.msra.mxu0 0
        %3763 = vmatprep.subr.bf16.mxu0 0
        %3764 = vmatpush1.bf16.msra.mxu0 0
        %3765 = vmatprep.subr.bf16.mxu0 0
        %3766 = vmatpush1.bf16.msra.mxu0 0
        %3767 = vmatprep.subr.bf16.mxu0 0
        %3768 = vmatpush1.bf16.msra.mxu0 0
        %3769 = vmatprep.subr.bf16.mxu0 0
        %3770 = vmatpush1.bf16.msra.mxu0 0
        %3771 = vmatprep.mubr.bf16.mxu0 0
        %3772 = vmatmul.mubr.bf16.gmra.mrb[0].mxu0 %v3697
        %v3773 = vpop.f32.mrb[0].mxu0
        %v3774 = vadd.f32 %v3734, %v3773
        %v3775 = vpop.f32.mrb[0].mxu0
        %v3776 = vpop.f32.mrb[0].mxu0
        %v3777 = vpop.f32.mrb[0].mxu0
        %3778 = vdwg.mxu0
        %v3779 = vadd.f32 %v3545, %v3774
        %s3780 = scalar_lea.vmem %s6, 720
        %v3781 = vld [vmem:[%s3780] sm:$0xf]
        %v3782 = vld [vmem:[%s3780 + $0x4] sm:$0xf]
        %v3783 = vld [vmem:[%s3780 + $0x8] sm:$0xf]
        %v3784 = vld [vmem:[%s3780 + $0xc] sm:$0xf]
        %v3785 = vld [vmem:[%s3780 + $0x10] sm:$0xf]
        %v3786 = vld [vmem:[%s3780 + $0x14] sm:$0xf]
        %v3787 = vld [vmem:[%s3780 + $0x18] sm:$0xf]
        %v3788 = vld [vmem:[%s3780 + $0x1c] sm:$0xf]
        %v3789 = vld [vmem:[%s3780 + $0x20] sm:$0xf]
        %v3790 = vld [vmem:[%s3780 + $0x24] sm:$0xf]
        %v3791 = vld [vmem:[%s3780 + $0x28] sm:$0xf]
        %v3792 = vld [vmem:[%s3780 + $0x2c] sm:$0xf]
        %v3793 = vld [vmem:[%s3780 + $0x30] sm:$0xf]
        %v3794 = vld [vmem:[%s3780 + $0x34] sm:$0xf]
        %v3795 = vld [vmem:[%s3780 + $0x38] sm:$0xf]
        %v3796 = vld [vmem:[%s3780 + $0x3c] sm:$0xf]
        %v3797 = vld [vmem:[%s3780 + $0x40] sm:$0xf]
        %v3798 = vld [vmem:[%s3780 + $0x44] sm:$0xf]
        %v3799 = vld [vmem:[%s3780 + $0x48] sm:$0xf]
        %v3800 = vld [vmem:[%s3780 + $0x4c] sm:$0xf]
        %v3801 = vld [vmem:[%s3780 + $0x50] sm:$0xf]
        %v3802 = vld [vmem:[%s3780 + $0x54] sm:$0xf]
        %v3803 = vld [vmem:[%s3780 + $0x58] sm:$0xf]
        %v3804 = vld [vmem:[%s3780 + $0x5c] sm:$0xf]
        %v3805 = vld [vmem:[%s3780 + $0x60] sm:$0xf]
        %v3806 = vld [vmem:[%s3780 + $0x64] sm:$0xf]
        %v3807 = vld [vmem:[%s3780 + $0x68] sm:$0xf]
        %v3808 = vld [vmem:[%s3780 + $0x6c] sm:$0xf]
        %v3809 = vld [vmem:[%s3780 + $0x70] sm:$0xf]
        %v3810 = vld [vmem:[%s3780 + $0x74] sm:$0xf]
        %v3811 = vld [vmem:[%s3780 + $0x78] sm:$0xf]
        %v3812 = vld [vmem:[%s3780 + $0x7c] sm:$0xf]
        %v3813 = vld [vmem:[%s3780 + $0x80] sm:$0xf]
        %v3814 = vld [vmem:[%s3780 + $0x84] sm:$0xf]
        %v3815 = vld [vmem:[%s3780 + $0x88] sm:$0xf]
        %v3816 = vld [vmem:[%s3780 + $0x8c] sm:$0xf]
        %v3817 = vrot.slane %v2683, 2
        %v3818 = vrot.slane %v2686, 2
        %v3819 = vrot.slane %v2689, 2
        %v3858 = vunpack.c.l.b16 %v3781
        %v3859 = vunpack.c.l.b16 %v3782
        %v3860 = vunpack.c.l.b16 %v3783
        %v3861 = vunpack.c.l.b16 %v3784
        %v3862 = vunpack.c.l.b16 %v3785
        %v3863 = vunpack.c.l.b16 %v3786
        %v3864 = vunpack.c.l.b16 %v3787
        %v3865 = vunpack.c.l.b16 %v3788
        %v3866 = vunpack.c.l.b16 %v3789
        %v3867 = vunpack.c.l.b16 %v3790
        %v3868 = vunpack.c.l.b16 %v3791
        %v3869 = vunpack.c.l.b16 %v3792
        %v3870 = vunpack.c.l.b16 %v3793
        %v3871 = vunpack.c.l.b16 %v3794
        %v3872 = vunpack.c.l.b16 %v3795
        %v3873 = vunpack.c.l.b16 %v3796
        %v3874 = vunpack.c.l.b16 %v3797
        %v3875 = vunpack.c.l.b16 %v3798
        %v3876 = vunpack.c.l.b16 %v3799
        %v3877 = vunpack.c.l.b16 %v3800
        %v3878 = vunpack.c.l.b16 %v3801
        %v3879 = vunpack.c.l.b16 %v3802
        %v3880 = vunpack.c.l.b16 %v3803
        %v3881 = vunpack.c.l.b16 %v3804
        %v3882 = vunpack.c.l.b16 %v3805
        %v3883 = vunpack.c.l.b16 %v3806
        %v3884 = vunpack.c.l.b16 %v3807
        %v3885 = vunpack.c.l.b16 %v3808
        %v3886 = vunpack.c.l.b16 %v3809
        %v3887 = vunpack.c.l.b16 %v3810
        %v3888 = vunpack.c.l.b16 %v3811
        %v3889 = vunpack.c.l.b16 %v3812
        %v3890 = vunpack.c.l.b16 %v3813
        %v3891 = vunpack.c.l.b16 %v3814
        %v3892 = vunpack.c.l.b16 %v3815
        %v3893 = vunpack.c.l.b16 %v3816
        %v3894 = vpack.c.b16 %v3859, %v3858
        %v3895 = vpack.c.b16 %v3861, %v3860
        %v3896 = vpack.c.b16 %v3863, %v3862
        %v3897 = vpack.c.b16 %v3865, %v3864
        %v3898 = vpack.c.b16 %v3867, %v3866
        %v3899 = vpack.c.b16 %v3869, %v3868
        %v3900 = vpack.c.b16 %v3871, %v3870
        %v3901 = vpack.c.b16 %v3873, %v3872
        %v3902 = vpack.c.b16 %v3875, %v3874
        %v3903 = vpack.c.b16 %v3877, %v3876
        %v3904 = vpack.c.b16 %v3879, %v3878
        %v3905 = vpack.c.b16 %v3881, %v3880
        %v3906 = vpack.c.b16 %v3883, %v3882
        %v3907 = vpack.c.b16 %v3885, %v3884
        %v3908 = vpack.c.b16 %v3887, %v3886
        %v3909 = vpack.c.b16 %v3889, %v3888
        %v3910 = vpack.c.b16 %v3891, %v3890
        %v3911 = vpack.c.b16 %v3893, %v3892
        %v3931 = vsel %vm2801, %v3819, 0
        %3933 = vmatprep.subr.bf16.mxu0 0
        %3934 = vmatpush1.bf16.msra.mxu0 %v3894
        %3935 = vmatprep.subr.bf16.mxu0 0
        %3936 = vmatpush1.bf16.msra.mxu0 %v3895
        %3937 = vmatprep.subr.bf16.mxu0 0
        %3938 = vmatpush1.bf16.msra.mxu0 %v3896
        %3939 = vmatprep.subr.bf16.mxu0 0
        %3940 = vmatpush1.bf16.msra.mxu0 %v3897
        %3941 = vmatprep.subr.bf16.mxu0 0
        %3942 = vmatpush1.bf16.msra.mxu0 %v3898
        %3943 = vmatprep.subr.bf16.mxu0 0
        %3944 = vmatpush1.bf16.msra.mxu0 %v3899
        %3945 = vmatprep.subr.bf16.mxu0 0
        %3946 = vmatpush1.bf16.msra.mxu0 %v3900
        %3947 = vmatprep.subr.bf16.mxu0 0
        %3948 = vmatpush1.bf16.msra.mxu0 %v3901
        %3949 = vmatprep.subr.bf16.mxu0 0
        %3950 = vmatpush1.bf16.msra.mxu0 %v3902
        %3951 = vmatprep.subr.bf16.mxu0 0
        %3952 = vmatpush1.bf16.msra.mxu0 %v3903
        %3953 = vmatprep.subr.bf16.mxu0 0
        %3954 = vmatpush1.bf16.msra.mxu0 %v3904
        %3955 = vmatprep.subr.bf16.mxu0 0
        %3956 = vmatpush1.bf16.msra.mxu0 %v3905
        %3957 = vmatprep.subr.bf16.mxu0 0
        %3958 = vmatpush1.bf16.msra.mxu0 %v3906
        %3959 = vmatprep.subr.bf16.mxu0 0
        %3960 = vmatpush1.bf16.msra.mxu0 %v3907
        %3961 = vmatprep.subr.bf16.mxu0 0
        %3962 = vmatpush1.bf16.msra.mxu0 %v3908
        %3963 = vmatprep.subr.bf16.mxu0 0
        %3964 = vmatpush1.bf16.msra.mxu0 %v3909
        %3965 = vmatprep.mubr.bf16.mxu0 %v3818
        %3966 = vmatmul.mubr.bf16.gmra.mrb[0].mxu0 %v3817
        %v3967 = vpop.f32.mrb[0].mxu0
        %v3968 = vadd.f32 0.0, %v3967
        %v3969 = vpop.f32.mrb[0].mxu0
        %v3970 = vpop.f32.mrb[0].mxu0
        %v3971 = vpop.f32.mrb[0].mxu0
        %3972 = vdwg.mxu0
        %3973 = vmatprep.subr.bf16.mxu0 0
        %3974 = vmatpush1.bf16.msra.mxu0 %v3910
        %3975 = vmatprep.subr.bf16.mxu0 0
        %3976 = vmatpush1.bf16.msra.mxu0 %v3911
        %3977 = vmatprep.subr.bf16.mxu0 0
        %3978 = vmatpush1.bf16.msra.mxu0 0
        %3979 = vmatprep.subr.bf16.mxu0 0
        %3980 = vmatpush1.bf16.msra.mxu0 0
        %3981 = vmatprep.subr.bf16.mxu0 0
        %3982 = vmatpush1.bf16.msra.mxu0 0
        %3983 = vmatprep.subr.bf16.mxu0 0
        %3984 = vmatpush1.bf16.msra.mxu0 0
        %3985 = vmatprep.subr.bf16.mxu0 0
        %3986 = vmatpush1.bf16.msra.mxu0 0
        %3987 = vmatprep.subr.bf16.mxu0 0
        %3988 = vmatpush1.bf16.msra.mxu0 0
        %3989 = vmatprep.subr.bf16.mxu0 0
        %3990 = vmatpush1.bf16.msra.mxu0 0
        %3991 = vmatprep.subr.bf16.mxu0 0
        %3992 = vmatpush1.bf16.msra.mxu0 0
        %3993 = vmatprep.subr.bf16.mxu0 0
        %3994 = vmatpush1.bf16.msra.mxu0 0
        %3995 = vmatprep.subr.bf16.mxu0 0
        %3996 = vmatpush1.bf16.msra.mxu0 0
        %3997 = vmatprep.subr.bf16.mxu0 0
        %3998 = vmatpush1.bf16.msra.mxu0 0
        %3999 = vmatprep.subr.bf16.mxu0 0
        %4000 = vmatpush1.bf16.msra.mxu0 0
        %4001 = vmatprep.subr.bf16.mxu0 0
        %4002 = vmatpush1.bf16.msra.mxu0 0
        %4003 = vmatprep.subr.bf16.mxu0 0
        %4004 = vmatpush1.bf16.msra.mxu0 0
        %4005 = vmatprep.mubr.bf16.mxu0 0
        %4006 = vmatmul.mubr.bf16.gmra.mrb[0].mxu0 %v3931
        %v4007 = vpop.f32.mrb[0].mxu0
        %v4008 = vadd.f32 %v3968, %v4007
        %v4009 = vpop.f32.mrb[0].mxu0
        %v4010 = vpop.f32.mrb[0].mxu0
        %v4011 = vpop.f32.mrb[0].mxu0
        %4012 = vdwg.mxu0
        %v4013 = vadd.f32 %v3779, %v4008
        %s4014 = scalar_lea.vmem %s6, 864
        %v4015 = vld [vmem:[%s4014] sm:$0xf]
        %v4016 = vld [vmem:[%s4014 + $0x4] sm:$0xf]
        %v4017 = vld [vmem:[%s4014 + $0x8] sm:$0xf]
        %v4018 = vld [vmem:[%s4014 + $0xc] sm:$0xf]
        %v4019 = vld [vmem:[%s4014 + $0x10] sm:$0xf]
        %v4020 = vld [vmem:[%s4014 + $0x14] sm:$0xf]
        %v4021 = vld [vmem:[%s4014 + $0x18] sm:$0xf]
        %v4022 = vld [vmem:[%s4014 + $0x1c] sm:$0xf]
        %v4023 = vld [vmem:[%s4014 + $0x20] sm:$0xf]
        %v4024 = vld [vmem:[%s4014 + $0x24] sm:$0xf]
        %v4025 = vld [vmem:[%s4014 + $0x28] sm:$0xf]
        %v4026 = vld [vmem:[%s4014 + $0x2c] sm:$0xf]
        %v4027 = vld [vmem:[%s4014 + $0x30] sm:$0xf]
        %v4028 = vld [vmem:[%s4014 + $0x34] sm:$0xf]
        %v4029 = vld [vmem:[%s4014 + $0x38] sm:$0xf]
        %v4030 = vld [vmem:[%s4014 + $0x3c] sm:$0xf]
        %v4031 = vld [vmem:[%s4014 + $0x40] sm:$0xf]
        %v4032 = vld [vmem:[%s4014 + $0x44] sm:$0xf]
        %v4033 = vld [vmem:[%s4014 + $0x48] sm:$0xf]
        %v4034 = vld [vmem:[%s4014 + $0x4c] sm:$0xf]
        %v4035 = vld [vmem:[%s4014 + $0x50] sm:$0xf]
        %v4036 = vld [vmem:[%s4014 + $0x54] sm:$0xf]
        %v4037 = vld [vmem:[%s4014 + $0x58] sm:$0xf]
        %v4038 = vld [vmem:[%s4014 + $0x5c] sm:$0xf]
        %v4039 = vld [vmem:[%s4014 + $0x60] sm:$0xf]
        %v4040 = vld [vmem:[%s4014 + $0x64] sm:$0xf]
        %v4041 = vld [vmem:[%s4014 + $0x68] sm:$0xf]
        %v4042 = vld [vmem:[%s4014 + $0x6c] sm:$0xf]
        %v4043 = vld [vmem:[%s4014 + $0x70] sm:$0xf]
        %v4044 = vld [vmem:[%s4014 + $0x74] sm:$0xf]
        %v4045 = vld [vmem:[%s4014 + $0x78] sm:$0xf]
        %v4046 = vld [vmem:[%s4014 + $0x7c] sm:$0xf]
        %v4047 = vld [vmem:[%s4014 + $0x80] sm:$0xf]
        %v4048 = vld [vmem:[%s4014 + $0x84] sm:$0xf]
        %v4049 = vld [vmem:[%s4014 + $0x88] sm:$0xf]
        %v4050 = vld [vmem:[%s4014 + $0x8c] sm:$0xf]
        %v4051 = vrot.slane %v2606, 3
        %v4052 = vrot.slane %v2607, 3
        %v4053 = vrot.slane %v2608, 3
        %v4092 = vunpack.c.l.b16 %v4015
        %v4093 = vunpack.c.l.b16 %v4016
        %v4094 = vunpack.c.l.b16 %v4017
        %v4095 = vunpack.c.l.b16 %v4018
        %v4096 = vunpack.c.l.b16 %v4019
        %v4097 = vunpack.c.l.b16 %v4020
        %v4098 = vunpack.c.l.b16 %v4021
        %v4099 = vunpack.c.l.b16 %v4022
        %v4100 = vunpack.c.l.b16 %v4023
        %v4101 = vunpack.c.l.b16 %v4024
        %v4102 = vunpack.c.l.b16 %v4025
        %v4103 = vunpack.c.l.b16 %v4026
        %v4104 = vunpack.c.l.b16 %v4027
        %v4105 = vunpack.c.l.b16 %v4028
        %v4106 = vunpack.c.l.b16 %v4029
        %v4107 = vunpack.c.l.b16 %v4030
        %v4108 = vunpack.c.l.b16 %v4031
        %v4109 = vunpack.c.l.b16 %v4032
        %v4110 = vunpack.c.l.b16 %v4033
        %v4111 = vunpack.c.l.b16 %v4034
        %v4112 = vunpack.c.l.b16 %v4035
        %v4113 = vunpack.c.l.b16 %v4036
        %v4114 = vunpack.c.l.b16 %v4037
        %v4115 = vunpack.c.l.b16 %v4038
        %v4116 = vunpack.c.l.b16 %v4039
        %v4117 = vunpack.c.l.b16 %v4040
        %v4118 = vunpack.c.l.b16 %v4041
        %v4119 = vunpack.c.l.b16 %v4042
        %v4120 = vunpack.c.l.b16 %v4043
        %v4121 = vunpack.c.l.b16 %v4044
        %v4122 = vunpack.c.l.b16 %v4045
        %v4123 = vunpack.c.l.b16 %v4046
        %v4124 = vunpack.c.l.b16 %v4047
        %v4125 = vunpack.c.l.b16 %v4048
        %v4126 = vunpack.c.l.b16 %v4049
        %v4127 = vunpack.c.l.b16 %v4050
        %v4128 = vpack.c.b16 %v4093, %v4092
        %v4129 = vpack.c.b16 %v4095, %v4094
        %v4130 = vpack.c.b16 %v4097, %v4096
        %v4131 = vpack.c.b16 %v4099, %v4098
        %v4132 = vpack.c.b16 %v4101, %v4100
        %v4133 = vpack.c.b16 %v4103, %v4102
        %v4134 = vpack.c.b16 %v4105, %v4104
        %v4135 = vpack.c.b16 %v4107, %v4106
        %v4136 = vpack.c.b16 %v4109, %v4108
        %v4137 = vpack.c.b16 %v4111, %v4110
        %v4138 = vpack.c.b16 %v4113, %v4112
        %v4139 = vpack.c.b16 %v4115, %v4114
        %v4140 = vpack.c.b16 %v4117, %v4116
        %v4141 = vpack.c.b16 %v4119, %v4118
        %v4142 = vpack.c.b16 %v4121, %v4120
        %v4143 = vpack.c.b16 %v4123, %v4122
        %v4144 = vpack.c.b16 %v4125, %v4124
        %v4145 = vpack.c.b16 %v4127, %v4126
        %v4165 = vsel %vm2801, %v4053, 0
        %4167 = vmatprep.subr.bf16.mxu0 0
        %4168 = vmatpush1.bf16.msra.mxu0 %v4128
        %4169 = vmatprep.subr.bf16.mxu0 0
        %4170 = vmatpush1.bf16.msra.mxu0 %v4129
        %4171 = vmatprep.subr.bf16.mxu0 0
        %4172 = vmatpush1.bf16.msra.mxu0 %v4130
        %4173 = vmatprep.subr.bf16.mxu0 0
        %4174 = vmatpush1.bf16.msra.mxu0 %v4131
        %4175 = vmatprep.subr.bf16.mxu0 0
        %4176 = vmatpush1.bf16.msra.mxu0 %v4132
        %4177 = vmatprep.subr.bf16.mxu0 0
        %4178 = vmatpush1.bf16.msra.mxu0 %v4133
        %4179 = vmatprep.subr.bf16.mxu0 0
        %4180 = vmatpush1.bf16.msra.mxu0 %v4134
        %4181 = vmatprep.subr.bf16.mxu0 0
        %4182 = vmatpush1.bf16.msra.mxu0 %v4135
        %4183 = vmatprep.subr.bf16.mxu0 0
        %4184 = vmatpush1.bf16.msra.mxu0 %v4136
        %4185 = vmatprep.subr.bf16.mxu0 0
        %4186 = vmatpush1.bf16.msra.mxu0 %v4137
        %4187 = vmatprep.subr.bf16.mxu0 0
        %4188 = vmatpush1.bf16.msra.mxu0 %v4138
        %4189 = vmatprep.subr.bf16.mxu0 0
        %4190 = vmatpush1.bf16.msra.mxu0 %v4139
        %4191 = vmatprep.subr.bf16.mxu0 0
        %4192 = vmatpush1.bf16.msra.mxu0 %v4140
        %4193 = vmatprep.subr.bf16.mxu0 0
        %4194 = vmatpush1.bf16.msra.mxu0 %v4141
        %4195 = vmatprep.subr.bf16.mxu0 0
        %4196 = vmatpush1.bf16.msra.mxu0 %v4142
        %4197 = vmatprep.subr.bf16.mxu0 0
        %4198 = vmatpush1.bf16.msra.mxu0 %v4143
        %4199 = vmatprep.mubr.bf16.mxu0 %v4052
        %4200 = vmatmul.mubr.bf16.gmra.mrb[0].mxu0 %v4051
        %v4201 = vpop.f32.mrb[0].mxu0
        %v4202 = vadd.f32 0.0, %v4201
        %v4203 = vpop.f32.mrb[0].mxu0
        %v4204 = vpop.f32.mrb[0].mxu0
        %v4205 = vpop.f32.mrb[0].mxu0
        %4206 = vdwg.mxu0
        %4207 = vmatprep.subr.bf16.mxu0 0
        %4208 = vmatpush1.bf16.msra.mxu0 %v4144
        %4209 = vmatprep.subr.bf16.mxu0 0
        %4210 = vmatpush1.bf16.msra.mxu0 %v4145
        %4211 = vmatprep.subr.bf16.mxu0 0
        %4212 = vmatpush1.bf16.msra.mxu0 0
        %4213 = vmatprep.subr.bf16.mxu0 0
        %4214 = vmatpush1.bf16.msra.mxu0 0
        %4215 = vmatprep.subr.bf16.mxu0 0
        %4216 = vmatpush1.bf16.msra.mxu0 0
        %4217 = vmatprep.subr.bf16.mxu0 0
        %4218 = vmatpush1.bf16.msra.mxu0 0
        %4219 = vmatprep.subr.bf16.mxu0 0
        %4220 = vmatpush1.bf16.msra.mxu0 0
        %4221 = vmatprep.subr.bf16.mxu0 0
        %4222 = vmatpush1.bf16.msra.mxu0 0
        %4223 = vmatprep.subr.bf16.mxu0 0
        %4224 = vmatpush1.bf16.msra.mxu0 0
        %4225 = vmatprep.subr.bf16.mxu0 0
        %4226 = vmatpush1.bf16.msra.mxu0 0
        %4227 = vmatprep.subr.bf16.mxu0 0
        %4228 = vmatpush1.bf16.msra.mxu0 0
        %4229 = vmatprep.subr.bf16.mxu0 0
        %4230 = vmatpush1.bf16.msra.mxu0 0
        %4231 = vmatprep.subr.bf16.mxu0 0
        %4232 = vmatpush1.bf16.msra.mxu0 0
        %4233 = vmatprep.subr.bf16.mxu0 0
        %4234 = vmatpush1.bf16.msra.mxu0 0
        %4235 = vmatprep.subr.bf16.mxu0 0
        %4236 = vmatpush1.bf16.msra.mxu0 0
        %4237 = vmatprep.subr.bf16.mxu0 0
        %4238 = vmatpush1.bf16.msra.mxu0 0
        %4239 = vmatprep.mubr.bf16.mxu0 0
        %4240 = vmatmul.mubr.bf16.gmra.mrb[0].mxu0 %v4165
        %v4241 = vpop.f32.mrb[0].mxu0
        %v4242 = vadd.f32 %v4202, %v4241
        %v4243 = vpop.f32.mrb[0].mxu0
        %v4244 = vpop.f32.mrb[0].mxu0
        %v4245 = vpop.f32.mrb[0].mxu0
        %4246 = vdwg.mxu0
        %v4247 = vadd.f32 %v4013, %v4242
        %s4248 = scalar_lea.vmem %s6, 1008
        %v4249 = vld [vmem:[%s4248] sm:$0xf]
        %v4250 = vld [vmem:[%s4248 + $0x4] sm:$0xf]
        %v4251 = vld [vmem:[%s4248 + $0x8] sm:$0xf]
        %v4252 = vld [vmem:[%s4248 + $0xc] sm:$0xf]
        %v4253 = vld [vmem:[%s4248 + $0x10] sm:$0xf]
        %v4254 = vld [vmem:[%s4248 + $0x14] sm:$0xf]
        %v4255 = vld [vmem:[%s4248 + $0x18] sm:$0xf]
        %v4256 = vld [vmem:[%s4248 + $0x1c] sm:$0xf]
        %v4257 = vld [vmem:[%s4248 + $0x20] sm:$0xf]
        %v4258 = vld [vmem:[%s4248 + $0x24] sm:$0xf]
        %v4259 = vld [vmem:[%s4248 + $0x28] sm:$0xf]
        %v4260 = vld [vmem:[%s4248 + $0x2c] sm:$0xf]
        %v4261 = vld [vmem:[%s4248 + $0x30] sm:$0xf]
        %v4262 = vld [vmem:[%s4248 + $0x34] sm:$0xf]
        %v4263 = vld [vmem:[%s4248 + $0x38] sm:$0xf]
        %v4264 = vld [vmem:[%s4248 + $0x3c] sm:$0xf]
        %v4265 = vld [vmem:[%s4248 + $0x40] sm:$0xf]
        %v4266 = vld [vmem:[%s4248 + $0x44] sm:$0xf]
        %v4267 = vld [vmem:[%s4248 + $0x48] sm:$0xf]
        %v4268 = vld [vmem:[%s4248 + $0x4c] sm:$0xf]
        %v4269 = vld [vmem:[%s4248 + $0x50] sm:$0xf]
        %v4270 = vld [vmem:[%s4248 + $0x54] sm:$0xf]
        %v4271 = vld [vmem:[%s4248 + $0x58] sm:$0xf]
        %v4272 = vld [vmem:[%s4248 + $0x5c] sm:$0xf]
        %v4273 = vld [vmem:[%s4248 + $0x60] sm:$0xf]
        %v4274 = vld [vmem:[%s4248 + $0x64] sm:$0xf]
        %v4275 = vld [vmem:[%s4248 + $0x68] sm:$0xf]
        %v4276 = vld [vmem:[%s4248 + $0x6c] sm:$0xf]
        %v4277 = vld [vmem:[%s4248 + $0x70] sm:$0xf]
        %v4278 = vld [vmem:[%s4248 + $0x74] sm:$0xf]
        %v4279 = vld [vmem:[%s4248 + $0x78] sm:$0xf]
        %v4280 = vld [vmem:[%s4248 + $0x7c] sm:$0xf]
        %v4281 = vld [vmem:[%s4248 + $0x80] sm:$0xf]
        %v4282 = vld [vmem:[%s4248 + $0x84] sm:$0xf]
        %v4283 = vld [vmem:[%s4248 + $0x88] sm:$0xf]
        %v4284 = vld [vmem:[%s4248 + $0x8c] sm:$0xf]
        %v4285 = vrot.slane %v2683, 3
        %v4286 = vrot.slane %v2686, 3
        %v4287 = vrot.slane %v2689, 3
        %v4326 = vunpack.c.l.b16 %v4249
        %v4327 = vunpack.c.l.b16 %v4250
        %v4328 = vunpack.c.l.b16 %v4251
        %v4329 = vunpack.c.l.b16 %v4252
        %v4330 = vunpack.c.l.b16 %v4253
        %v4331 = vunpack.c.l.b16 %v4254
        %v4332 = vunpack.c.l.b16 %v4255
        %v4333 = vunpack.c.l.b16 %v4256
        %v4334 = vunpack.c.l.b16 %v4257
        %v4335 = vunpack.c.l.b16 %v4258
        %v4336 = vunpack.c.l.b16 %v4259
        %v4337 = vunpack.c.l.b16 %v4260
        %v4338 = vunpack.c.l.b16 %v4261
        %v4339 = vunpack.c.l.b16 %v4262
        %v4340 = vunpack.c.l.b16 %v4263
        %v4341 = vunpack.c.l.b16 %v4264
        %v4342 = vunpack.c.l.b16 %v4265
        %v4343 = vunpack.c.l.b16 %v4266
        %v4344 = vunpack.c.l.b16 %v4267
        %v4345 = vunpack.c.l.b16 %v4268
        %v4346 = vunpack.c.l.b16 %v4269
        %v4347 = vunpack.c.l.b16 %v4270
        %v4348 = vunpack.c.l.b16 %v4271
        %v4349 = vunpack.c.l.b16 %v4272
        %v4350 = vunpack.c.l.b16 %v4273
        %v4351 = vunpack.c.l.b16 %v4274
        %v4352 = vunpack.c.l.b16 %v4275
        %v4353 = vunpack.c.l.b16 %v4276
        %v4354 = vunpack.c.l.b16 %v4277
        %v4355 = vunpack.c.l.b16 %v4278
        %v4356 = vunpack.c.l.b16 %v4279
        %v4357 = vunpack.c.l.b16 %v4280
        %v4358 = vunpack.c.l.b16 %v4281
        %v4359 = vunpack.c.l.b16 %v4282
        %v4360 = vunpack.c.l.b16 %v4283
        %v4361 = vunpack.c.l.b16 %v4284
        %v4362 = vpack.c.b16 %v4327, %v4326
        %v4363 = vpack.c.b16 %v4329, %v4328
        %v4364 = vpack.c.b16 %v4331, %v4330
        %v4365 = vpack.c.b16 %v4333, %v4332
        %v4366 = vpack.c.b16 %v4335, %v4334
        %v4367 = vpack.c.b16 %v4337, %v4336
        %v4368 = vpack.c.b16 %v4339, %v4338
        %v4369 = vpack.c.b16 %v4341, %v4340
        %v4370 = vpack.c.b16 %v4343, %v4342
        %v4371 = vpack.c.b16 %v4345, %v4344
        %v4372 = vpack.c.b16 %v4347, %v4346
        %v4373 = vpack.c.b16 %v4349, %v4348
        %v4374 = vpack.c.b16 %v4351, %v4350
        %v4375 = vpack.c.b16 %v4353, %v4352
        %v4376 = vpack.c.b16 %v4355, %v4354
        %v4377 = vpack.c.b16 %v4357, %v4356
        %v4378 = vpack.c.b16 %v4359, %v4358
        %v4379 = vpack.c.b16 %v4361, %v4360
        %v4399 = vsel %vm2801, %v4287, 0
        %4401 = vmatprep.subr.bf16.mxu0 0
        %4402 = vmatpush1.bf16.msra.mxu0 %v4362
        %4403 = vmatprep.subr.bf16.mxu0 0
        %4404 = vmatpush1.bf16.msra.mxu0 %v4363
        %4405 = vmatprep.subr.bf16.mxu0 0
        %4406 = vmatpush1.bf16.msra.mxu0 %v4364
        %4407 = vmatprep.subr.bf16.mxu0 0
        %4408 = vmatpush1.bf16.msra.mxu0 %v4365
        %4409 = vmatprep.subr.bf16.mxu0 0
        %4410 = vmatpush1.bf16.msra.mxu0 %v4366
        %4411 = vmatprep.subr.bf16.mxu0 0
        %4412 = vmatpush1.bf16.msra.mxu0 %v4367
        %4413 = vmatprep.subr.bf16.mxu0 0
        %4414 = vmatpush1.bf16.msra.mxu0 %v4368
        %4415 = vmatprep.subr.bf16.mxu0 0
        %4416 = vmatpush1.bf16.msra.mxu0 %v4369
        %4417 = vmatprep.subr.bf16.mxu0 0
        %4418 = vmatpush1.bf16.msra.mxu0 %v4370
        %4419 = vmatprep.subr.bf16.mxu0 0
        %4420 = vmatpush1.bf16.msra.mxu0 %v4371
        %4421 = vmatprep.subr.bf16.mxu0 0
        %4422 = vmatpush1.bf16.msra.mxu0 %v4372
        %4423 = vmatprep.subr.bf16.mxu0 0
        %4424 = vmatpush1.bf16.msra.mxu0 %v4373
        %4425 = vmatprep.subr.bf16.mxu0 0
        %4426 = vmatpush1.bf16.msra.mxu0 %v4374
        %4427 = vmatprep.subr.bf16.mxu0 0
        %4428 = vmatpush1.bf16.msra.mxu0 %v4375
        %4429 = vmatprep.subr.bf16.mxu0 0
        %4430 = vmatpush1.bf16.msra.mxu0 %v4376
        %4431 = vmatprep.subr.bf16.mxu0 0
        %4432 = vmatpush1.bf16.msra.mxu0 %v4377
        %4433 = vmatprep.mubr.bf16.mxu0 %v4286
        %4434 = vmatmul.mubr.bf16.gmra.mrb[0].mxu0 %v4285
        %v4435 = vpop.f32.mrb[0].mxu0
        %v4436 = vadd.f32 0.0, %v4435
        %v4437 = vpop.f32.mrb[0].mxu0
        %v4438 = vpop.f32.mrb[0].mxu0
        %v4439 = vpop.f32.mrb[0].mxu0
        %4440 = vdwg.mxu0
        %4441 = vmatprep.subr.bf16.mxu0 0
        %4442 = vmatpush1.bf16.msra.mxu0 %v4378
        %4443 = vmatprep.subr.bf16.mxu0 0
        %4444 = vmatpush1.bf16.msra.mxu0 %v4379
        %4445 = vmatprep.subr.bf16.mxu0 0
        %4446 = vmatpush1.bf16.msra.mxu0 0
        %4447 = vmatprep.subr.bf16.mxu0 0
        %4448 = vmatpush1.bf16.msra.mxu0 0
        %4449 = vmatprep.subr.bf16.mxu0 0
        %4450 = vmatpush1.bf16.msra.mxu0 0
        %4451 = vmatprep.subr.bf16.mxu0 0
        %4452 = vmatpush1.bf16.msra.mxu0 0
        %4453 = vmatprep.subr.bf16.mxu0 0
        %4454 = vmatpush1.bf16.msra.mxu0 0
        %4455 = vmatprep.subr.bf16.mxu0 0
        %4456 = vmatpush1.bf16.msra.mxu0 0
        %4457 = vmatprep.subr.bf16.mxu0 0
        %4458 = vmatpush1.bf16.msra.mxu0 0
        %4459 = vmatprep.subr.bf16.mxu0 0
        %4460 = vmatpush1.bf16.msra.mxu0 0
        %4461 = vmatprep.subr.bf16.mxu0 0
        %4462 = vmatpush1.bf16.msra.mxu0 0
        %4463 = vmatprep.subr.bf16.mxu0 0
        %4464 = vmatpush1.bf16.msra.mxu0 0
        %4465 = vmatprep.subr.bf16.mxu0 0
        %4466 = vmatpush1.bf16.msra.mxu0 0
        %4467 = vmatprep.subr.bf16.mxu0 0
        %4468 = vmatpush1.bf16.msra.mxu0 0
        %4469 = vmatprep.subr.bf16.mxu0 0
        %4470 = vmatpush1.bf16.msra.mxu0 0
        %4471 = vmatprep.subr.bf16.mxu0 0
        %4472 = vmatpush1.bf16.msra.mxu0 0
        %4473 = vmatprep.mubr.bf16.mxu0 0
        %4474 = vmatmul.mubr.bf16.gmra.mrb[0].mxu0 %v4399
        %v4475 = vpop.f32.mrb[0].mxu0
        %v4476 = vadd.f32 %v4436, %v4475
        %v4477 = vpop.f32.mrb[0].mxu0
        %v4478 = vpop.f32.mrb[0].mxu0
        %v4479 = vpop.f32.mrb[0].mxu0
        %4480 = vdwg.mxu0
        %v4481 = vadd.f32 %v4247, %v4476
        %s4482 = scalar_lea.vmem %s6, 1152
        %v4483 = vld [vmem:[%s4482] sm:$0xf]
        %v4484 = vld [vmem:[%s4482 + $0x4] sm:$0xf]
        %v4485 = vld [vmem:[%s4482 + $0x8] sm:$0xf]
        %v4486 = vld [vmem:[%s4482 + $0xc] sm:$0xf]
        %v4487 = vld [vmem:[%s4482 + $0x10] sm:$0xf]
        %v4488 = vld [vmem:[%s4482 + $0x14] sm:$0xf]
        %v4489 = vld [vmem:[%s4482 + $0x18] sm:$0xf]
        %v4490 = vld [vmem:[%s4482 + $0x1c] sm:$0xf]
        %v4491 = vld [vmem:[%s4482 + $0x20] sm:$0xf]
        %v4492 = vld [vmem:[%s4482 + $0x24] sm:$0xf]
        %v4493 = vld [vmem:[%s4482 + $0x28] sm:$0xf]
        %v4494 = vld [vmem:[%s4482 + $0x2c] sm:$0xf]
        %v4495 = vld [vmem:[%s4482 + $0x30] sm:$0xf]
        %v4496 = vld [vmem:[%s4482 + $0x34] sm:$0xf]
        %v4497 = vld [vmem:[%s4482 + $0x38] sm:$0xf]
        %v4498 = vld [vmem:[%s4482 + $0x3c] sm:$0xf]
        %v4499 = vld [vmem:[%s4482 + $0x40] sm:$0xf]
        %v4500 = vld [vmem:[%s4482 + $0x44] sm:$0xf]
        %v4501 = vld [vmem:[%s4482 + $0x48] sm:$0xf]
        %v4502 = vld [vmem:[%s4482 + $0x4c] sm:$0xf]
        %v4503 = vld [vmem:[%s4482 + $0x50] sm:$0xf]
        %v4504 = vld [vmem:[%s4482 + $0x54] sm:$0xf]
        %v4505 = vld [vmem:[%s4482 + $0x58] sm:$0xf]
        %v4506 = vld [vmem:[%s4482 + $0x5c] sm:$0xf]
        %v4507 = vld [vmem:[%s4482 + $0x60] sm:$0xf]
        %v4508 = vld [vmem:[%s4482 + $0x64] sm:$0xf]
        %v4509 = vld [vmem:[%s4482 + $0x68] sm:$0xf]
        %v4510 = vld [vmem:[%s4482 + $0x6c] sm:$0xf]
        %v4511 = vld [vmem:[%s4482 + $0x70] sm:$0xf]
        %v4512 = vld [vmem:[%s4482 + $0x74] sm:$0xf]
        %v4513 = vld [vmem:[%s4482 + $0x78] sm:$0xf]
        %v4514 = vld [vmem:[%s4482 + $0x7c] sm:$0xf]
        %v4515 = vld [vmem:[%s4482 + $0x80] sm:$0xf]
        %v4516 = vld [vmem:[%s4482 + $0x84] sm:$0xf]
        %v4517 = vld [vmem:[%s4482 + $0x88] sm:$0xf]
        %v4518 = vld [vmem:[%s4482 + $0x8c] sm:$0xf]
        %v4519 = vrot.slane %v2606, 4
        %v4520 = vrot.slane %v2607, 4
        %v4521 = vrot.slane %v2608, 4
        %v4560 = vunpack.c.l.b16 %v4483
        %v4561 = vunpack.c.l.b16 %v4484
        %v4562 = vunpack.c.l.b16 %v4485
        %v4563 = vunpack.c.l.b16 %v4486
        %v4564 = vunpack.c.l.b16 %v4487
        %v4565 = vunpack.c.l.b16 %v4488
        %v4566 = vunpack.c.l.b16 %v4489
        %v4567 = vunpack.c.l.b16 %v4490
        %v4568 = vunpack.c.l.b16 %v4491
        %v4569 = vunpack.c.l.b16 %v4492
        %v4570 = vunpack.c.l.b16 %v4493
        %v4571 = vunpack.c.l.b16 %v4494
        %v4572 = vunpack.c.l.b16 %v4495
        %v4573 = vunpack.c.l.b16 %v4496
        %v4574 = vunpack.c.l.b16 %v4497
        %v4575 = vunpack.c.l.b16 %v4498
        %v4576 = vunpack.c.l.b16 %v4499
        %v4577 = vunpack.c.l.b16 %v4500
        %v4578 = vunpack.c.l.b16 %v4501
        %v4579 = vunpack.c.l.b16 %v4502
        %v4580 = vunpack.c.l.b16 %v4503
        %v4581 = vunpack.c.l.b16 %v4504
        %v4582 = vunpack.c.l.b16 %v4505
        %v4583 = vunpack.c.l.b16 %v4506
        %v4584 = vunpack.c.l.b16 %v4507
        %v4585 = vunpack.c.l.b16 %v4508
        %v4586 = vunpack.c.l.b16 %v4509
        %v4587 = vunpack.c.l.b16 %v4510
        %v4588 = vunpack.c.l.b16 %v4511
        %v4589 = vunpack.c.l.b16 %v4512
        %v4590 = vunpack.c.l.b16 %v4513
        %v4591 = vunpack.c.l.b16 %v4514
        %v4592 = vunpack.c.l.b16 %v4515
        %v4593 = vunpack.c.l.b16 %v4516
        %v4594 = vunpack.c.l.b16 %v4517
        %v4595 = vunpack.c.l.b16 %v4518
        %v4596 = vpack.c.b16 %v4561, %v4560
        %v4597 = vpack.c.b16 %v4563, %v4562
        %v4598 = vpack.c.b16 %v4565, %v4564
        %v4599 = vpack.c.b16 %v4567, %v4566
        %v4600 = vpack.c.b16 %v4569, %v4568
        %v4601 = vpack.c.b16 %v4571, %v4570
        %v4602 = vpack.c.b16 %v4573, %v4572
        %v4603 = vpack.c.b16 %v4575, %v4574
        %v4604 = vpack.c.b16 %v4577, %v4576
        %v4605 = vpack.c.b16 %v4579, %v4578
        %v4606 = vpack.c.b16 %v4581, %v4580
        %v4607 = vpack.c.b16 %v4583, %v4582
        %v4608 = vpack.c.b16 %v4585, %v4584
        %v4609 = vpack.c.b16 %v4587, %v4586
        %v4610 = vpack.c.b16 %v4589, %v4588
        %v4611 = vpack.c.b16 %v4591, %v4590
        %v4612 = vpack.c.b16 %v4593, %v4592
        %v4613 = vpack.c.b16 %v4595, %v4594
        %v4633 = vsel %vm2801, %v4521, 0
        %4635 = vmatprep.subr.bf16.mxu0 0
        %4636 = vmatpush1.bf16.msra.mxu0 %v4596
        %4637 = vmatprep.subr.bf16.mxu0 0
        %4638 = vmatpush1.bf16.msra.mxu0 %v4597
        %4639 = vmatprep.subr.bf16.mxu0 0
        %4640 = vmatpush1.bf16.msra.mxu0 %v4598
        %4641 = vmatprep.subr.bf16.mxu0 0
        %4642 = vmatpush1.bf16.msra.mxu0 %v4599
        %4643 = vmatprep.subr.bf16.mxu0 0
        %4644 = vmatpush1.bf16.msra.mxu0 %v4600
        %4645 = vmatprep.subr.bf16.mxu0 0
        %4646 = vmatpush1.bf16.msra.mxu0 %v4601
        %4647 = vmatprep.subr.bf16.mxu0 0
        %4648 = vmatpush1.bf16.msra.mxu0 %v4602
        %4649 = vmatprep.subr.bf16.mxu0 0
        %4650 = vmatpush1.bf16.msra.mxu0 %v4603
        %4651 = vmatprep.subr.bf16.mxu0 0
        %4652 = vmatpush1.bf16.msra.mxu0 %v4604
        %4653 = vmatprep.subr.bf16.mxu0 0
        %4654 = vmatpush1.bf16.msra.mxu0 %v4605
        %4655 = vmatprep.subr.bf16.mxu0 0
        %4656 = vmatpush1.bf16.msra.mxu0 %v4606
        %4657 = vmatprep.subr.bf16.mxu0 0
        %4658 = vmatpush1.bf16.msra.mxu0 %v4607
        %4659 = vmatprep.subr.bf16.mxu0 0
        %4660 = vmatpush1.bf16.msra.mxu0 %v4608
        %4661 = vmatprep.subr.bf16.mxu0 0
        %4662 = vmatpush1.bf16.msra.mxu0 %v4609
        %4663 = vmatprep.subr.bf16.mxu0 0
        %4664 = vmatpush1.bf16.msra.mxu0 %v4610
        %4665 = vmatprep.subr.bf16.mxu0 0
        %4666 = vmatpush1.bf16.msra.mxu0 %v4611
        %4667 = vmatprep.mubr.bf16.mxu0 %v4520
        %4668 = vmatmul.mubr.bf16.gmra.mrb[0].mxu0 %v4519
        %v4669 = vpop.f32.mrb[0].mxu0
        %v4670 = vadd.f32 0.0, %v4669
        %v4671 = vpop.f32.mrb[0].mxu0
        %v4672 = vpop.f32.mrb[0].mxu0
        %v4673 = vpop.f32.mrb[0].mxu0
        %4674 = vdwg.mxu0
        %4675 = vmatprep.subr.bf16.mxu0 0
        %4676 = vmatpush1.bf16.msra.mxu0 %v4612
        %4677 = vmatprep.subr.bf16.mxu0 0
        %4678 = vmatpush1.bf16.msra.mxu0 %v4613
        %4679 = vmatprep.subr.bf16.mxu0 0
        %4680 = vmatpush1.bf16.msra.mxu0 0
        %4681 = vmatprep.subr.bf16.mxu0 0
        %4682 = vmatpush1.bf16.msra.mxu0 0
        %4683 = vmatprep.subr.bf16.mxu0 0
        %4684 = vmatpush1.bf16.msra.mxu0 0
        %4685 = vmatprep.subr.bf16.mxu0 0
        %4686 = vmatpush1.bf16.msra.mxu0 0
        %4687 = vmatprep.subr.bf16.mxu0 0
        %4688 = vmatpush1.bf16.msra.mxu0 0
        %4689 = vmatprep.subr.bf16.mxu0 0
        %4690 = vmatpush1.bf16.msra.mxu0 0
        %4691 = vmatprep.subr.bf16.mxu0 0
        %4692 = vmatpush1.bf16.msra.mxu0 0
        %4693 = vmatprep.subr.bf16.mxu0 0
        %4694 = vmatpush1.bf16.msra.mxu0 0
        %4695 = vmatprep.subr.bf16.mxu0 0
        %4696 = vmatpush1.bf16.msra.mxu0 0
        %4697 = vmatprep.subr.bf16.mxu0 0
        %4698 = vmatpush1.bf16.msra.mxu0 0
        %4699 = vmatprep.subr.bf16.mxu0 0
        %4700 = vmatpush1.bf16.msra.mxu0 0
        %4701 = vmatprep.subr.bf16.mxu0 0
        %4702 = vmatpush1.bf16.msra.mxu0 0
        %4703 = vmatprep.subr.bf16.mxu0 0
        %4704 = vmatpush1.bf16.msra.mxu0 0
        %4705 = vmatprep.subr.bf16.mxu0 0
        %4706 = vmatpush1.bf16.msra.mxu0 0
        %4707 = vmatprep.mubr.bf16.mxu0 0
        %4708 = vmatmul.mubr.bf16.gmra.mrb[0].mxu0 %v4633
        %v4709 = vpop.f32.mrb[0].mxu0
        %v4710 = vadd.f32 %v4670, %v4709
        %v4711 = vpop.f32.mrb[0].mxu0
        %v4712 = vpop.f32.mrb[0].mxu0
        %v4713 = vpop.f32.mrb[0].mxu0
        %4714 = vdwg.mxu0
        %v4715 = vadd.f32 %v4481, %v4710
        %s4716 = scalar_lea.vmem %s6, 1296
        %v4717 = vld [vmem:[%s4716] sm:$0xf]
        %v4718 = vld [vmem:[%s4716 + $0x4] sm:$0xf]
        %v4719 = vld [vmem:[%s4716 + $0x8] sm:$0xf]
        %v4720 = vld [vmem:[%s4716 + $0xc] sm:$0xf]
        %v4721 = vld [vmem:[%s4716 + $0x10] sm:$0xf]
        %v4722 = vld [vmem:[%s4716 + $0x14] sm:$0xf]
        %v4723 = vld [vmem:[%s4716 + $0x18] sm:$0xf]
        %v4724 = vld [vmem:[%s4716 + $0x1c] sm:$0xf]
        %v4725 = vld [vmem:[%s4716 + $0x20] sm:$0xf]
        %v4726 = vld [vmem:[%s4716 + $0x24] sm:$0xf]
        %v4727 = vld [vmem:[%s4716 + $0x28] sm:$0xf]
        %v4728 = vld [vmem:[%s4716 + $0x2c] sm:$0xf]
        %v4729 = vld [vmem:[%s4716 + $0x30] sm:$0xf]
        %v4730 = vld [vmem:[%s4716 + $0x34] sm:$0xf]
        %v4731 = vld [vmem:[%s4716 + $0x38] sm:$0xf]
        %v4732 = vld [vmem:[%s4716 + $0x3c] sm:$0xf]
        %v4733 = vld [vmem:[%s4716 + $0x40] sm:$0xf]
        %v4734 = vld [vmem:[%s4716 + $0x44] sm:$0xf]
        %v4735 = vld [vmem:[%s4716 + $0x48] sm:$0xf]
        %v4736 = vld [vmem:[%s4716 + $0x4c] sm:$0xf]
        %v4737 = vld [vmem:[%s4716 + $0x50] sm:$0xf]
        %v4738 = vld [vmem:[%s4716 + $0x54] sm:$0xf]
        %v4739 = vld [vmem:[%s4716 + $0x58] sm:$0xf]
        %v4740 = vld [vmem:[%s4716 + $0x5c] sm:$0xf]
        %v4741 = vld [vmem:[%s4716 + $0x60] sm:$0xf]
        %v4742 = vld [vmem:[%s4716 + $0x64] sm:$0xf]
        %v4743 = vld [vmem:[%s4716 + $0x68] sm:$0xf]
        %v4744 = vld [vmem:[%s4716 + $0x6c] sm:$0xf]
        %v4745 = vld [vmem:[%s4716 + $0x70] sm:$0xf]
        %v4746 = vld [vmem:[%s4716 + $0x74] sm:$0xf]
        %v4747 = vld [vmem:[%s4716 + $0x78] sm:$0xf]
        %v4748 = vld [vmem:[%s4716 + $0x7c] sm:$0xf]
        %v4749 = vld [vmem:[%s4716 + $0x80] sm:$0xf]
        %v4750 = vld [vmem:[%s4716 + $0x84] sm:$0xf]
        %v4751 = vld [vmem:[%s4716 + $0x88] sm:$0xf]
        %v4752 = vld [vmem:[%s4716 + $0x8c] sm:$0xf]
        %v4753 = vrot.slane %v2683, 4
        %v4754 = vrot.slane %v2686, 4
        %v4755 = vrot.slane %v2689, 4
        %v4794 = vunpack.c.l.b16 %v4717
        %v4795 = vunpack.c.l.b16 %v4718
        %v4796 = vunpack.c.l.b16 %v4719
        %v4797 = vunpack.c.l.b16 %v4720
        %v4798 = vunpack.c.l.b16 %v4721
        %v4799 = vunpack.c.l.b16 %v4722
        %v4800 = vunpack.c.l.b16 %v4723
        %v4801 = vunpack.c.l.b16 %v4724
        %v4802 = vunpack.c.l.b16 %v4725
        %v4803 = vunpack.c.l.b16 %v4726
        %v4804 = vunpack.c.l.b16 %v4727
        %v4805 = vunpack.c.l.b16 %v4728
        %v4806 = vunpack.c.l.b16 %v4729
        %v4807 = vunpack.c.l.b16 %v4730
        %v4808 = vunpack.c.l.b16 %v4731
        %v4809 = vunpack.c.l.b16 %v4732
        %v4810 = vunpack.c.l.b16 %v4733
        %v4811 = vunpack.c.l.b16 %v4734
        %v4812 = vunpack.c.l.b16 %v4735
        %v4813 = vunpack.c.l.b16 %v4736
        %v4814 = vunpack.c.l.b16 %v4737
        %v4815 = vunpack.c.l.b16 %v4738
        %v4816 = vunpack.c.l.b16 %v4739
        %v4817 = vunpack.c.l.b16 %v4740
        %v4818 = vunpack.c.l.b16 %v4741
        %v4819 = vunpack.c.l.b16 %v4742
        %v4820 = vunpack.c.l.b16 %v4743
        %v4821 = vunpack.c.l.b16 %v4744
        %v4822 = vunpack.c.l.b16 %v4745
        %v4823 = vunpack.c.l.b16 %v4746
        %v4824 = vunpack.c.l.b16 %v4747
        %v4825 = vunpack.c.l.b16 %v4748
        %v4826 = vunpack.c.l.b16 %v4749
        %v4827 = vunpack.c.l.b16 %v4750
        %v4828 = vunpack.c.l.b16 %v4751
        %v4829 = vunpack.c.l.b16 %v4752
        %v4830 = vpack.c.b16 %v4795, %v4794
        %v4831 = vpack.c.b16 %v4797, %v4796
        %v4832 = vpack.c.b16 %v4799, %v4798
        %v4833 = vpack.c.b16 %v4801, %v4800
        %v4834 = vpack.c.b16 %v4803, %v4802
        %v4835 = vpack.c.b16 %v4805, %v4804
        %v4836 = vpack.c.b16 %v4807, %v4806
        %v4837 = vpack.c.b16 %v4809, %v4808
        %v4838 = vpack.c.b16 %v4811, %v4810
        %v4839 = vpack.c.b16 %v4813, %v4812
        %v4840 = vpack.c.b16 %v4815, %v4814
        %v4841 = vpack.c.b16 %v4817, %v4816
        %v4842 = vpack.c.b16 %v4819, %v4818
        %v4843 = vpack.c.b16 %v4821, %v4820
        %v4844 = vpack.c.b16 %v4823, %v4822
        %v4845 = vpack.c.b16 %v4825, %v4824
        %v4846 = vpack.c.b16 %v4827, %v4826
        %v4847 = vpack.c.b16 %v4829, %v4828
        %v4867 = vsel %vm2801, %v4755, 0
        %4869 = vmatprep.subr.bf16.mxu0 0
        %4870 = vmatpush1.bf16.msra.mxu0 %v4830
        %4871 = vmatprep.subr.bf16.mxu0 0
        %4872 = vmatpush1.bf16.msra.mxu0 %v4831
        %4873 = vmatprep.subr.bf16.mxu0 0
        %4874 = vmatpush1.bf16.msra.mxu0 %v4832
        %4875 = vmatprep.subr.bf16.mxu0 0
        %4876 = vmatpush1.bf16.msra.mxu0 %v4833
        %4877 = vmatprep.subr.bf16.mxu0 0
        %4878 = vmatpush1.bf16.msra.mxu0 %v4834
        %4879 = vmatprep.subr.bf16.mxu0 0
        %4880 = vmatpush1.bf16.msra.mxu0 %v4835
        %4881 = vmatprep.subr.bf16.mxu0 0
        %4882 = vmatpush1.bf16.msra.mxu0 %v4836
        %4883 = vmatprep.subr.bf16.mxu0 0
        %4884 = vmatpush1.bf16.msra.mxu0 %v4837
        %4885 = vmatprep.subr.bf16.mxu0 0
        %4886 = vmatpush1.bf16.msra.mxu0 %v4838
        %4887 = vmatprep.subr.bf16.mxu0 0
        %4888 = vmatpush1.bf16.msra.mxu0 %v4839
        %4889 = vmatprep.subr.bf16.mxu0 0
        %4890 = vmatpush1.bf16.msra.mxu0 %v4840
        %4891 = vmatprep.subr.bf16.mxu0 0
        %4892 = vmatpush1.bf16.msra.mxu0 %v4841
        %4893 = vmatprep.subr.bf16.mxu0 0
        %4894 = vmatpush1.bf16.msra.mxu0 %v4842
        %4895 = vmatprep.subr.bf16.mxu0 0
        %4896 = vmatpush1.bf16.msra.mxu0 %v4843
        %4897 = vmatprep.subr.bf16.mxu0 0
        %4898 = vmatpush1.bf16.msra.mxu0 %v4844
        %4899 = vmatprep.subr.bf16.mxu0 0
        %4900 = vmatpush1.bf16.msra.mxu0 %v4845
        %4901 = vmatprep.mubr.bf16.mxu0 %v4754
        %4902 = vmatmul.mubr.bf16.gmra.mrb[0].mxu0 %v4753
        %v4903 = vpop.f32.mrb[0].mxu0
        %v4904 = vadd.f32 0.0, %v4903
        %v4905 = vpop.f32.mrb[0].mxu0
        %v4906 = vpop.f32.mrb[0].mxu0
        %v4907 = vpop.f32.mrb[0].mxu0
        %4908 = vdwg.mxu0
        %4909 = vmatprep.subr.bf16.mxu0 0
        %4910 = vmatpush1.bf16.msra.mxu0 %v4846
        %4911 = vmatprep.subr.bf16.mxu0 0
        %4912 = vmatpush1.bf16.msra.mxu0 %v4847
        %4913 = vmatprep.subr.bf16.mxu0 0
        %4914 = vmatpush1.bf16.msra.mxu0 0
        %4915 = vmatprep.subr.bf16.mxu0 0
        %4916 = vmatpush1.bf16.msra.mxu0 0
        %4917 = vmatprep.subr.bf16.mxu0 0
        %4918 = vmatpush1.bf16.msra.mxu0 0
        %4919 = vmatprep.subr.bf16.mxu0 0
        %4920 = vmatpush1.bf16.msra.mxu0 0
        %4921 = vmatprep.subr.bf16.mxu0 0
        %4922 = vmatpush1.bf16.msra.mxu0 0
        %4923 = vmatprep.subr.bf16.mxu0 0
        %4924 = vmatpush1.bf16.msra.mxu0 0
        %4925 = vmatprep.subr.bf16.mxu0 0
        %4926 = vmatpush1.bf16.msra.mxu0 0
        %4927 = vmatprep.subr.bf16.mxu0 0
        %4928 = vmatpush1.bf16.msra.mxu0 0
        %4929 = vmatprep.subr.bf16.mxu0 0
        %4930 = vmatpush1.bf16.msra.mxu0 0
        %4931 = vmatprep.subr.bf16.mxu0 0
        %4932 = vmatpush1.bf16.msra.mxu0 0
        %4933 = vmatprep.subr.bf16.mxu0 0
        %4934 = vmatpush1.bf16.msra.mxu0 0
        %4935 = vmatprep.subr.bf16.mxu0 0
        %4936 = vmatpush1.bf16.msra.mxu0 0
        %4937 = vmatprep.subr.bf16.mxu0 0
        %4938 = vmatpush1.bf16.msra.mxu0 0
        %4939 = vmatprep.subr.bf16.mxu0 0
        %4940 = vmatpush1.bf16.msra.mxu0 0
        %4941 = vmatprep.mubr.bf16.mxu0 0
        %4942 = vmatmul.mubr.bf16.gmra.mrb[0].mxu0 %v4867
        %v4943 = vpop.f32.mrb[0].mxu0
        %v4944 = vadd.f32 %v4904, %v4943
        %v4945 = vpop.f32.mrb[0].mxu0
        %v4946 = vpop.f32.mrb[0].mxu0
        %v4947 = vpop.f32.mrb[0].mxu0
        %4948 = vdwg.mxu0
        %v4949 = vadd.f32 %v4715, %v4944
        %s4950 = scalar_lea.vmem %s6, 1440
        %v4951 = vld [vmem:[%s4950] sm:$0xf]
        %v4952 = vld [vmem:[%s4950 + $0x4] sm:$0xf]
        %v4953 = vld [vmem:[%s4950 + $0x8] sm:$0xf]
        %v4954 = vld [vmem:[%s4950 + $0xc] sm:$0xf]
        %v4955 = vld [vmem:[%s4950 + $0x10] sm:$0xf]
        %v4956 = vld [vmem:[%s4950 + $0x14] sm:$0xf]
        %v4957 = vld [vmem:[%s4950 + $0x18] sm:$0xf]
        %v4958 = vld [vmem:[%s4950 + $0x1c] sm:$0xf]
        %v4959 = vld [vmem:[%s4950 + $0x20] sm:$0xf]
        %v4960 = vld [vmem:[%s4950 + $0x24] sm:$0xf]
        %v4961 = vld [vmem:[%s4950 + $0x28] sm:$0xf]
        %v4962 = vld [vmem:[%s4950 + $0x2c] sm:$0xf]
        %v4963 = vld [vmem:[%s4950 + $0x30] sm:$0xf]
        %v4964 = vld [vmem:[%s4950 + $0x34] sm:$0xf]
        %v4965 = vld [vmem:[%s4950 + $0x38] sm:$0xf]
        %v4966 = vld [vmem:[%s4950 + $0x3c] sm:$0xf]
        %v4967 = vld [vmem:[%s4950 + $0x40] sm:$0xf]
        %v4968 = vld [vmem:[%s4950 + $0x44] sm:$0xf]
        %v4969 = vld [vmem:[%s4950 + $0x48] sm:$0xf]
        %v4970 = vld [vmem:[%s4950 + $0x4c] sm:$0xf]
        %v4971 = vld [vmem:[%s4950 + $0x50] sm:$0xf]
        %v4972 = vld [vmem:[%s4950 + $0x54] sm:$0xf]
        %v4973 = vld [vmem:[%s4950 + $0x58] sm:$0xf]
        %v4974 = vld [vmem:[%s4950 + $0x5c] sm:$0xf]
        %v4975 = vld [vmem:[%s4950 + $0x60] sm:$0xf]
        %v4976 = vld [vmem:[%s4950 + $0x64] sm:$0xf]
        %v4977 = vld [vmem:[%s4950 + $0x68] sm:$0xf]
        %v4978 = vld [vmem:[%s4950 + $0x6c] sm:$0xf]
        %v4979 = vld [vmem:[%s4950 + $0x70] sm:$0xf]
        %v4980 = vld [vmem:[%s4950 + $0x74] sm:$0xf]
        %v4981 = vld [vmem:[%s4950 + $0x78] sm:$0xf]
        %v4982 = vld [vmem:[%s4950 + $0x7c] sm:$0xf]
        %v4983 = vld [vmem:[%s4950 + $0x80] sm:$0xf]
        %v4984 = vld [vmem:[%s4950 + $0x84] sm:$0xf]
        %v4985 = vld [vmem:[%s4950 + $0x88] sm:$0xf]
        %v4986 = vld [vmem:[%s4950 + $0x8c] sm:$0xf]
        %v4987 = vrot.slane %v2606, 5
        %v4988 = vrot.slane %v2607, 5
        %v4989 = vrot.slane %v2608, 5
        %v5028 = vunpack.c.l.b16 %v4951
        %v5029 = vunpack.c.l.b16 %v4952
        %v5030 = vunpack.c.l.b16 %v4953
        %v5031 = vunpack.c.l.b16 %v4954
        %v5032 = vunpack.c.l.b16 %v4955
        %v5033 = vunpack.c.l.b16 %v4956
        %v5034 = vunpack.c.l.b16 %v4957
        %v5035 = vunpack.c.l.b16 %v4958
        %v5036 = vunpack.c.l.b16 %v4959
        %v5037 = vunpack.c.l.b16 %v4960
        %v5038 = vunpack.c.l.b16 %v4961
        %v5039 = vunpack.c.l.b16 %v4962
        %v5040 = vunpack.c.l.b16 %v4963
        %v5041 = vunpack.c.l.b16 %v4964
        %v5042 = vunpack.c.l.b16 %v4965
        %v5043 = vunpack.c.l.b16 %v4966
        %v5044 = vunpack.c.l.b16 %v4967
        %v5045 = vunpack.c.l.b16 %v4968
        %v5046 = vunpack.c.l.b16 %v4969
        %v5047 = vunpack.c.l.b16 %v4970
        %v5048 = vunpack.c.l.b16 %v4971
        %v5049 = vunpack.c.l.b16 %v4972
        %v5050 = vunpack.c.l.b16 %v4973
        %v5051 = vunpack.c.l.b16 %v4974
        %v5052 = vunpack.c.l.b16 %v4975
        %v5053 = vunpack.c.l.b16 %v4976
        %v5054 = vunpack.c.l.b16 %v4977
        %v5055 = vunpack.c.l.b16 %v4978
        %v5056 = vunpack.c.l.b16 %v4979
        %v5057 = vunpack.c.l.b16 %v4980
        %v5058 = vunpack.c.l.b16 %v4981
        %v5059 = vunpack.c.l.b16 %v4982
        %v5060 = vunpack.c.l.b16 %v4983
        %v5061 = vunpack.c.l.b16 %v4984
        %v5062 = vunpack.c.l.b16 %v4985
        %v5063 = vunpack.c.l.b16 %v4986
        %v5064 = vpack.c.b16 %v5029, %v5028
        %v5065 = vpack.c.b16 %v5031, %v5030
        %v5066 = vpack.c.b16 %v5033, %v5032
        %v5067 = vpack.c.b16 %v5035, %v5034
        %v5068 = vpack.c.b16 %v5037, %v5036
        %v5069 = vpack.c.b16 %v5039, %v5038
        %v5070 = vpack.c.b16 %v5041, %v5040
        %v5071 = vpack.c.b16 %v5043, %v5042
        %v5072 = vpack.c.b16 %v5045, %v5044
        %v5073 = vpack.c.b16 %v5047, %v5046
        %v5074 = vpack.c.b16 %v5049, %v5048
        %v5075 = vpack.c.b16 %v5051, %v5050
        %v5076 = vpack.c.b16 %v5053, %v5052
        %v5077 = vpack.c.b16 %v5055, %v5054
        %v5078 = vpack.c.b16 %v5057, %v5056
        %v5079 = vpack.c.b16 %v5059, %v5058
        %v5080 = vpack.c.b16 %v5061, %v5060
        %v5081 = vpack.c.b16 %v5063, %v5062
        %v5101 = vsel %vm2801, %v4989, 0
        %5103 = vmatprep.subr.bf16.mxu0 0
        %5104 = vmatpush1.bf16.msra.mxu0 %v5064
        %5105 = vmatprep.subr.bf16.mxu0 0
        %5106 = vmatpush1.bf16.msra.mxu0 %v5065
        %5107 = vmatprep.subr.bf16.mxu0 0
        %5108 = vmatpush1.bf16.msra.mxu0 %v5066
        %5109 = vmatprep.subr.bf16.mxu0 0
        %5110 = vmatpush1.bf16.msra.mxu0 %v5067
        %5111 = vmatprep.subr.bf16.mxu0 0
        %5112 = vmatpush1.bf16.msra.mxu0 %v5068
        %5113 = vmatprep.subr.bf16.mxu0 0
        %5114 = vmatpush1.bf16.msra.mxu0 %v5069
        %5115 = vmatprep.subr.bf16.mxu0 0
        %5116 = vmatpush1.bf16.msra.mxu0 %v5070
        %5117 = vmatprep.subr.bf16.mxu0 0
        %5118 = vmatpush1.bf16.msra.mxu0 %v5071
        %5119 = vmatprep.subr.bf16.mxu0 0
        %5120 = vmatpush1.bf16.msra.mxu0 %v5072
        %5121 = vmatprep.subr.bf16.mxu0 0
        %5122 = vmatpush1.bf16.msra.mxu0 %v5073
        %5123 = vmatprep.subr.bf16.mxu0 0
        %5124 = vmatpush1.bf16.msra.mxu0 %v5074
        %5125 = vmatprep.subr.bf16.mxu0 0
        %5126 = vmatpush1.bf16.msra.mxu0 %v5075
        %5127 = vmatprep.subr.bf16.mxu0 0
        %5128 = vmatpush1.bf16.msra.mxu0 %v5076
        %5129 = vmatprep.subr.bf16.mxu0 0
        %5130 = vmatpush1.bf16.msra.mxu0 %v5077
        %5131 = vmatprep.subr.bf16.mxu0 0
        %5132 = vmatpush1.bf16.msra.mxu0 %v5078
        %5133 = vmatprep.subr.bf16.mxu0 0
        %5134 = vmatpush1.bf16.msra.mxu0 %v5079
        %5135 = vmatprep.mubr.bf16.mxu0 %v4988
        %5136 = vmatmul.mubr.bf16.gmra.mrb[0].mxu0 %v4987
        %v5137 = vpop.f32.mrb[0].mxu0
        %v5138 = vadd.f32 0.0, %v5137
        %v5139 = vpop.f32.mrb[0].mxu0
        %v5140 = vpop.f32.mrb[0].mxu0
        %v5141 = vpop.f32.mrb[0].mxu0
        %5142 = vdwg.mxu0
        %5143 = vmatprep.subr.bf16.mxu0 0
        %5144 = vmatpush1.bf16.msra.mxu0 %v5080
        %5145 = vmatprep.subr.bf16.mxu0 0
        %5146 = vmatpush1.bf16.msra.mxu0 %v5081
        %5147 = vmatprep.subr.bf16.mxu0 0
        %5148 = vmatpush1.bf16.msra.mxu0 0
        %5149 = vmatprep.subr.bf16.mxu0 0
        %5150 = vmatpush1.bf16.msra.mxu0 0
        %5151 = vmatprep.subr.bf16.mxu0 0
        %5152 = vmatpush1.bf16.msra.mxu0 0
        %5153 = vmatprep.subr.bf16.mxu0 0
        %5154 = vmatpush1.bf16.msra.mxu0 0
        %5155 = vmatprep.subr.bf16.mxu0 0
        %5156 = vmatpush1.bf16.msra.mxu0 0
        %5157 = vmatprep.subr.bf16.mxu0 0
        %5158 = vmatpush1.bf16.msra.mxu0 0
        %5159 = vmatprep.subr.bf16.mxu0 0
        %5160 = vmatpush1.bf16.msra.mxu0 0
        %5161 = vmatprep.subr.bf16.mxu0 0
        %5162 = vmatpush1.bf16.msra.mxu0 0
        %5163 = vmatprep.subr.bf16.mxu0 0
        %5164 = vmatpush1.bf16.msra.mxu0 0
        %5165 = vmatprep.subr.bf16.mxu0 0
        %5166 = vmatpush1.bf16.msra.mxu0 0
        %5167 = vmatprep.subr.bf16.mxu0 0
        %5168 = vmatpush1.bf16.msra.mxu0 0
        %5169 = vmatprep.subr.bf16.mxu0 0
        %5170 = vmatpush1.bf16.msra.mxu0 0
        %5171 = vmatprep.subr.bf16.mxu0 0
        %5172 = vmatpush1.bf16.msra.mxu0 0
        %5173 = vmatprep.subr.bf16.mxu0 0
        %5174 = vmatpush1.bf16.msra.mxu0 0
        %5175 = vmatprep.mubr.bf16.mxu0 0
        %5176 = vmatmul.mubr.bf16.gmra.mrb[0].mxu0 %v5101
        %v5177 = vpop.f32.mrb[0].mxu0
        %v5178 = vadd.f32 %v5138, %v5177
        %v5179 = vpop.f32.mrb[0].mxu0
        %v5180 = vpop.f32.mrb[0].mxu0
        %v5181 = vpop.f32.mrb[0].mxu0
        %5182 = vdwg.mxu0
        %v5183 = vadd.f32 %v4949, %v5178
        %s5184 = scalar_lea.vmem %s6, 1584
        %v5185 = vld [vmem:[%s5184] sm:$0xf]
        %v5186 = vld [vmem:[%s5184 + $0x4] sm:$0xf]
        %v5187 = vld [vmem:[%s5184 + $0x8] sm:$0xf]
        %v5188 = vld [vmem:[%s5184 + $0xc] sm:$0xf]
        %v5189 = vld [vmem:[%s5184 + $0x10] sm:$0xf]
        %v5190 = vld [vmem:[%s5184 + $0x14] sm:$0xf]
        %v5191 = vld [vmem:[%s5184 + $0x18] sm:$0xf]
        %v5192 = vld [vmem:[%s5184 + $0x1c] sm:$0xf]
        %v5193 = vld [vmem:[%s5184 + $0x20] sm:$0xf]
        %v5194 = vld [vmem:[%s5184 + $0x24] sm:$0xf]
        %v5195 = vld [vmem:[%s5184 + $0x28] sm:$0xf]
        %v5196 = vld [vmem:[%s5184 + $0x2c] sm:$0xf]
        %v5197 = vld [vmem:[%s5184 + $0x30] sm:$0xf]
        %v5198 = vld [vmem:[%s5184 + $0x34] sm:$0xf]
        %v5199 = vld [vmem:[%s5184 + $0x38] sm:$0xf]
        %v5200 = vld [vmem:[%s5184 + $0x3c] sm:$0xf]
        %v5201 = vld [vmem:[%s5184 + $0x40] sm:$0xf]
        %v5202 = vld [vmem:[%s5184 + $0x44] sm:$0xf]
        %v5203 = vld [vmem:[%s5184 + $0x48] sm:$0xf]
        %v5204 = vld [vmem:[%s5184 + $0x4c] sm:$0xf]
        %v5205 = vld [vmem:[%s5184 + $0x50] sm:$0xf]
        %v5206 = vld [vmem:[%s5184 + $0x54] sm:$0xf]
        %v5207 = vld [vmem:[%s5184 + $0x58] sm:$0xf]
        %v5208 = vld [vmem:[%s5184 + $0x5c] sm:$0xf]
        %v5209 = vld [vmem:[%s5184 + $0x60] sm:$0xf]
        %v5210 = vld [vmem:[%s5184 + $0x64] sm:$0xf]
        %v5211 = vld [vmem:[%s5184 + $0x68] sm:$0xf]
        %v5212 = vld [vmem:[%s5184 + $0x6c] sm:$0xf]
        %v5213 = vld [vmem:[%s5184 + $0x70] sm:$0xf]
        %v5214 = vld [vmem:[%s5184 + $0x74] sm:$0xf]
        %v5215 = vld [vmem:[%s5184 + $0x78] sm:$0xf]
        %v5216 = vld [vmem:[%s5184 + $0x7c] sm:$0xf]
        %v5217 = vld [vmem:[%s5184 + $0x80] sm:$0xf]
        %v5218 = vld [vmem:[%s5184 + $0x84] sm:$0xf]
        %v5219 = vld [vmem:[%s5184 + $0x88] sm:$0xf]
        %v5220 = vld [vmem:[%s5184 + $0x8c] sm:$0xf]
        %v5221 = vrot.slane %v2683, 5
        %v5222 = vrot.slane %v2686, 5
        %v5223 = vrot.slane %v2689, 5
        %v5262 = vunpack.c.l.b16 %v5185
        %v5263 = vunpack.c.l.b16 %v5186
        %v5264 = vunpack.c.l.b16 %v5187
        %v5265 = vunpack.c.l.b16 %v5188
        %v5266 = vunpack.c.l.b16 %v5189
        %v5267 = vunpack.c.l.b16 %v5190
        %v5268 = vunpack.c.l.b16 %v5191
        %v5269 = vunpack.c.l.b16 %v5192
        %v5270 = vunpack.c.l.b16 %v5193
        %v5271 = vunpack.c.l.b16 %v5194
        %v5272 = vunpack.c.l.b16 %v5195
        %v5273 = vunpack.c.l.b16 %v5196
        %v5274 = vunpack.c.l.b16 %v5197
        %v5275 = vunpack.c.l.b16 %v5198
        %v5276 = vunpack.c.l.b16 %v5199
        %v5277 = vunpack.c.l.b16 %v5200
        %v5278 = vunpack.c.l.b16 %v5201
        %v5279 = vunpack.c.l.b16 %v5202
        %v5280 = vunpack.c.l.b16 %v5203
        %v5281 = vunpack.c.l.b16 %v5204
        %v5282 = vunpack.c.l.b16 %v5205
        %v5283 = vunpack.c.l.b16 %v5206
        %v5284 = vunpack.c.l.b16 %v5207
        %v5285 = vunpack.c.l.b16 %v5208
        %v5286 = vunpack.c.l.b16 %v5209
        %v5287 = vunpack.c.l.b16 %v5210
        %v5288 = vunpack.c.l.b16 %v5211
        %v5289 = vunpack.c.l.b16 %v5212
        %v5290 = vunpack.c.l.b16 %v5213
        %v5291 = vunpack.c.l.b16 %v5214
        %v5292 = vunpack.c.l.b16 %v5215
        %v5293 = vunpack.c.l.b16 %v5216
        %v5294 = vunpack.c.l.b16 %v5217
        %v5295 = vunpack.c.l.b16 %v5218
        %v5296 = vunpack.c.l.b16 %v5219
        %v5297 = vunpack.c.l.b16 %v5220
        %v5298 = vpack.c.b16 %v5263, %v5262
        %v5299 = vpack.c.b16 %v5265, %v5264
        %v5300 = vpack.c.b16 %v5267, %v5266
        %v5301 = vpack.c.b16 %v5269, %v5268
        %v5302 = vpack.c.b16 %v5271, %v5270
        %v5303 = vpack.c.b16 %v5273, %v5272
        %v5304 = vpack.c.b16 %v5275, %v5274
        %v5305 = vpack.c.b16 %v5277, %v5276
        %v5306 = vpack.c.b16 %v5279, %v5278
        %v5307 = vpack.c.b16 %v5281, %v5280
        %v5308 = vpack.c.b16 %v5283, %v5282
        %v5309 = vpack.c.b16 %v5285, %v5284
        %v5310 = vpack.c.b16 %v5287, %v5286
        %v5311 = vpack.c.b16 %v5289, %v5288
        %v5312 = vpack.c.b16 %v5291, %v5290
        %v5313 = vpack.c.b16 %v5293, %v5292
        %v5314 = vpack.c.b16 %v5295, %v5294
        %v5315 = vpack.c.b16 %v5297, %v5296
        %v5335 = vsel %vm2801, %v5223, 0
        %5337 = vmatprep.subr.bf16.mxu0 0
        %5338 = vmatpush1.bf16.msra.mxu0 %v5298
        %5339 = vmatprep.subr.bf16.mxu0 0
        %5340 = vmatpush1.bf16.msra.mxu0 %v5299
        %5341 = vmatprep.subr.bf16.mxu0 0
        %5342 = vmatpush1.bf16.msra.mxu0 %v5300
        %5343 = vmatprep.subr.bf16.mxu0 0
        %5344 = vmatpush1.bf16.msra.mxu0 %v5301
        %5345 = vmatprep.subr.bf16.mxu0 0
        %5346 = vmatpush1.bf16.msra.mxu0 %v5302
        %5347 = vmatprep.subr.bf16.mxu0 0
        %5348 = vmatpush1.bf16.msra.mxu0 %v5303
        %5349 = vmatprep.subr.bf16.mxu0 0
        %5350 = vmatpush1.bf16.msra.mxu0 %v5304
        %5351 = vmatprep.subr.bf16.mxu0 0
        %5352 = vmatpush1.bf16.msra.mxu0 %v5305
        %5353 = vmatprep.subr.bf16.mxu0 0
        %5354 = vmatpush1.bf16.msra.mxu0 %v5306
        %5355 = vmatprep.subr.bf16.mxu0 0
        %5356 = vmatpush1.bf16.msra.mxu0 %v5307
        %5357 = vmatprep.subr.bf16.mxu0 0
        %5358 = vmatpush1.bf16.msra.mxu0 %v5308
        %5359 = vmatprep.subr.bf16.mxu0 0
        %5360 = vmatpush1.bf16.msra.mxu0 %v5309
        %5361 = vmatprep.subr.bf16.mxu0 0
        %5362 = vmatpush1.bf16.msra.mxu0 %v5310
        %5363 = vmatprep.subr.bf16.mxu0 0
        %5364 = vmatpush1.bf16.msra.mxu0 %v5311
        %5365 = vmatprep.subr.bf16.mxu0 0
        %5366 = vmatpush1.bf16.msra.mxu0 %v5312
        %5367 = vmatprep.subr.bf16.mxu0 0
        %5368 = vmatpush1.bf16.msra.mxu0 %v5313
        %5369 = vmatprep.mubr.bf16.mxu0 %v5222
        %5370 = vmatmul.mubr.bf16.gmra.mrb[0].mxu0 %v5221
        %v5371 = vpop.f32.mrb[0].mxu0
        %v5372 = vadd.f32 0.0, %v5371
        %v5373 = vpop.f32.mrb[0].mxu0
        %v5374 = vpop.f32.mrb[0].mxu0
        %v5375 = vpop.f32.mrb[0].mxu0
        %5376 = vdwg.mxu0
        %5377 = vmatprep.subr.bf16.mxu0 0
        %5378 = vmatpush1.bf16.msra.mxu0 %v5314
        %5379 = vmatprep.subr.bf16.mxu0 0
        %5380 = vmatpush1.bf16.msra.mxu0 %v5315
        %5381 = vmatprep.subr.bf16.mxu0 0
        %5382 = vmatpush1.bf16.msra.mxu0 0
        %5383 = vmatprep.subr.bf16.mxu0 0
        %5384 = vmatpush1.bf16.msra.mxu0 0
        %5385 = vmatprep.subr.bf16.mxu0 0
        %5386 = vmatpush1.bf16.msra.mxu0 0
        %5387 = vmatprep.subr.bf16.mxu0 0
        %5388 = vmatpush1.bf16.msra.mxu0 0
        %5389 = vmatprep.subr.bf16.mxu0 0
        %5390 = vmatpush1.bf16.msra.mxu0 0
        %5391 = vmatprep.subr.bf16.mxu0 0
        %5392 = vmatpush1.bf16.msra.mxu0 0
        %5393 = vmatprep.subr.bf16.mxu0 0
        %5394 = vmatpush1.bf16.msra.mxu0 0
        %5395 = vmatprep.subr.bf16.mxu0 0
        %5396 = vmatpush1.bf16.msra.mxu0 0
        %5397 = vmatprep.subr.bf16.mxu0 0
        %5398 = vmatpush1.bf16.msra.mxu0 0
        %5399 = vmatprep.subr.bf16.mxu0 0
        %5400 = vmatpush1.bf16.msra.mxu0 0
        %5401 = vmatprep.subr.bf16.mxu0 0
        %5402 = vmatpush1.bf16.msra.mxu0 0
        %5403 = vmatprep.subr.bf16.mxu0 0
        %5404 = vmatpush1.bf16.msra.mxu0 0
        %5405 = vmatprep.subr.bf16.mxu0 0
        %5406 = vmatpush1.bf16.msra.mxu0 0
        %5407 = vmatprep.subr.bf16.mxu0 0
        %5408 = vmatpush1.bf16.msra.mxu0 0
        %5409 = vmatprep.mubr.bf16.mxu0 0
        %5410 = vmatmul.mubr.bf16.gmra.mrb[0].mxu0 %v5335
        %v5411 = vpop.f32.mrb[0].mxu0
        %v5412 = vadd.f32 %v5372, %v5411
        %v5413 = vpop.f32.mrb[0].mxu0
        %v5414 = vpop.f32.mrb[0].mxu0
        %v5415 = vpop.f32.mrb[0].mxu0
        %5416 = vdwg.mxu0
        %v5417 = vadd.f32 %v5183, %v5412
        %s5418 = scalar_lea.vmem %s6, 1728
        %v5419 = vld [vmem:[%s5418] sm:$0xf]
        %v5420 = vld [vmem:[%s5418 + $0x4] sm:$0xf]
        %v5421 = vld [vmem:[%s5418 + $0x8] sm:$0xf]
        %v5422 = vld [vmem:[%s5418 + $0xc] sm:$0xf]
        %v5423 = vld [vmem:[%s5418 + $0x10] sm:$0xf]
        %v5424 = vld [vmem:[%s5418 + $0x14] sm:$0xf]
        %v5425 = vld [vmem:[%s5418 + $0x18] sm:$0xf]
        %v5426 = vld [vmem:[%s5418 + $0x1c] sm:$0xf]
        %v5427 = vld [vmem:[%s5418 + $0x20] sm:$0xf]
        %v5428 = vld [vmem:[%s5418 + $0x24] sm:$0xf]
        %v5429 = vld [vmem:[%s5418 + $0x28] sm:$0xf]
        %v5430 = vld [vmem:[%s5418 + $0x2c] sm:$0xf]
        %v5431 = vld [vmem:[%s5418 + $0x30] sm:$0xf]
        %v5432 = vld [vmem:[%s5418 + $0x34] sm:$0xf]
        %v5433 = vld [vmem:[%s5418 + $0x38] sm:$0xf]
        %v5434 = vld [vmem:[%s5418 + $0x3c] sm:$0xf]
        %v5435 = vld [vmem:[%s5418 + $0x40] sm:$0xf]
        %v5436 = vld [vmem:[%s5418 + $0x44] sm:$0xf]
        %v5437 = vld [vmem:[%s5418 + $0x48] sm:$0xf]
        %v5438 = vld [vmem:[%s5418 + $0x4c] sm:$0xf]
        %v5439 = vld [vmem:[%s5418 + $0x50] sm:$0xf]
        %v5440 = vld [vmem:[%s5418 + $0x54] sm:$0xf]
        %v5441 = vld [vmem:[%s5418 + $0x58] sm:$0xf]
        %v5442 = vld [vmem:[%s5418 + $0x5c] sm:$0xf]
        %v5443 = vld [vmem:[%s5418 + $0x60] sm:$0xf]
        %v5444 = vld [vmem:[%s5418 + $0x64] sm:$0xf]
        %v5445 = vld [vmem:[%s5418 + $0x68] sm:$0xf]
        %v5446 = vld [vmem:[%s5418 + $0x6c] sm:$0xf]
        %v5447 = vld [vmem:[%s5418 + $0x70] sm:$0xf]
        %v5448 = vld [vmem:[%s5418 + $0x74] sm:$0xf]
        %v5449 = vld [vmem:[%s5418 + $0x78] sm:$0xf]
        %v5450 = vld [vmem:[%s5418 + $0x7c] sm:$0xf]
        %v5451 = vld [vmem:[%s5418 + $0x80] sm:$0xf]
        %v5452 = vld [vmem:[%s5418 + $0x84] sm:$0xf]
        %v5453 = vld [vmem:[%s5418 + $0x88] sm:$0xf]
        %v5454 = vld [vmem:[%s5418 + $0x8c] sm:$0xf]
        %v5455 = vrot.slane %v2606, 6
        %v5456 = vrot.slane %v2607, 6
        %v5457 = vrot.slane %v2608, 6
        %v5496 = vunpack.c.l.b16 %v5419
        %v5497 = vunpack.c.l.b16 %v5420
        %v5498 = vunpack.c.l.b16 %v5421
        %v5499 = vunpack.c.l.b16 %v5422
        %v5500 = vunpack.c.l.b16 %v5423
        %v5501 = vunpack.c.l.b16 %v5424
        %v5502 = vunpack.c.l.b16 %v5425
        %v5503 = vunpack.c.l.b16 %v5426
        %v5504 = vunpack.c.l.b16 %v5427
        %v5505 = vunpack.c.l.b16 %v5428
        %v5506 = vunpack.c.l.b16 %v5429
        %v5507 = vunpack.c.l.b16 %v5430
        %v5508 = vunpack.c.l.b16 %v5431
        %v5509 = vunpack.c.l.b16 %v5432
        %v5510 = vunpack.c.l.b16 %v5433
        %v5511 = vunpack.c.l.b16 %v5434
        %v5512 = vunpack.c.l.b16 %v5435
        %v5513 = vunpack.c.l.b16 %v5436
        %v5514 = vunpack.c.l.b16 %v5437
        %v5515 = vunpack.c.l.b16 %v5438
        %v5516 = vunpack.c.l.b16 %v5439
        %v5517 = vunpack.c.l.b16 %v5440
        %v5518 = vunpack.c.l.b16 %v5441
        %v5519 = vunpack.c.l.b16 %v5442
        %v5520 = vunpack.c.l.b16 %v5443
        %v5521 = vunpack.c.l.b16 %v5444
        %v5522 = vunpack.c.l.b16 %v5445
        %v5523 = vunpack.c.l.b16 %v5446
        %v5524 = vunpack.c.l.b16 %v5447
        %v5525 = vunpack.c.l.b16 %v5448
        %v5526 = vunpack.c.l.b16 %v5449
        %v5527 = vunpack.c.l.b16 %v5450
        %v5528 = vunpack.c.l.b16 %v5451
        %v5529 = vunpack.c.l.b16 %v5452
        %v5530 = vunpack.c.l.b16 %v5453
        %v5531 = vunpack.c.l.b16 %v5454
        %v5532 = vpack.c.b16 %v5497, %v5496
        %v5533 = vpack.c.b16 %v5499, %v5498
        %v5534 = vpack.c.b16 %v5501, %v5500
        %v5535 = vpack.c.b16 %v5503, %v5502
        %v5536 = vpack.c.b16 %v5505, %v5504
        %v5537 = vpack.c.b16 %v5507, %v5506
        %v5538 = vpack.c.b16 %v5509, %v5508
        %v5539 = vpack.c.b16 %v5511, %v5510
        %v5540 = vpack.c.b16 %v5513, %v5512
        %v5541 = vpack.c.b16 %v5515, %v5514
        %v5542 = vpack.c.b16 %v5517, %v5516
        %v5543 = vpack.c.b16 %v5519, %v5518
        %v5544 = vpack.c.b16 %v5521, %v5520
        %v5545 = vpack.c.b16 %v5523, %v5522
        %v5546 = vpack.c.b16 %v5525, %v5524
        %v5547 = vpack.c.b16 %v5527, %v5526
        %v5548 = vpack.c.b16 %v5529, %v5528
        %v5549 = vpack.c.b16 %v5531, %v5530
        %v5569 = vsel %vm2801, %v5457, 0
        %5571 = vmatprep.subr.bf16.mxu0 0
        %5572 = vmatpush1.bf16.msra.mxu0 %v5532
        %5573 = vmatprep.subr.bf16.mxu0 0
        %5574 = vmatpush1.bf16.msra.mxu0 %v5533
        %5575 = vmatprep.subr.bf16.mxu0 0
        %5576 = vmatpush1.bf16.msra.mxu0 %v5534
        %5577 = vmatprep.subr.bf16.mxu0 0
        %5578 = vmatpush1.bf16.msra.mxu0 %v5535
        %5579 = vmatprep.subr.bf16.mxu0 0
        %5580 = vmatpush1.bf16.msra.mxu0 %v5536
        %5581 = vmatprep.subr.bf16.mxu0 0
        %5582 = vmatpush1.bf16.msra.mxu0 %v5537
        %5583 = vmatprep.subr.bf16.mxu0 0
        %5584 = vmatpush1.bf16.msra.mxu0 %v5538
        %5585 = vmatprep.subr.bf16.mxu0 0
        %5586 = vmatpush1.bf16.msra.mxu0 %v5539
        %5587 = vmatprep.subr.bf16.mxu0 0
        %5588 = vmatpush1.bf16.msra.mxu0 %v5540
        %5589 = vmatprep.subr.bf16.mxu0 0
        %5590 = vmatpush1.bf16.msra.mxu0 %v5541
        %5591 = vmatprep.subr.bf16.mxu0 0
        %5592 = vmatpush1.bf16.msra.mxu0 %v5542
        %5593 = vmatprep.subr.bf16.mxu0 0
        %5594 = vmatpush1.bf16.msra.mxu0 %v5543
        %5595 = vmatprep.subr.bf16.mxu0 0
        %5596 = vmatpush1.bf16.msra.mxu0 %v5544
        %5597 = vmatprep.subr.bf16.mxu0 0
        %5598 = vmatpush1.bf16.msra.mxu0 %v5545
        %5599 = vmatprep.subr.bf16.mxu0 0
        %5600 = vmatpush1.bf16.msra.mxu0 %v5546
        %5601 = vmatprep.subr.bf16.mxu0 0
        %5602 = vmatpush1.bf16.msra.mxu0 %v5547
        %5603 = vmatprep.mubr.bf16.mxu0 %v5456
        %5604 = vmatmul.mubr.bf16.gmra.mrb[0].mxu0 %v5455
        %v5605 = vpop.f32.mrb[0].mxu0
        %v5606 = vadd.f32 0.0, %v5605
        %v5607 = vpop.f32.mrb[0].mxu0
        %v5608 = vpop.f32.mrb[0].mxu0
        %v5609 = vpop.f32.mrb[0].mxu0
        %5610 = vdwg.mxu0
        %5611 = vmatprep.subr.bf16.mxu0 0
        %5612 = vmatpush1.bf16.msra.mxu0 %v5548
        %5613 = vmatprep.subr.bf16.mxu0 0
        %5614 = vmatpush1.bf16.msra.mxu0 %v5549
        %5615 = vmatprep.subr.bf16.mxu0 0
        %5616 = vmatpush1.bf16.msra.mxu0 0
        %5617 = vmatprep.subr.bf16.mxu0 0
        %5618 = vmatpush1.bf16.msra.mxu0 0
        %5619 = vmatprep.subr.bf16.mxu0 0
        %5620 = vmatpush1.bf16.msra.mxu0 0
        %5621 = vmatprep.subr.bf16.mxu0 0
        %5622 = vmatpush1.bf16.msra.mxu0 0
        %5623 = vmatprep.subr.bf16.mxu0 0
        %5624 = vmatpush1.bf16.msra.mxu0 0
        %5625 = vmatprep.subr.bf16.mxu0 0
        %5626 = vmatpush1.bf16.msra.mxu0 0
        %5627 = vmatprep.subr.bf16.mxu0 0
        %5628 = vmatpush1.bf16.msra.mxu0 0
        %5629 = vmatprep.subr.bf16.mxu0 0
        %5630 = vmatpush1.bf16.msra.mxu0 0
        %5631 = vmatprep.subr.bf16.mxu0 0
        %5632 = vmatpush1.bf16.msra.mxu0 0
        %5633 = vmatprep.subr.bf16.mxu0 0
        %5634 = vmatpush1.bf16.msra.mxu0 0
        %5635 = vmatprep.subr.bf16.mxu0 0
        %5636 = vmatpush1.bf16.msra.mxu0 0
        %5637 = vmatprep.subr.bf16.mxu0 0
        %5638 = vmatpush1.bf16.msra.mxu0 0
        %5639 = vmatprep.subr.bf16.mxu0 0
        %5640 = vmatpush1.bf16.msra.mxu0 0
        %5641 = vmatprep.subr.bf16.mxu0 0
        %5642 = vmatpush1.bf16.msra.mxu0 0
        %5643 = vmatprep.mubr.bf16.mxu0 0
        %5644 = vmatmul.mubr.bf16.gmra.mrb[0].mxu0 %v5569
        %v5645 = vpop.f32.mrb[0].mxu0
        %v5646 = vadd.f32 %v5606, %v5645
        %v5647 = vpop.f32.mrb[0].mxu0
        %v5648 = vpop.f32.mrb[0].mxu0
        %v5649 = vpop.f32.mrb[0].mxu0
        %5650 = vdwg.mxu0
        %v5651 = vadd.f32 %v5417, %v5646
        %s5652 = scalar_lea.vmem %s6, 1872
        %v5653 = vld [vmem:[%s5652] sm:$0xf]
        %v5654 = vld [vmem:[%s5652 + $0x4] sm:$0xf]
        %v5655 = vld [vmem:[%s5652 + $0x8] sm:$0xf]
        %v5656 = vld [vmem:[%s5652 + $0xc] sm:$0xf]
        %v5657 = vld [vmem:[%s5652 + $0x10] sm:$0xf]
        %v5658 = vld [vmem:[%s5652 + $0x14] sm:$0xf]
        %v5659 = vld [vmem:[%s5652 + $0x18] sm:$0xf]
        %v5660 = vld [vmem:[%s5652 + $0x1c] sm:$0xf]
        %v5661 = vld [vmem:[%s5652 + $0x20] sm:$0xf]
        %v5662 = vld [vmem:[%s5652 + $0x24] sm:$0xf]
        %v5663 = vld [vmem:[%s5652 + $0x28] sm:$0xf]
        %v5664 = vld [vmem:[%s5652 + $0x2c] sm:$0xf]
        %v5665 = vld [vmem:[%s5652 + $0x30] sm:$0xf]
        %v5666 = vld [vmem:[%s5652 + $0x34] sm:$0xf]
        %v5667 = vld [vmem:[%s5652 + $0x38] sm:$0xf]
        %v5668 = vld [vmem:[%s5652 + $0x3c] sm:$0xf]
        %v5669 = vld [vmem:[%s5652 + $0x40] sm:$0xf]
        %v5670 = vld [vmem:[%s5652 + $0x44] sm:$0xf]
        %v5671 = vld [vmem:[%s5652 + $0x48] sm:$0xf]
        %v5672 = vld [vmem:[%s5652 + $0x4c] sm:$0xf]
        %v5673 = vld [vmem:[%s5652 + $0x50] sm:$0xf]
        %v5674 = vld [vmem:[%s5652 + $0x54] sm:$0xf]
        %v5675 = vld [vmem:[%s5652 + $0x58] sm:$0xf]
        %v5676 = vld [vmem:[%s5652 + $0x5c] sm:$0xf]
        %v5677 = vld [vmem:[%s5652 + $0x60] sm:$0xf]
        %v5678 = vld [vmem:[%s5652 + $0x64] sm:$0xf]
        %v5679 = vld [vmem:[%s5652 + $0x68] sm:$0xf]
        %v5680 = vld [vmem:[%s5652 + $0x6c] sm:$0xf]
        %v5681 = vld [vmem:[%s5652 + $0x70] sm:$0xf]
        %v5682 = vld [vmem:[%s5652 + $0x74] sm:$0xf]
        %v5683 = vld [vmem:[%s5652 + $0x78] sm:$0xf]
        %v5684 = vld [vmem:[%s5652 + $0x7c] sm:$0xf]
        %v5685 = vld [vmem:[%s5652 + $0x80] sm:$0xf]
        %v5686 = vld [vmem:[%s5652 + $0x84] sm:$0xf]
        %v5687 = vld [vmem:[%s5652 + $0x88] sm:$0xf]
        %v5688 = vld [vmem:[%s5652 + $0x8c] sm:$0xf]
        %v5689 = vrot.slane %v2683, 6
        %v5690 = vrot.slane %v2686, 6
        %v5691 = vrot.slane %v2689, 6
        %v5730 = vunpack.c.l.b16 %v5653
        %v5731 = vunpack.c.l.b16 %v5654
        %v5732 = vunpack.c.l.b16 %v5655
        %v5733 = vunpack.c.l.b16 %v5656
        %v5734 = vunpack.c.l.b16 %v5657
        %v5735 = vunpack.c.l.b16 %v5658
        %v5736 = vunpack.c.l.b16 %v5659
        %v5737 = vunpack.c.l.b16 %v5660
        %v5738 = vunpack.c.l.b16 %v5661
        %v5739 = vunpack.c.l.b16 %v5662
        %v5740 = vunpack.c.l.b16 %v5663
        %v5741 = vunpack.c.l.b16 %v5664
        %v5742 = vunpack.c.l.b16 %v5665
        %v5743 = vunpack.c.l.b16 %v5666
        %v5744 = vunpack.c.l.b16 %v5667
        %v5745 = vunpack.c.l.b16 %v5668
        %v5746 = vunpack.c.l.b16 %v5669
        %v5747 = vunpack.c.l.b16 %v5670
        %v5748 = vunpack.c.l.b16 %v5671
        %v5749 = vunpack.c.l.b16 %v5672
        %v5750 = vunpack.c.l.b16 %v5673
        %v5751 = vunpack.c.l.b16 %v5674
        %v5752 = vunpack.c.l.b16 %v5675
        %v5753 = vunpack.c.l.b16 %v5676
        %v5754 = vunpack.c.l.b16 %v5677
        %v5755 = vunpack.c.l.b16 %v5678
        %v5756 = vunpack.c.l.b16 %v5679
        %v5757 = vunpack.c.l.b16 %v5680
        %v5758 = vunpack.c.l.b16 %v5681
        %v5759 = vunpack.c.l.b16 %v5682
        %v5760 = vunpack.c.l.b16 %v5683
        %v5761 = vunpack.c.l.b16 %v5684
        %v5762 = vunpack.c.l.b16 %v5685
        %v5763 = vunpack.c.l.b16 %v5686
        %v5764 = vunpack.c.l.b16 %v5687
        %v5765 = vunpack.c.l.b16 %v5688
        %v5766 = vpack.c.b16 %v5731, %v5730
        %v5767 = vpack.c.b16 %v5733, %v5732
        %v5768 = vpack.c.b16 %v5735, %v5734
        %v5769 = vpack.c.b16 %v5737, %v5736
        %v5770 = vpack.c.b16 %v5739, %v5738
        %v5771 = vpack.c.b16 %v5741, %v5740
        %v5772 = vpack.c.b16 %v5743, %v5742
        %v5773 = vpack.c.b16 %v5745, %v5744
        %v5774 = vpack.c.b16 %v5747, %v5746
        %v5775 = vpack.c.b16 %v5749, %v5748
        %v5776 = vpack.c.b16 %v5751, %v5750
        %v5777 = vpack.c.b16 %v5753, %v5752
        %v5778 = vpack.c.b16 %v5755, %v5754
        %v5779 = vpack.c.b16 %v5757, %v5756
        %v5780 = vpack.c.b16 %v5759, %v5758
        %v5781 = vpack.c.b16 %v5761, %v5760
        %v5782 = vpack.c.b16 %v5763, %v5762
        %v5783 = vpack.c.b16 %v5765, %v5764
        %v5803 = vsel %vm2801, %v5691, 0
        %5805 = vmatprep.subr.bf16.mxu0 0
        %5806 = vmatpush1.bf16.msra.mxu0 %v5766
        %5807 = vmatprep.subr.bf16.mxu0 0
        %5808 = vmatpush1.bf16.msra.mxu0 %v5767
        %5809 = vmatprep.subr.bf16.mxu0 0
        %5810 = vmatpush1.bf16.msra.mxu0 %v5768
        %5811 = vmatprep.subr.bf16.mxu0 0
        %5812 = vmatpush1.bf16.msra.mxu0 %v5769
        %5813 = vmatprep.subr.bf16.mxu0 0
        %5814 = vmatpush1.bf16.msra.mxu0 %v5770
        %5815 = vmatprep.subr.bf16.mxu0 0
        %5816 = vmatpush1.bf16.msra.mxu0 %v5771
        %5817 = vmatprep.subr.bf16.mxu0 0
        %5818 = vmatpush1.bf16.msra.mxu0 %v5772
        %5819 = vmatprep.subr.bf16.mxu0 0
        %5820 = vmatpush1.bf16.msra.mxu0 %v5773
        %5821 = vmatprep.subr.bf16.mxu0 0
        %5822 = vmatpush1.bf16.msra.mxu0 %v5774
        %5823 = vmatprep.subr.bf16.mxu0 0
        %5824 = vmatpush1.bf16.msra.mxu0 %v5775
        %5825 = vmatprep.subr.bf16.mxu0 0
        %5826 = vmatpush1.bf16.msra.mxu0 %v5776
        %5827 = vmatprep.subr.bf16.mxu0 0
        %5828 = vmatpush1.bf16.msra.mxu0 %v5777
        %5829 = vmatprep.subr.bf16.mxu0 0
        %5830 = vmatpush1.bf16.msra.mxu0 %v5778
        %5831 = vmatprep.subr.bf16.mxu0 0
        %5832 = vmatpush1.bf16.msra.mxu0 %v5779
        %5833 = vmatprep.subr.bf16.mxu0 0
        %5834 = vmatpush1.bf16.msra.mxu0 %v5780
        %5835 = vmatprep.subr.bf16.mxu0 0
        %5836 = vmatpush1.bf16.msra.mxu0 %v5781
        %5837 = vmatprep.mubr.bf16.mxu0 %v5690
        %5838 = vmatmul.mubr.bf16.gmra.mrb[0].mxu0 %v5689
        %v5839 = vpop.f32.mrb[0].mxu0
        %v5840 = vadd.f32 0.0, %v5839
        %v5841 = vpop.f32.mrb[0].mxu0
        %v5842 = vpop.f32.mrb[0].mxu0
        %v5843 = vpop.f32.mrb[0].mxu0
        %5844 = vdwg.mxu0
        %5845 = vmatprep.subr.bf16.mxu0 0
        %5846 = vmatpush1.bf16.msra.mxu0 %v5782
        %5847 = vmatprep.subr.bf16.mxu0 0
        %5848 = vmatpush1.bf16.msra.mxu0 %v5783
        %5849 = vmatprep.subr.bf16.mxu0 0
        %5850 = vmatpush1.bf16.msra.mxu0 0
        %5851 = vmatprep.subr.bf16.mxu0 0
        %5852 = vmatpush1.bf16.msra.mxu0 0
        %5853 = vmatprep.subr.bf16.mxu0 0
        %5854 = vmatpush1.bf16.msra.mxu0 0
        %5855 = vmatprep.subr.bf16.mxu0 0
        %5856 = vmatpush1.bf16.msra.mxu0 0
        %5857 = vmatprep.subr.bf16.mxu0 0
        %5858 = vmatpush1.bf16.msra.mxu0 0
        %5859 = vmatprep.subr.bf16.mxu0 0
        %5860 = vmatpush1.bf16.msra.mxu0 0
        %5861 = vmatprep.subr.bf16.mxu0 0
        %5862 = vmatpush1.bf16.msra.mxu0 0
        %5863 = vmatprep.subr.bf16.mxu0 0
        %5864 = vmatpush1.bf16.msra.mxu0 0
        %5865 = vmatprep.subr.bf16.mxu0 0
        %5866 = vmatpush1.bf16.msra.mxu0 0
        %5867 = vmatprep.subr.bf16.mxu0 0
        %5868 = vmatpush1.bf16.msra.mxu0 0
        %5869 = vmatprep.subr.bf16.mxu0 0
        %5870 = vmatpush1.bf16.msra.mxu0 0
        %5871 = vmatprep.subr.bf16.mxu0 0
        %5872 = vmatpush1.bf16.msra.mxu0 0
        %5873 = vmatprep.subr.bf16.mxu0 0
        %5874 = vmatpush1.bf16.msra.mxu0 0
        %5875 = vmatprep.subr.bf16.mxu0 0
        %5876 = vmatpush1.bf16.msra.mxu0 0
        %5877 = vmatprep.mubr.bf16.mxu0 0
        %5878 = vmatmul.mubr.bf16.gmra.mrb[0].mxu0 %v5803
        %v5879 = vpop.f32.mrb[0].mxu0
        %v5880 = vadd.f32 %v5840, %v5879
        %v5881 = vpop.f32.mrb[0].mxu0
        %v5882 = vpop.f32.mrb[0].mxu0
        %v5883 = vpop.f32.mrb[0].mxu0
        %5884 = vdwg.mxu0
        %v5885 = vadd.f32 %v5651, %v5880
        %s5886 = scalar_lea.vmem %s6, 2016
        %v5887 = vld [vmem:[%s5886] sm:$0xf]
        %v5888 = vld [vmem:[%s5886 + $0x4] sm:$0xf]
        %v5889 = vld [vmem:[%s5886 + $0x8] sm:$0xf]
        %v5890 = vld [vmem:[%s5886 + $0xc] sm:$0xf]
        %v5891 = vld [vmem:[%s5886 + $0x10] sm:$0xf]
        %v5892 = vld [vmem:[%s5886 + $0x14] sm:$0xf]
        %v5893 = vld [vmem:[%s5886 + $0x18] sm:$0xf]
        %v5894 = vld [vmem:[%s5886 + $0x1c] sm:$0xf]
        %v5895 = vld [vmem:[%s5886 + $0x20] sm:$0xf]
        %v5896 = vld [vmem:[%s5886 + $0x24] sm:$0xf]
        %v5897 = vld [vmem:[%s5886 + $0x28] sm:$0xf]
        %v5898 = vld [vmem:[%s5886 + $0x2c] sm:$0xf]
        %v5899 = vld [vmem:[%s5886 + $0x30] sm:$0xf]
        %v5900 = vld [vmem:[%s5886 + $0x34] sm:$0xf]
        %v5901 = vld [vmem:[%s5886 + $0x38] sm:$0xf]
        %v5902 = vld [vmem:[%s5886 + $0x3c] sm:$0xf]
        %v5903 = vld [vmem:[%s5886 + $0x40] sm:$0xf]
        %v5904 = vld [vmem:[%s5886 + $0x44] sm:$0xf]
        %v5905 = vld [vmem:[%s5886 + $0x48] sm:$0xf]
        %v5906 = vld [vmem:[%s5886 + $0x4c] sm:$0xf]
        %v5907 = vld [vmem:[%s5886 + $0x50] sm:$0xf]
        %v5908 = vld [vmem:[%s5886 + $0x54] sm:$0xf]
        %v5909 = vld [vmem:[%s5886 + $0x58] sm:$0xf]
        %v5910 = vld [vmem:[%s5886 + $0x5c] sm:$0xf]
        %v5911 = vld [vmem:[%s5886 + $0x60] sm:$0xf]
        %v5912 = vld [vmem:[%s5886 + $0x64] sm:$0xf]
        %v5913 = vld [vmem:[%s5886 + $0x68] sm:$0xf]
        %v5914 = vld [vmem:[%s5886 + $0x6c] sm:$0xf]
        %v5915 = vld [vmem:[%s5886 + $0x70] sm:$0xf]
        %v5916 = vld [vmem:[%s5886 + $0x74] sm:$0xf]
        %v5917 = vld [vmem:[%s5886 + $0x78] sm:$0xf]
        %v5918 = vld [vmem:[%s5886 + $0x7c] sm:$0xf]
        %v5919 = vld [vmem:[%s5886 + $0x80] sm:$0xf]
        %v5920 = vld [vmem:[%s5886 + $0x84] sm:$0xf]
        %v5921 = vld [vmem:[%s5886 + $0x88] sm:$0xf]
        %v5922 = vld [vmem:[%s5886 + $0x8c] sm:$0xf]
        %v5923 = vrot.slane %v2606, 7
        %v5924 = vrot.slane %v2607, 7
        %v5925 = vrot.slane %v2608, 7
        %v5964 = vunpack.c.l.b16 %v5887
        %v5965 = vunpack.c.l.b16 %v5888
        %v5966 = vunpack.c.l.b16 %v5889
        %v5967 = vunpack.c.l.b16 %v5890
        %v5968 = vunpack.c.l.b16 %v5891
        %v5969 = vunpack.c.l.b16 %v5892
        %v5970 = vunpack.c.l.b16 %v5893
        %v5971 = vunpack.c.l.b16 %v5894
        %v5972 = vunpack.c.l.b16 %v5895
        %v5973 = vunpack.c.l.b16 %v5896
        %v5974 = vunpack.c.l.b16 %v5897
        %v5975 = vunpack.c.l.b16 %v5898
        %v5976 = vunpack.c.l.b16 %v5899
        %v5977 = vunpack.c.l.b16 %v5900
        %v5978 = vunpack.c.l.b16 %v5901
        %v5979 = vunpack.c.l.b16 %v5902
        %v5980 = vunpack.c.l.b16 %v5903
        %v5981 = vunpack.c.l.b16 %v5904
        %v5982 = vunpack.c.l.b16 %v5905
        %v5983 = vunpack.c.l.b16 %v5906
        %v5984 = vunpack.c.l.b16 %v5907
        %v5985 = vunpack.c.l.b16 %v5908
        %v5986 = vunpack.c.l.b16 %v5909
        %v5987 = vunpack.c.l.b16 %v5910
        %v5988 = vunpack.c.l.b16 %v5911
        %v5989 = vunpack.c.l.b16 %v5912
        %v5990 = vunpack.c.l.b16 %v5913
        %v5991 = vunpack.c.l.b16 %v5914
        %v5992 = vunpack.c.l.b16 %v5915
        %v5993 = vunpack.c.l.b16 %v5916
        %v5994 = vunpack.c.l.b16 %v5917
        %v5995 = vunpack.c.l.b16 %v5918
        %v5996 = vunpack.c.l.b16 %v5919
        %v5997 = vunpack.c.l.b16 %v5920
        %v5998 = vunpack.c.l.b16 %v5921
        %v5999 = vunpack.c.l.b16 %v5922
        %v6000 = vpack.c.b16 %v5965, %v5964
        %v6001 = vpack.c.b16 %v5967, %v5966
        %v6002 = vpack.c.b16 %v5969, %v5968
        %v6003 = vpack.c.b16 %v5971, %v5970
        %v6004 = vpack.c.b16 %v5973, %v5972
        %v6005 = vpack.c.b16 %v5975, %v5974
        %v6006 = vpack.c.b16 %v5977, %v5976
        %v6007 = vpack.c.b16 %v5979, %v5978
        %v6008 = vpack.c.b16 %v5981, %v5980
        %v6009 = vpack.c.b16 %v5983, %v5982
        %v6010 = vpack.c.b16 %v5985, %v5984
        %v6011 = vpack.c.b16 %v5987, %v5986
        %v6012 = vpack.c.b16 %v5989, %v5988
        %v6013 = vpack.c.b16 %v5991, %v5990
        %v6014 = vpack.c.b16 %v5993, %v5992
        %v6015 = vpack.c.b16 %v5995, %v5994
        %v6016 = vpack.c.b16 %v5997, %v5996
        %v6017 = vpack.c.b16 %v5999, %v5998
        %v6037 = vsel %vm2801, %v5925, 0
        %6039 = vmatprep.subr.bf16.mxu0 0
        %6040 = vmatpush1.bf16.msra.mxu0 %v6000
        %6041 = vmatprep.subr.bf16.mxu0 0
        %6042 = vmatpush1.bf16.msra.mxu0 %v6001
        %6043 = vmatprep.subr.bf16.mxu0 0
        %6044 = vmatpush1.bf16.msra.mxu0 %v6002
        %6045 = vmatprep.subr.bf16.mxu0 0
        %6046 = vmatpush1.bf16.msra.mxu0 %v6003
        %6047 = vmatprep.subr.bf16.mxu0 0
        %6048 = vmatpush1.bf16.msra.mxu0 %v6004
        %6049 = vmatprep.subr.bf16.mxu0 0
        %6050 = vmatpush1.bf16.msra.mxu0 %v6005
        %6051 = vmatprep.subr.bf16.mxu0 0
        %6052 = vmatpush1.bf16.msra.mxu0 %v6006
        %6053 = vmatprep.subr.bf16.mxu0 0
        %6054 = vmatpush1.bf16.msra.mxu0 %v6007
        %6055 = vmatprep.subr.bf16.mxu0 0
        %6056 = vmatpush1.bf16.msra.mxu0 %v6008
        %6057 = vmatprep.subr.bf16.mxu0 0
        %6058 = vmatpush1.bf16.msra.mxu0 %v6009
        %6059 = vmatprep.subr.bf16.mxu0 0
        %6060 = vmatpush1.bf16.msra.mxu0 %v6010
        %6061 = vmatprep.subr.bf16.mxu0 0
        %6062 = vmatpush1.bf16.msra.mxu0 %v6011
        %6063 = vmatprep.subr.bf16.mxu0 0
        %6064 = vmatpush1.bf16.msra.mxu0 %v6012
        %6065 = vmatprep.subr.bf16.mxu0 0
        %6066 = vmatpush1.bf16.msra.mxu0 %v6013
        %6067 = vmatprep.subr.bf16.mxu0 0
        %6068 = vmatpush1.bf16.msra.mxu0 %v6014
        %6069 = vmatprep.subr.bf16.mxu0 0
        %6070 = vmatpush1.bf16.msra.mxu0 %v6015
        %6071 = vmatprep.mubr.bf16.mxu0 %v5924
        %6072 = vmatmul.mubr.bf16.gmra.mrb[0].mxu0 %v5923
        %v6073 = vpop.f32.mrb[0].mxu0
        %v6074 = vadd.f32 0.0, %v6073
        %v6075 = vpop.f32.mrb[0].mxu0
        %v6076 = vpop.f32.mrb[0].mxu0
        %v6077 = vpop.f32.mrb[0].mxu0
        %6078 = vdwg.mxu0
        %6079 = vmatprep.subr.bf16.mxu0 0
        %6080 = vmatpush1.bf16.msra.mxu0 %v6016
        %6081 = vmatprep.subr.bf16.mxu0 0
        %6082 = vmatpush1.bf16.msra.mxu0 %v6017
        %6083 = vmatprep.subr.bf16.mxu0 0
        %6084 = vmatpush1.bf16.msra.mxu0 0
        %6085 = vmatprep.subr.bf16.mxu0 0
        %6086 = vmatpush1.bf16.msra.mxu0 0
        %6087 = vmatprep.subr.bf16.mxu0 0
        %6088 = vmatpush1.bf16.msra.mxu0 0
        %6089 = vmatprep.subr.bf16.mxu0 0
        %6090 = vmatpush1.bf16.msra.mxu0 0
        %6091 = vmatprep.subr.bf16.mxu0 0
        %6092 = vmatpush1.bf16.msra.mxu0 0
        %6093 = vmatprep.subr.bf16.mxu0 0
        %6094 = vmatpush1.bf16.msra.mxu0 0
        %6095 = vmatprep.subr.bf16.mxu0 0
        %6096 = vmatpush1.bf16.msra.mxu0 0
        %6097 = vmatprep.subr.bf16.mxu0 0
        %6098 = vmatpush1.bf16.msra.mxu0 0
        %6099 = vmatprep.subr.bf16.mxu0 0
        %6100 = vmatpush1.bf16.msra.mxu0 0
        %6101 = vmatprep.subr.bf16.mxu0 0
        %6102 = vmatpush1.bf16.msra.mxu0 0
        %6103 = vmatprep.subr.bf16.mxu0 0
        %6104 = vmatpush1.bf16.msra.mxu0 0
        %6105 = vmatprep.subr.bf16.mxu0 0
        %6106 = vmatpush1.bf16.msra.mxu0 0
        %6107 = vmatprep.subr.bf16.mxu0 0
        %6108 = vmatpush1.bf16.msra.mxu0 0
        %6109 = vmatprep.subr.bf16.mxu0 0
        %6110 = vmatpush1.bf16.msra.mxu0 0
        %6111 = vmatprep.mubr.bf16.mxu0 0
        %6112 = vmatmul.mubr.bf16.gmra.mrb[0].mxu0 %v6037
        %v6113 = vpop.f32.mrb[0].mxu0
        %v6114 = vadd.f32 %v6074, %v6113
        %v6115 = vpop.f32.mrb[0].mxu0
        %v6116 = vpop.f32.mrb[0].mxu0
        %v6117 = vpop.f32.mrb[0].mxu0
        %6118 = vdwg.mxu0
        %v6119 = vadd.f32 %v5885, %v6114
        %s6120 = scalar_lea.vmem %s6, 2160
        %v6121 = vld [vmem:[%s6120] sm:$0xf]
        %v6122 = vld [vmem:[%s6120 + $0x4] sm:$0xf]
        %v6123 = vld [vmem:[%s6120 + $0x8] sm:$0xf]
        %v6124 = vld [vmem:[%s6120 + $0xc] sm:$0xf]
        %v6125 = vld [vmem:[%s6120 + $0x10] sm:$0xf]
        %v6126 = vld [vmem:[%s6120 + $0x14] sm:$0xf]
        %v6127 = vld [vmem:[%s6120 + $0x18] sm:$0xf]
        %v6128 = vld [vmem:[%s6120 + $0x1c] sm:$0xf]
        %v6129 = vld [vmem:[%s6120 + $0x20] sm:$0xf]
        %v6130 = vld [vmem:[%s6120 + $0x24] sm:$0xf]
        %v6131 = vld [vmem:[%s6120 + $0x28] sm:$0xf]
        %v6132 = vld [vmem:[%s6120 + $0x2c] sm:$0xf]
        %v6133 = vld [vmem:[%s6120 + $0x30] sm:$0xf]
        %v6134 = vld [vmem:[%s6120 + $0x34] sm:$0xf]
        %v6135 = vld [vmem:[%s6120 + $0x38] sm:$0xf]
        %v6136 = vld [vmem:[%s6120 + $0x3c] sm:$0xf]
        %v6137 = vld [vmem:[%s6120 + $0x40] sm:$0xf]
        %v6138 = vld [vmem:[%s6120 + $0x44] sm:$0xf]
        %v6139 = vld [vmem:[%s6120 + $0x48] sm:$0xf]
        %v6140 = vld [vmem:[%s6120 + $0x4c] sm:$0xf]
        %v6141 = vld [vmem:[%s6120 + $0x50] sm:$0xf]
        %v6142 = vld [vmem:[%s6120 + $0x54] sm:$0xf]
        %v6143 = vld [vmem:[%s6120 + $0x58] sm:$0xf]
        %v6144 = vld [vmem:[%s6120 + $0x5c] sm:$0xf]
        %v6145 = vld [vmem:[%s6120 + $0x60] sm:$0xf]
        %v6146 = vld [vmem:[%s6120 + $0x64] sm:$0xf]
        %v6147 = vld [vmem:[%s6120 + $0x68] sm:$0xf]
        %v6148 = vld [vmem:[%s6120 + $0x6c] sm:$0xf]
        %v6149 = vld [vmem:[%s6120 + $0x70] sm:$0xf]
        %v6150 = vld [vmem:[%s6120 + $0x74] sm:$0xf]
        %v6151 = vld [vmem:[%s6120 + $0x78] sm:$0xf]
        %v6152 = vld [vmem:[%s6120 + $0x7c] sm:$0xf]
        %v6153 = vld [vmem:[%s6120 + $0x80] sm:$0xf]
        %v6154 = vld [vmem:[%s6120 + $0x84] sm:$0xf]
        %v6155 = vld [vmem:[%s6120 + $0x88] sm:$0xf]
        %v6156 = vld [vmem:[%s6120 + $0x8c] sm:$0xf]
        %v6157 = vrot.slane %v2683, 7
        %v6158 = vrot.slane %v2686, 7
        %v6159 = vrot.slane %v2689, 7
        %v6198 = vunpack.c.l.b16 %v6121
        %v6199 = vunpack.c.l.b16 %v6122
        %v6200 = vunpack.c.l.b16 %v6123
        %v6201 = vunpack.c.l.b16 %v6124
        %v6202 = vunpack.c.l.b16 %v6125
        %v6203 = vunpack.c.l.b16 %v6126
        %v6204 = vunpack.c.l.b16 %v6127
        %v6205 = vunpack.c.l.b16 %v6128
        %v6206 = vunpack.c.l.b16 %v6129
        %v6207 = vunpack.c.l.b16 %v6130
        %v6208 = vunpack.c.l.b16 %v6131
        %v6209 = vunpack.c.l.b16 %v6132
        %v6210 = vunpack.c.l.b16 %v6133
        %v6211 = vunpack.c.l.b16 %v6134
        %v6212 = vunpack.c.l.b16 %v6135
        %v6213 = vunpack.c.l.b16 %v6136
        %v6214 = vunpack.c.l.b16 %v6137
        %v6215 = vunpack.c.l.b16 %v6138
        %v6216 = vunpack.c.l.b16 %v6139
        %v6217 = vunpack.c.l.b16 %v6140
        %v6218 = vunpack.c.l.b16 %v6141
        %v6219 = vunpack.c.l.b16 %v6142
        %v6220 = vunpack.c.l.b16 %v6143
        %v6221 = vunpack.c.l.b16 %v6144
        %v6222 = vunpack.c.l.b16 %v6145
        %v6223 = vunpack.c.l.b16 %v6146
        %v6224 = vunpack.c.l.b16 %v6147
        %v6225 = vunpack.c.l.b16 %v6148
        %v6226 = vunpack.c.l.b16 %v6149
        %v6227 = vunpack.c.l.b16 %v6150
        %v6228 = vunpack.c.l.b16 %v6151
        %v6229 = vunpack.c.l.b16 %v6152
        %v6230 = vunpack.c.l.b16 %v6153
        %v6231 = vunpack.c.l.b16 %v6154
        %v6232 = vunpack.c.l.b16 %v6155
        %v6233 = vunpack.c.l.b16 %v6156
        %v6234 = vpack.c.b16 %v6199, %v6198
        %v6235 = vpack.c.b16 %v6201, %v6200
        %v6236 = vpack.c.b16 %v6203, %v6202
        %v6237 = vpack.c.b16 %v6205, %v6204
        %v6238 = vpack.c.b16 %v6207, %v6206
        %v6239 = vpack.c.b16 %v6209, %v6208
        %v6240 = vpack.c.b16 %v6211, %v6210
        %v6241 = vpack.c.b16 %v6213, %v6212
        %v6242 = vpack.c.b16 %v6215, %v6214
        %v6243 = vpack.c.b16 %v6217, %v6216
        %v6244 = vpack.c.b16 %v6219, %v6218
        %v6245 = vpack.c.b16 %v6221, %v6220
        %v6246 = vpack.c.b16 %v6223, %v6222
        %v6247 = vpack.c.b16 %v6225, %v6224
        %v6248 = vpack.c.b16 %v6227, %v6226
        %v6249 = vpack.c.b16 %v6229, %v6228
        %v6250 = vpack.c.b16 %v6231, %v6230
        %v6251 = vpack.c.b16 %v6233, %v6232
        %v6271 = vsel %vm2801, %v6159, 0
        %6273 = vmatprep.subr.bf16.mxu0 0
        %6274 = vmatpush1.bf16.msra.mxu0 %v6234
        %6275 = vmatprep.subr.bf16.mxu0 0
        %6276 = vmatpush1.bf16.msra.mxu0 %v6235
        %6277 = vmatprep.subr.bf16.mxu0 0
        %6278 = vmatpush1.bf16.msra.mxu0 %v6236
        %6279 = vmatprep.subr.bf16.mxu0 0
        %6280 = vmatpush1.bf16.msra.mxu0 %v6237
        %6281 = vmatprep.subr.bf16.mxu0 0
        %6282 = vmatpush1.bf16.msra.mxu0 %v6238
        %6283 = vmatprep.subr.bf16.mxu0 0
        %6284 = vmatpush1.bf16.msra.mxu0 %v6239
        %6285 = vmatprep.subr.bf16.mxu0 0
        %6286 = vmatpush1.bf16.msra.mxu0 %v6240
        %6287 = vmatprep.subr.bf16.mxu0 0
        %6288 = vmatpush1.bf16.msra.mxu0 %v6241
        %6289 = vmatprep.subr.bf16.mxu0 0
        %6290 = vmatpush1.bf16.msra.mxu0 %v6242
        %6291 = vmatprep.subr.bf16.mxu0 0
        %6292 = vmatpush1.bf16.msra.mxu0 %v6243
        %6293 = vmatprep.subr.bf16.mxu0 0
        %6294 = vmatpush1.bf16.msra.mxu0 %v6244
        %6295 = vmatprep.subr.bf16.mxu0 0
        %6296 = vmatpush1.bf16.msra.mxu0 %v6245
        %6297 = vmatprep.subr.bf16.mxu0 0
        %6298 = vmatpush1.bf16.msra.mxu0 %v6246
        %6299 = vmatprep.subr.bf16.mxu0 0
        %6300 = vmatpush1.bf16.msra.mxu0 %v6247
        %6301 = vmatprep.subr.bf16.mxu0 0
        %6302 = vmatpush1.bf16.msra.mxu0 %v6248
        %6303 = vmatprep.subr.bf16.mxu0 0
        %6304 = vmatpush1.bf16.msra.mxu0 %v6249
        %6305 = vmatprep.mubr.bf16.mxu0 %v6158
        %6306 = vmatmul.mubr.bf16.gmra.mrb[0].mxu0 %v6157
        %v6307 = vpop.f32.mrb[0].mxu0
        %v6308 = vadd.f32 0.0, %v6307
        %v6309 = vpop.f32.mrb[0].mxu0
        %v6310 = vpop.f32.mrb[0].mxu0
        %v6311 = vpop.f32.mrb[0].mxu0
        %6312 = vdwg.mxu0
        %6313 = vmatprep.subr.bf16.mxu0 0
        %6314 = vmatpush1.bf16.msra.mxu0 %v6250
        %6315 = vmatprep.subr.bf16.mxu0 0
        %6316 = vmatpush1.bf16.msra.mxu0 %v6251
        %6317 = vmatprep.subr.bf16.mxu0 0
        %6318 = vmatpush1.bf16.msra.mxu0 0
        %6319 = vmatprep.subr.bf16.mxu0 0
        %6320 = vmatpush1.bf16.msra.mxu0 0
        %6321 = vmatprep.subr.bf16.mxu0 0
        %6322 = vmatpush1.bf16.msra.mxu0 0
        %6323 = vmatprep.subr.bf16.mxu0 0
        %6324 = vmatpush1.bf16.msra.mxu0 0
        %6325 = vmatprep.subr.bf16.mxu0 0
        %6326 = vmatpush1.bf16.msra.mxu0 0
        %6327 = vmatprep.subr.bf16.mxu0 0
        %6328 = vmatpush1.bf16.msra.mxu0 0
        %6329 = vmatprep.subr.bf16.mxu0 0
        %6330 = vmatpush1.bf16.msra.mxu0 0
        %6331 = vmatprep.subr.bf16.mxu0 0
        %6332 = vmatpush1.bf16.msra.mxu0 0
        %6333 = vmatprep.subr.bf16.mxu0 0
        %6334 = vmatpush1.bf16.msra.mxu0 0
        %6335 = vmatprep.subr.bf16.mxu0 0
        %6336 = vmatpush1.bf16.msra.mxu0 0
        %6337 = vmatprep.subr.bf16.mxu0 0
        %6338 = vmatpush1.bf16.msra.mxu0 0
        %6339 = vmatprep.subr.bf16.mxu0 0
        %6340 = vmatpush1.bf16.msra.mxu0 0
        %6341 = vmatprep.subr.bf16.mxu0 0
        %6342 = vmatpush1.bf16.msra.mxu0 0
        %6343 = vmatprep.subr.bf16.mxu0 0
        %6344 = vmatpush1.bf16.msra.mxu0 0
        %6345 = vmatprep.mubr.bf16.mxu0 0
        %6346 = vmatmul.mubr.bf16.gmra.mrb[0].mxu0 %v6271
        %v6347 = vpop.f32.mrb[0].mxu0
        %v6348 = vadd.f32 %v6308, %v6347
        %v6349 = vpop.f32.mrb[0].mxu0
        %v6350 = vpop.f32.mrb[0].mxu0
        %v6351 = vpop.f32.mrb[0].mxu0
        %6352 = vdwg.mxu0
        %v6353 = vadd.f32 %v6119, %v6348
        %v6354 = vld [vmem:[%s7] sm:$0x1]
        %v6355 = vadd.f32 %v6353, %v6354
        %v6356 = vmax.f32 %v6355, 0.0
        %v6357 = vpack.c.bf16 %v6356, %v6356
        %v6358 = vld [vmem:[%s8] sm:$0xf]
        %v6359 = vld [vmem:[%s8 + $0x4] sm:$0xf]
        %v6360 = vld [vmem:[%s8 + $0x8] sm:$0xf]
        %v6361 = vld [vmem:[%s8 + $0xc] sm:$0xf]
        %v6362 = vld [vmem:[%s9] sm:$0x1]
        %v6367 = vunpack.c.l.b16 %v6358
        %v6368 = vunpack.c.l.b16 %v6359
        %v6369 = vunpack.c.l.b16 %v6360
        %v6370 = vunpack.c.l.b16 %v6361
        %v6371 = vpack.c.b16 %v6368, %v6367
        %v6372 = vpack.c.b16 %v6370, %v6369
        %v6376 = vsel %vm2801, %v6357, 0
        %6378 = vmatprep.subr.bf16.mxu0 0
        %6379 = vmatpush1.bf16.msra.mxu0 %v6371
        %6380 = vmatprep.subr.bf16.mxu0 0
        %6381 = vmatpush1.bf16.msra.mxu0 %v6372
        %6382 = vmatprep.subr.bf16.mxu0 0
        %6383 = vmatpush1.bf16.msra.mxu0 0
        %6384 = vmatprep.subr.bf16.mxu0 0
        %6385 = vmatpush1.bf16.msra.mxu0 0
        %6386 = vmatprep.subr.bf16.mxu0 0
        %6387 = vmatpush1.bf16.msra.mxu0 0
        %6388 = vmatprep.subr.bf16.mxu0 0
        %6389 = vmatpush1.bf16.msra.mxu0 0
        %6390 = vmatprep.subr.bf16.mxu0 0
        %6391 = vmatpush1.bf16.msra.mxu0 0
        %6392 = vmatprep.subr.bf16.mxu0 0
        %6393 = vmatpush1.bf16.msra.mxu0 0
        %6394 = vmatprep.subr.bf16.mxu0 0
        %6395 = vmatpush1.bf16.msra.mxu0 0
        %6396 = vmatprep.subr.bf16.mxu0 0
        %6397 = vmatpush1.bf16.msra.mxu0 0
        %6398 = vmatprep.subr.bf16.mxu0 0
        %6399 = vmatpush1.bf16.msra.mxu0 0
        %6400 = vmatprep.subr.bf16.mxu0 0
        %6401 = vmatpush1.bf16.msra.mxu0 0
        %6402 = vmatprep.subr.bf16.mxu0 0
        %6403 = vmatpush1.bf16.msra.mxu0 0
        %6404 = vmatprep.subr.bf16.mxu0 0
        %6405 = vmatpush1.bf16.msra.mxu0 0
        %6406 = vmatprep.subr.bf16.mxu0 0
        %6407 = vmatpush1.bf16.msra.mxu0 0
        %6408 = vmatprep.subr.bf16.mxu0 0
        %6409 = vmatpush1.bf16.msra.mxu0 0
        %6410 = vmatprep.mubr.bf16.mxu0 0
        %6411 = vmatmul.mubr.bf16.gmra.mrb[0].mxu0 %v6376
        %v6412 = vpop.f32.mrb[0].mxu0
        %v6413 = vadd.f32 %v6362, %v6412
        %v6414 = vpop.f32.mrb[0].mxu0
        %v6415 = vpop.f32.mrb[0].mxu0
        %v6416 = vpop.f32.mrb[0].mxu0
        %6417 = vdwg.mxu0
        %6418 = vst [vmem:[%s351] sm:$0x1] %v6413
        %s6419 = sand.u32 %s247, 1
        %s6420 = scalar_lea.sflag [#allocation3], %s6419
        %s6421 = sand.u32 %s247, 1
        %s6422 = scalar_lea.vmem [#allocation2], %s6421
        // Predicated region
        $region61: #{mario_model.1} parent=59 // pred_check
          %p6423 = pneg %p257
        $region62: #{mario_model.1} parent=59 // pred_check_branch
          %6425 = sbr.rel (%p6423) target = $region64
        $region63: #{mario_model.1} parent=59 // pred_region
          %s6427 = ssub.s32 16, 16
          %6428 = vsyncadd %s6420, %s6427
          %s6429 = smul.addr %s24, 16
          %s6430 = scalar_lea.hbm %s10, %s6429
          %s6432 = sshll.u32 %s6422, 4
          %s6433 = int_to_ptr.vmem [resolvable:$true] %s6432
          %6435 = dma.vmem_to_hbm [thread:$0]  %s6433, 16, %s6430, %s6420
        $region64: #{mario_model.1} parent=59 // pred_fallthru
          _
      $region60: #{mario_model.1} parent=5 // pred_fallthru
        _
      %p6436 = scmp.le.s32.totalorder 2, %s19
      // Predicated region
      $region65: #{mario_model.1} parent=5 // pred_check
        %p6437 = pneg %p6436
      $region66: #{mario_model.1} parent=5 // pred_check_branch
        %6439 = sbr.rel (%p6437) target = $region68
      $region67: #{mario_model.1} parent=5 // pred_region
        %s6440 = ssub.s32 %s19, 2
        // Predicated region
        $region69: #{mario_model.1} parent=67 // pred_check
          %p6441 = pneg %p263
        $region70: #{mario_model.1} parent=67 // pred_check_branch
          %6443 = sbr.rel (%p6441) target = $region72
        $region71: #{mario_model.1} parent=67 // pred_region
          %s6444 = sand.u32 %s248, 1
          %s6445 = scalar_lea.sflag [#allocation3], %s6444
          %s6446 = sand.u32 %s248, 1
          %s6447 = scalar_lea.vmem [#allocation2], %s6446
          %6448 = dma.done %s6445, 16
        $region72: #{mario_model.1} parent=67 // pred_fallthru
          _
      $region68: #{mario_model.1} parent=5 // pred_fallthru
        _
    $region6: #{mario_model.1} parent=1 // loop_footer
      %s23 = sadd.s32 1, %s19
    $region7: #{mario_model.1} parent=1 // loop_footer_branch
      %18 = sbr.rel target = $region3
    $region8: #{mario_model.1} parent=1 // loop_exit
      _
    %6449 = vsyncpa [#allocation3], 1
    %s6450 = scalar_lea.sflag [#allocation3], 1
    %6451 = vsyncpa %s6450, 1

</llo_original>
